<compile_context>
chip_gen: v7x
topology: tpu7x:2x2x1
jax: 0.10.0
libtpu: 0.0.40
codegen_flags: <defaults>
</compile_context>

<pallas_src>
import jax
import jax.numpy as jnp
import numpy as np
from jax.experimental import pallas as pl
from jax.experimental.pallas import tpu as pltpu

_BN_EPS = np.float32(1e-5)
_INV_SQRT2 = np.float32(0.7071067811865476)
_INV_1414 = np.float32(1.0 / 1.414)


# ---------------------------------------------------------------------------
# In-kernel math helpers
# ---------------------------------------------------------------------------
def _gelu_exact(x):
    # PyTorch nn.GELU() default: 0.5*x*(1+erf(x/sqrt(2))).  erf via
    # Abramowitz & Stegun 7.1.26 (abs err ~1.5e-7), exact division.
    a1, a2, a3, a4, a5 = (np.float32(0.254829592), np.float32(-0.284496736),
                          np.float32(1.421413741), np.float32(-1.453152027),
                          np.float32(1.061405429))
    p = np.float32(0.3275911)
    one = np.float32(1.0)
    z = x * _INV_SQRT2
    sgn = jnp.where(z >= 0.0, one, np.float32(-1.0))
    az = jnp.abs(z)
    t = one / (one + p * az)
    poly = ((((a5 * t + a4) * t + a3) * t + a2) * t + a1) * t
    erf = sgn * (one - poly * jnp.exp(-az * az))
    return np.float32(0.5) * x * (one + erf)


# ---------------------------------------------------------------------------
# Fused kernel factory
# ---------------------------------------------------------------------------
def _make_fused_kernel(*, lout_p, m1, offsets, count, cout_p,
                       is_res, same_channels):
    inv_cnt = np.float32(1.0 / count)

    def conv_bn_gelu(canvas_ref, w_ref, bias, gamma, beta, mask):
        # 3x3 conv as 9 accumulated MXU matmuls over static lane windows of
        # the bf16 canvas (no tap-matrix materialization; f32 accumulation).
        acc = jnp.zeros((cout_p, lout_p), jnp.float32)
        for t, o in enumerate(offsets):
            acc = acc + jnp.dot(
                w_ref[t], canvas_ref[:, m1 + o: m1 + o + lout_p],
                preferred_element_type=jnp.float32)
        y = acc + bias                                    # (Co,L) + (Co,1)

        # BatchNorm2d (training-mode batch stats, biased variance, eps=1e-5)
        # over the count = N*H*W valid (non-halo) positions, single pass.
        ym = y * mask
        mean = jnp.sum(ym, axis=1, keepdims=True) * inv_cnt
        ex2 = jnp.sum(ym * y, axis=1, keepdims=True) * inv_cnt
        var = ex2 - mean * mean
        y = (y - mean) * jax.lax.rsqrt(var + _BN_EPS)
        y = y * gamma + beta
        return _gelu_exact(y)

    def kernel(mask_ref, xext_ref, w1_ref, w2_ref, bn_ref, out_ref, x1ext_ref):
        mask = mask_ref[...]                              # (1, L) f32
        b1, g1, bt1 = bn_ref[:, 0:1], bn_ref[:, 1:2], bn_ref[:, 2:3]
        b2, g2, bt2 = bn_ref[:, 3:4], bn_ref[:, 4:5], bn_ref[:, 5:6]

        # ---- conv1 -> BN -> GELU -----------------------------------------
        x1 = conv_bn_gelu(xext_ref, w1_ref, b1, g1, bt1, mask)

        # Stash x1 (halo zeroed so conv2 sees proper zero padding) in the
        # bf16 VMEM canvas.  Only the two lane margins are zeroed; the
        # 128-aligned interior is stored exactly once.  x1 never touches HBM.
        lo, hi = m1, m1 + lout_p
        x1ext_ref[:, 0:lo] = jnp.zeros((cout_p, m1), jnp.bfloat16)
        x1ext_ref[:, hi:hi + m1] = jnp.zeros((cout_p, m1), jnp.bfloat16)
        x1ext_ref[:, lo:hi] = (x1 * mask).astype(jnp.bfloat16)

        # ---- conv2 -> BN -> GELU (+ residual / 1.414) ----------------------
        x2 = conv_bn_gelu(x1ext_ref, w2_ref, b2, g2, bt2, mask)

        if is_res:
            if same_channels:
                res = xext_ref[:, lo:hi].astype(jnp.float32)
            else:
                res = x1
            x2 = (x2 + res) * _INV_1414

        out_ref[...] = x2.astype(out_ref.dtype)

    return kernel


# ---------------------------------------------------------------------------
# Wrapper: layout glue (NCHW <-> channels x flat-padded-spatial) + pallas_call
# ---------------------------------------------------------------------------
def residual_conv_block(x_nchw, params, is_res: bool):
    n, cin, h, w = x_nchw.shape
    cout = params["w1"].shape[-1]                      # HWIO weight
    same_channels = (cin == cout)
    f32, bf16 = jnp.float32, jnp.bfloat16

    cin_p = -(-cin // 8) * 8                           # sublane-align channels
    cout_p = -(-cout // 8) * 8
    hp, wp = h + 2, w + 2
    lout = n * hp * wp                                 # flat padded canvas
    lout_p = -(-lout // 128) * 128                     # lane-aligned length
    m1 = -(-(wp + 1) // 128) * 128                     # lane-aligned margin
    lext = lout_p + 2 * m1
    offsets = [(dh - 1) * wp + (dw - 1) for dh in range(3) for dw in range(3)]

    # Input canvas: (Cin_p, lext) bf16 with zero spatial halo, lane margins
    # and tail (zeros -> no NaN/Inf can leak into the masked BN stats).
    xp = jnp.pad(x_nchw, ((0, 0), (0, cin_p - cin), (1, 1), (1, 1)))
    xc = jnp.transpose(xp, (1, 0, 2, 3)).reshape(cin_p, lout)
    xext = jnp.pad(xc, ((0, 0), (m1, m1 + lout_p - lout))).astype(bf16)

    # Validity mask (1 on the H x W interior, 0 on halo + padded tail).
    m2d = jnp.zeros((hp, wp), f32).at[1:h + 1, 1:w + 1].set(1.0)
    mask = jnp.tile(m2d[None], (n, 1, 1)).reshape(1, lout)
    mask = jnp.pad(mask, ((0, 0), (0, lout_p - lout)))

    # Weights: HWIO -> (9, Cout_p, Cin_p), tap-major, pre-cast to bf16.
    def prep_w(w_hwio, ci, ci_p, co, co_p):
        wpad = jnp.pad(w_hwio,
                       ((0, 0), (0, 0), (0, ci_p - ci), (0, co_p - co)))
        return jnp.transpose(wpad.reshape(9, ci_p, co_p), (0, 2, 1)).astype(bf16)

    w1m = prep_w(params["w1"], cin, cin_p, cout, cout_p)
    w2m = prep_w(params["w2"], cout, cout_p, cout, cout_p)

    # Six bias/BN vectors packed into one (Cout_p, 8) f32 operand.
    # Padding fills (bias 0, gamma 1, beta 0) keep padded channel rows at 0.
    def colvec(v, fill):
        v = v.reshape(cout).astype(f32)
        return jnp.pad(v, (0, cout_p - cout), constant_values=fill)

    bn = jnp.stack([colvec(params["b1"], 0.0), colvec(params["g1"], 1.0),
                    colvec(params["bt1"], 0.0), colvec(params["b2"], 0.0),
                    colvec(params["g2"], 1.0), colvec(params["bt2"], 0.0)],
                   axis=1)
    bn = jnp.pad(bn, ((0, 0), (0, 2)))                 # (Cout_p, 8)

    args = (mask, xext, w1m, w2m, bn)

    kernel = _make_fused_kernel(lout_p=lout_p, m1=m1, offsets=offsets,
                                count=n * h * w, cout_p=cout_p,
                                is_res=is_res, same_channels=same_channels)

    def full_spec(shape):
        nd = len(shape)
        return pl.BlockSpec(shape, lambda i, _nd=nd: (0,) * _nd)

    out_cl = pl.pallas_call(
        kernel,
        out_shape=jax.ShapeDtypeStruct((cout_p, lout_p), f32),
        grid=(1,),
        in_specs=[full_spec(a.shape) for a in args],
        out_specs=pl.BlockSpec((cout_p, lout_p), lambda i: (0, 0)),
        scratch_shapes=[pltpu.VMEM((cout_p, lext), bf16)],
        compiler_params=pltpu.CompilerParams(
            dimension_semantics=("arbitrary",),
            vmem_limit_bytes=64 * 1024 * 1024),
    )(*args)

    # (Cout_p, lout_p) -> NCHW: drop lane tail, channel padding, spatial halo.
    out = out_cl[:, :lout].reshape(cout_p, n, hp, wp)[:cout, :, 1:h + 1, 1:w + 1]
    return jnp.transpose(out, (1, 0, 2, 3))


# ---------------------------------------------------------------------------
# Deterministic parameter init (shapes from the nn.Module __init__)
# ---------------------------------------------------------------------------
def init_params(key, cin, cout):
    ks = jax.random.split(key, 8)
    return dict(
        w1=0.1 * jax.random.normal(ks[0], (3, 3, cin, cout), jnp.float32),   # HWIO
        b1=0.05 * jax.random.normal(ks[1], (1, cout), jnp.float32),
        g1=1.0 + 0.1 * jax.random.normal(ks[2], (1, cout), jnp.float32),
        bt1=0.05 * jax.random.normal(ks[3], (1, cout), jnp.float32),
        w2=0.1 * jax.random.normal(ks[4], (3, 3, cout, cout), jnp.float32),
        b2=0.05 * jax.random.normal(ks[5], (1, cout), jnp.float32),
        g2=1.0 + 0.1 * jax.random.normal(ks[6], (1, cout), jnp.float32),
        bt2=0.05 * jax.random.normal(ks[7], (1, cout), jnp.float32),
    )


# Pure-JAX reference (same semantics), used only as a correctness check.
def _reference(x_nchw, params, is_res):
    x = jnp.transpose(x_nchw, (0, 2, 3, 1))

    def cbg(inp, w4, b, g, bt):
        y = jax.lax.conv_general_dilated(
            inp, w4, (1, 1), "SAME",
            dimension_numbers=("NHWC", "HWIO", "NHWC"))
        y = y + b.reshape(1, 1, 1, -1)
        m = jnp.mean(y, axis=(0, 1, 2), keepdims=True)
        v = jnp.mean(jnp.square(y - m), axis=(0, 1, 2), keepdims=True)
        y = (y - m) / jnp.sqrt(v + _BN_EPS)
        y = y * g.reshape(1, 1, 1, -1) + bt.reshape(1, 1, 1, -1)
        return jax.nn.gelu(y, approximate=False)

    x1 = cbg(x, params["w1"], params["b1"], params["g1"], params["bt1"])
    x2 = cbg(x1, params["w2"], params["b2"], params["g2"], params["bt2"])
    if is_res:
        out = (x + x2 if x.shape[-1] == x2.shape[-1] else x1 + x2) / 1.414
    else:
        out = x2
    return jnp.transpose(out, (0, 3, 1, 2))


if __name__ == "__main__":
    key = jax.random.PRNGKey(0)
    kx, kp = jax.random.split(key)

    N, CIN, COUT, H, W = 2, 4, 8, 16, 16            # in_channels != out_channels
    x = jax.random.normal(kx, (N, CIN, H, W), jnp.float32)
    params = init_params(kp, CIN, COUT)

    out = residual_conv_block(x, params, is_res=True)
    out = jax.block_until_ready(out)
    assert out.shape == (N, COUT, H, W)

    ref = _reference(x, params, is_res=True)
    # Tolerance accounts for bf16 canvases / MXU operands (f32 accumulation).
    np.testing.assert_allclose(np.asarray(out), np.asarray(ref),
                               atol=4e-2, rtol=4e-2)
    print("KERNEL_OK")
</pallas_src>

<mosaic_0001>
module attributes {stable_mosaic.version = 11 : i64} {
  func.func @kernel(%arg0: i32, %arg1: memref<1x768xf32, #tpu.memory_space<vmem>>, %arg2: memref<8x1024xbf16, #tpu.memory_space<vmem>>, %arg3: memref<9x8x8xbf16, #tpu.memory_space<vmem>>, %arg4: memref<9x8x8xbf16, #tpu.memory_space<vmem>>, %arg5: memref<8x8xf32, #tpu.memory_space<vmem>>, %arg6: memref<8x768xf32, #tpu.memory_space<vmem>>, %arg7: memref<8x1024xbf16, #tpu.memory_space<vmem>>) attributes {dimension_semantics = [#tpu.dimension_semantics<arbitrary>], iteration_bounds = array<i64: 1>, scalar_prefetch = 0 : i64, scratch_operands = 1 : i64, tpu.core_type = #tpu.core_type<tc>, window_params = [{pipeline_mode = #tpu.pipeline_mode<synchronous>, transform_indices = @transform_0, window_bounds = array<i64: 1, 768>}, {pipeline_mode = #tpu.pipeline_mode<synchronous>, transform_indices = @transform_1, window_bounds = array<i64: 8, 1024>}, {pipeline_mode = #tpu.pipeline_mode<synchronous>, transform_indices = @transform_2, window_bounds = array<i64: 9, 8, 8>}, {pipeline_mode = #tpu.pipeline_mode<synchronous>, transform_indices = @transform_3, window_bounds = array<i64: 9, 8, 8>}, {pipeline_mode = #tpu.pipeline_mode<synchronous>, transform_indices = @transform_4, window_bounds = array<i64: 8, 8>}, {pipeline_mode = #tpu.pipeline_mode<synchronous>, transform_indices = @transform_5, window_bounds = array<i64: 8, 768>}]} {
    %c0 = arith.constant 0 : index
    %c0_0 = arith.constant 0 : index
    %0 = vector.load %arg1[%c0, %c0_0] : memref<1x768xf32, #tpu.memory_space<vmem>>, vector<1x768xf32>
    %c0_1 = arith.constant 0 : index
    %c0_2 = arith.constant 0 : index
    %1 = vector.load %arg5[%c0_1, %c0_2] : memref<8x8xf32, #tpu.memory_space<vmem>>, vector<8x1xf32>
    %c0_3 = arith.constant 0 : index
    %c1 = arith.constant 1 : index
    %2 = vector.load %arg5[%c0_3, %c1] : memref<8x8xf32, #tpu.memory_space<vmem>>, vector<8x1xf32>
    %c0_4 = arith.constant 0 : index
    %c2 = arith.constant 2 : index
    %3 = vector.load %arg5[%c0_4, %c2] : memref<8x8xf32, #tpu.memory_space<vmem>>, vector<8x1xf32>
    %c0_5 = arith.constant 0 : index
    %c3 = arith.constant 3 : index
    %4 = vector.load %arg5[%c0_5, %c3] : memref<8x8xf32, #tpu.memory_space<vmem>>, vector<8x1xf32>
    %c0_6 = arith.constant 0 : index
    %c4 = arith.constant 4 : index
    %5 = vector.load %arg5[%c0_6, %c4] : memref<8x8xf32, #tpu.memory_space<vmem>>, vector<8x1xf32>
    %c0_7 = arith.constant 0 : index
    %c5 = arith.constant 5 : index
    %6 = vector.load %arg5[%c0_7, %c5] : memref<8x8xf32, #tpu.memory_space<vmem>>, vector<8x1xf32>
    %cst = arith.constant 0.000000e+00 : f32
    %7 = vector.broadcast %cst : f32 to vector<8x768xf32>
    %c0_8 = arith.constant 0 : index
    %c0_9 = arith.constant 0 : index
    %c0_10 = arith.constant 0 : index
    %8 = vector.load %arg3[%c0_8, %c0_9, %c0_10] : memref<9x8x8xbf16, #tpu.memory_space<vmem>>, vector<1x8x8xbf16>
    %9 = vector.shape_cast %8 : vector<1x8x8xbf16> to vector<8x8xbf16>
    %c0_11 = arith.constant 0 : index
    %c109 = arith.constant 109 : index
    %10 = vector.load %arg2[%c0_11, %c109] : memref<8x1024xbf16, #tpu.memory_space<vmem>>, vector<8x768xbf16>
    %cst_12 = arith.constant dense<0.000000e+00> : vector<8x768xf32>
    %11 = tpu.matmul %9, %10, %cst_12 {dimension_numbers = #tpu.dot_dimension_numbers<[1], [0], [0], [1], [0, 0, 1, 1], [], []>} : vector<8x8xbf16>, vector<8x768xbf16>, vector<8x768xf32> -> vector<8x768xf32>
    %12 = arith.addf %7, %11 : vector<8x768xf32>
    %c1_13 = arith.constant 1 : index
    %c0_14 = arith.constant 0 : index
    %c0_15 = arith.constant 0 : index
    %13 = vector.load %arg3[%c1_13, %c0_14, %c0_15] : memref<9x8x8xbf16, #tpu.memory_space<vmem>>, vector<1x8x8xbf16>
    %14 = vector.shape_cast %13 : vector<1x8x8xbf16> to vector<8x8xbf16>
    %c0_16 = arith.constant 0 : index
    %c110 = arith.constant 110 : index
    %15 = vector.load %arg2[%c0_16, %c110] : memref<8x1024xbf16, #tpu.memory_space<vmem>>, vector<8x768xbf16>
    %cst_17 = arith.constant dense<0.000000e+00> : vector<8x768xf32>
    %16 = tpu.matmul %14, %15, %cst_17 {dimension_numbers = #tpu.dot_dimension_numbers<[1], [0], [0], [1], [0, 0, 1, 1], [], []>} : vector<8x8xbf16>, vector<8x768xbf16>, vector<8x768xf32> -> vector<8x768xf32>
    %17 = arith.addf %12, %16 : vector<8x768xf32>
    %c2_18 = arith.constant 2 : index
    %c0_19 = arith.constant 0 : index
    %c0_20 = arith.constant 0 : index
    %18 = vector.load %arg3[%c2_18, %c0_19, %c0_20] : memref<9x8x8xbf16, #tpu.memory_space<vmem>>, vector<1x8x8xbf16>
    %19 = vector.shape_cast %18 : vector<1x8x8xbf16> to vector<8x8xbf16>
    %c0_21 = arith.constant 0 : index
    %c111 = arith.constant 111 : index
    %20 = vector.load %arg2[%c0_21, %c111] : memref<8x1024xbf16, #tpu.memory_space<vmem>>, vector<8x768xbf16>
    %cst_22 = arith.constant dense<0.000000e+00> : vector<8x768xf32>
    %21 = tpu.matmul %19, %20, %cst_22 {dimension_numbers = #tpu.dot_dimension_numbers<[1], [0], [0], [1], [0, 0, 1, 1], [], []>} : vector<8x8xbf16>, vector<8x768xbf16>, vector<8x768xf32> -> vector<8x768xf32>
    %22 = arith.addf %17, %21 : vector<8x768xf32>
    %c3_23 = arith.constant 3 : index
    %c0_24 = arith.constant 0 : index
    %c0_25 = arith.constant 0 : index
    %23 = vector.load %arg3[%c3_23, %c0_24, %c0_25] : memref<9x8x8xbf16, #tpu.memory_space<vmem>>, vector<1x8x8xbf16>
    %24 = vector.shape_cast %23 : vector<1x8x8xbf16> to vector<8x8xbf16>
    %c0_26 = arith.constant 0 : index
    %c127 = arith.constant 127 : index
    %25 = vector.load %arg2[%c0_26, %c127] : memref<8x1024xbf16, #tpu.memory_space<vmem>>, vector<8x768xbf16>
    %cst_27 = arith.constant dense<0.000000e+00> : vector<8x768xf32>
    %26 = tpu.matmul %24, %25, %cst_27 {dimension_numbers = #tpu.dot_dimension_numbers<[1], [0], [0], [1], [0, 0, 1, 1], [], []>} : vector<8x8xbf16>, vector<8x768xbf16>, vector<8x768xf32> -> vector<8x768xf32>
    %27 = arith.addf %22, %26 : vector<8x768xf32>
    %c4_28 = arith.constant 4 : index
    %c0_29 = arith.constant 0 : index
    %c0_30 = arith.constant 0 : index
    %28 = vector.load %arg3[%c4_28, %c0_29, %c0_30] : memref<9x8x8xbf16, #tpu.memory_space<vmem>>, vector<1x8x8xbf16>
    %29 = vector.shape_cast %28 : vector<1x8x8xbf16> to vector<8x8xbf16>
    %c0_31 = arith.constant 0 : index
    %c128 = arith.constant 128 : index
    %30 = vector.load %arg2[%c0_31, %c128] : memref<8x1024xbf16, #tpu.memory_space<vmem>>, vector<8x768xbf16>
    %cst_32 = arith.constant dense<0.000000e+00> : vector<8x768xf32>
    %31 = tpu.matmul %29, %30, %cst_32 {dimension_numbers = #tpu.dot_dimension_numbers<[1], [0], [0], [1], [0, 0, 1, 1], [], []>} : vector<8x8xbf16>, vector<8x768xbf16>, vector<8x768xf32> -> vector<8x768xf32>
    %32 = arith.addf %27, %31 : vector<8x768xf32>
    %c5_33 = arith.constant 5 : index
    %c0_34 = arith.constant 0 : index
    %c0_35 = arith.constant 0 : index
    %33 = vector.load %arg3[%c5_33, %c0_34, %c0_35] : memref<9x8x8xbf16, #tpu.memory_space<vmem>>, vector<1x8x8xbf16>
    %34 = vector.shape_cast %33 : vector<1x8x8xbf16> to vector<8x8xbf16>
    %c0_36 = arith.constant 0 : index
    %c129 = arith.constant 129 : index
    %35 = vector.load %arg2[%c0_36, %c129] : memref<8x1024xbf16, #tpu.memory_space<vmem>>, vector<8x768xbf16>
    %cst_37 = arith.constant dense<0.000000e+00> : vector<8x768xf32>
    %36 = tpu.matmul %34, %35, %cst_37 {dimension_numbers = #tpu.dot_dimension_numbers<[1], [0], [0], [1], [0, 0, 1, 1], [], []>} : vector<8x8xbf16>, vector<8x768xbf16>, vector<8x768xf32> -> vector<8x768xf32>
    %37 = arith.addf %32, %36 : vector<8x768xf32>
    %c6 = arith.constant 6 : index
    %c0_38 = arith.constant 0 : index
    %c0_39 = arith.constant 0 : index
    %38 = vector.load %arg3[%c6, %c0_38, %c0_39] : memref<9x8x8xbf16, #tpu.memory_space<vmem>>, vector<1x8x8xbf16>
    %39 = vector.shape_cast %38 : vector<1x8x8xbf16> to vector<8x8xbf16>
    %c0_40 = arith.constant 0 : index
    %c145 = arith.constant 145 : index
    %40 = vector.load %arg2[%c0_40, %c145] : memref<8x1024xbf16, #tpu.memory_space<vmem>>, vector<8x768xbf16>
    %cst_41 = arith.constant dense<0.000000e+00> : vector<8x768xf32>
    %41 = tpu.matmul %39, %40, %cst_41 {dimension_numbers = #tpu.dot_dimension_numbers<[1], [0], [0], [1], [0, 0, 1, 1], [], []>} : vector<8x8xbf16>, vector<8x768xbf16>, vector<8x768xf32> -> vector<8x768xf32>
    %42 = arith.addf %37, %41 : vector<8x768xf32>
    %c7 = arith.constant 7 : index
    %c0_42 = arith.constant 0 : index
    %c0_43 = arith.constant 0 : index
    %43 = vector.load %arg3[%c7, %c0_42, %c0_43] : memref<9x8x8xbf16, #tpu.memory_space<vmem>>, vector<1x8x8xbf16>
    %44 = vector.shape_cast %43 : vector<1x8x8xbf16> to vector<8x8xbf16>
    %c0_44 = arith.constant 0 : index
    %c146 = arith.constant 146 : index
    %45 = vector.load %arg2[%c0_44, %c146] : memref<8x1024xbf16, #tpu.memory_space<vmem>>, vector<8x768xbf16>
    %cst_45 = arith.constant dense<0.000000e+00> : vector<8x768xf32>
    %46 = tpu.matmul %44, %45, %cst_45 {dimension_numbers = #tpu.dot_dimension_numbers<[1], [0], [0], [1], [0, 0, 1, 1], [], []>} : vector<8x8xbf16>, vector<8x768xbf16>, vector<8x768xf32> -> vector<8x768xf32>
    %47 = arith.addf %42, %46 : vector<8x768xf32>
    %c8 = arith.constant 8 : index
    %c0_46 = arith.constant 0 : index
    %c0_47 = arith.constant 0 : index
    %48 = vector.load %arg3[%c8, %c0_46, %c0_47] : memref<9x8x8xbf16, #tpu.memory_space<vmem>>, vector<1x8x8xbf16>
    %49 = vector.shape_cast %48 : vector<1x8x8xbf16> to vector<8x8xbf16>
    %c0_48 = arith.constant 0 : index
    %c147 = arith.constant 147 : index
    %50 = vector.load %arg2[%c0_48, %c147] : memref<8x1024xbf16, #tpu.memory_space<vmem>>, vector<8x768xbf16>
    %cst_49 = arith.constant dense<0.000000e+00> : vector<8x768xf32>
    %51 = tpu.matmul %49, %50, %cst_49 {dimension_numbers = #tpu.dot_dimension_numbers<[1], [0], [0], [1], [0, 0, 1, 1], [], []>} : vector<8x8xbf16>, vector<8x768xbf16>, vector<8x768xf32> -> vector<8x768xf32>
    %52 = arith.addf %47, %51 : vector<8x768xf32>
    %53 = vector.broadcast %1 : vector<8x1xf32> to vector<8x768xf32>
    %54 = arith.addf %52, %53 : vector<8x768xf32>
    %55 = vector.broadcast %0 : vector<1x768xf32> to vector<8x768xf32>
    %56 = arith.mulf %54, %55 : vector<8x768xf32>
    %cst_50 = arith.constant dense<0.000000e+00> : vector<8xf32>
    %57 = vector.multi_reduction <add>, %56, %cst_50 [1] : vector<8x768xf32> to vector<8xf32>
    %58 = vector.shape_cast %57 : vector<8xf32> to vector<8x1xf32>
    %cst_51 = arith.constant 0.001953125 : f32
    %59 = vector.broadcast %cst_51 : f32 to vector<8x1xf32>
    %60 = arith.mulf %58, %59 : vector<8x1xf32>
    %61 = arith.mulf %56, %54 : vector<8x768xf32>
    %cst_52 = arith.constant dense<0.000000e+00> : vector<8xf32>
    %62 = vector.multi_reduction <add>, %61, %cst_52 [1] : vector<8x768xf32> to vector<8xf32>
    %63 = vector.shape_cast %62 : vector<8xf32> to vector<8x1xf32>
    %cst_53 = arith.constant 0.001953125 : f32
    %64 = vector.broadcast %cst_53 : f32 to vector<8x1xf32>
    %65 = arith.mulf %63, %64 : vector<8x1xf32>
    %66 = arith.mulf %60, %60 : vector<8x1xf32>
    %67 = arith.subf %65, %66 : vector<8x1xf32>
    %68 = vector.broadcast %60 : vector<8x1xf32> to vector<8x768xf32>
    %69 = arith.subf %54, %68 : vector<8x768xf32>
    %cst_54 = arith.constant 9.99999974E-6 : f32
    %70 = vector.broadcast %cst_54 : f32 to vector<8x1xf32>
    %71 = arith.addf %67, %70 : vector<8x1xf32>
    %72 = math.rsqrt %71 : vector<8x1xf32>
    %73 = vector.broadcast %72 : vector<8x1xf32> to vector<8x768xf32>
    %74 = arith.mulf %69, %73 : vector<8x768xf32>
    %75 = vector.broadcast %2 : vector<8x1xf32> to vector<8x768xf32>
    %76 = arith.mulf %74, %75 : vector<8x768xf32>
    %77 = vector.broadcast %3 : vector<8x1xf32> to vector<8x768xf32>
    %78 = arith.addf %76, %77 : vector<8x768xf32>
    %cst_55 = arith.constant 0.707106769 : f32
    %79 = vector.broadcast %cst_55 : f32 to vector<8x768xf32>
    %80 = arith.mulf %78, %79 : vector<8x768xf32>
    %cst_56 = arith.constant 0.000000e+00 : f32
    %81 = vector.broadcast %cst_56 : f32 to vector<8x768xf32>
    %82 = arith.cmpf oge, %80, %81 : vector<8x768xf32>
    %cst_57 = arith.constant 1.000000e+00 : f32
    %cst_58 = arith.constant -1.000000e+00 : f32
    %83 = vector.broadcast %cst_57 : f32 to vector<8x768xf32>
    %84 = vector.broadcast %cst_58 : f32 to vector<8x768xf32>
    %85 = arith.select %82, %83, %84 : vector<8x768xi1>, vector<8x768xf32>
    %86 = math.absf %80 : vector<8x768xf32>
    %cst_59 = arith.constant 0.327591091 : f32
    %87 = vector.broadcast %cst_59 : f32 to vector<8x768xf32>
    %88 = arith.mulf %87, %86 : vector<8x768xf32>
    %cst_60 = arith.constant 1.000000e+00 : f32
    %89 = vector.broadcast %cst_60 : f32 to vector<8x768xf32>
    %90 = arith.addf %89, %88 : vector<8x768xf32>
    %cst_61 = arith.constant 1.000000e+00 : f32
    %91 = vector.broadcast %cst_61 : f32 to vector<8x768xf32>
    %92 = arith.divf %91, %90 : vector<8x768xf32>
    %cst_62 = arith.constant 1.06140542 : f32
    %93 = vector.broadcast %cst_62 : f32 to vector<8x768xf32>
    %94 = arith.mulf %93, %92 : vector<8x768xf32>
    %cst_63 = arith.constant -1.45315206 : f32
    %95 = vector.broadcast %cst_63 : f32 to vector<8x768xf32>
    %96 = arith.addf %94, %95 : vector<8x768xf32>
    %97 = arith.mulf %96, %92 : vector<8x768xf32>
    %cst_64 = arith.constant 1.42141378 : f32
    %98 = vector.broadcast %cst_64 : f32 to vector<8x768xf32>
    %99 = arith.addf %97, %98 : vector<8x768xf32>
    %100 = arith.mulf %99, %92 : vector<8x768xf32>
    %cst_65 = arith.constant -0.284496725 : f32
    %101 = vector.broadcast %cst_65 : f32 to vector<8x768xf32>
    %102 = arith.addf %100, %101 : vector<8x768xf32>
    %103 = arith.mulf %102, %92 : vector<8x768xf32>
    %cst_66 = arith.constant 0.254829586 : f32
    %104 = vector.broadcast %cst_66 : f32 to vector<8x768xf32>
    %105 = arith.addf %103, %104 : vector<8x768xf32>
    %106 = arith.mulf %105, %92 : vector<8x768xf32>
    %cst_67 = arith.constant 0.000000e+00 : f32
    %107 = vector.broadcast %cst_67 : f32 to vector<8x768xf32>
    %108 = arith.subf %107, %86 : vector<8x768xf32>
    %109 = arith.mulf %108, %86 : vector<8x768xf32>
    %110 = math.exp %109 : vector<8x768xf32>
    %111 = arith.mulf %106, %110 : vector<8x768xf32>
    %cst_68 = arith.constant 1.000000e+00 : f32
    %112 = vector.broadcast %cst_68 : f32 to vector<8x768xf32>
    %113 = arith.subf %112, %111 : vector<8x768xf32>
    %114 = arith.mulf %85, %113 : vector<8x768xf32>
    %cst_69 = arith.constant 5.000000e-01 : f32
    %115 = vector.broadcast %cst_69 : f32 to vector<8x768xf32>
    %116 = arith.mulf %115, %78 : vector<8x768xf32>
    %cst_70 = arith.constant 1.000000e+00 : f32
    %117 = vector.broadcast %cst_70 : f32 to vector<8x768xf32>
    %118 = arith.addf %117, %114 : vector<8x768xf32>
    %119 = arith.mulf %116, %118 : vector<8x768xf32>
    %cst_71 = arith.constant 0.000000e+00 : bf16
    %120 = vector.broadcast %cst_71 : bf16 to vector<8x128xbf16>
    %c0_72 = arith.constant 0 : index
    %c0_73 = arith.constant 0 : index
    %121 = vector.load %arg7[%c0_72, %c0_73] : memref<8x1024xbf16, #tpu.memory_space<vmem>>, vector<8x128xbf16>
    tpu.vector_store %arg7[%c0_72, %c0_73], %120 {strides = array<i32>} : memref<8x1024xbf16, #tpu.memory_space<vmem>>, vector<8x128xbf16>,
    %cst_74 = arith.constant 0.000000e+00 : bf16
    %122 = vector.broadcast %cst_74 : bf16 to vector<8x128xbf16>
    %c0_75 = arith.constant 0 : index
    %c896 = arith.constant 896 : index
    %123 = vector.load %arg7[%c0_75, %c896] : memref<8x1024xbf16, #tpu.memory_space<vmem>>, vector<8x128xbf16>
    tpu.vector_store %arg7[%c0_75, %c896], %122 {strides = array<i32>} : memref<8x1024xbf16, #tpu.memory_space<vmem>>, vector<8x128xbf16>,
    %124 = vector.broadcast %0 : vector<1x768xf32> to vector<8x768xf32>
    %125 = arith.mulf %119, %124 : vector<8x768xf32>
    %126 = arith.truncf %125 : vector<8x768xf32> to vector<8x768xbf16>
    %c0_76 = arith.constant 0 : index
    %c128_77 = arith.constant 128 : index
    %127 = vector.load %arg7[%c0_76, %c128_77] : memref<8x1024xbf16, #tpu.memory_space<vmem>>, vector<8x768xbf16>
    tpu.vector_store %arg7[%c0_76, %c128_77], %126 {strides = array<i32>} : memref<8x1024xbf16, #tpu.memory_space<vmem>>, vector<8x768xbf16>,
    %cst_78 = arith.constant 0.000000e+00 : f32
    %128 = vector.broadcast %cst_78 : f32 to vector<8x768xf32>
    %c0_79 = arith.constant 0 : index
    %c0_80 = arith.constant 0 : index
    %c0_81 = arith.constant 0 : index
    %129 = vector.load %arg4[%c0_79, %c0_80, %c0_81] : memref<9x8x8xbf16, #tpu.memory_space<vmem>>, vector<1x8x8xbf16>
    %130 = vector.shape_cast %129 : vector<1x8x8xbf16> to vector<8x8xbf16>
    %c0_82 = arith.constant 0 : index
    %c109_83 = arith.constant 109 : index
    %131 = vector.load %arg7[%c0_82, %c109_83] : memref<8x1024xbf16, #tpu.memory_space<vmem>>, vector<8x768xbf16>
    %cst_84 = arith.constant dense<0.000000e+00> : vector<8x768xf32>
    %132 = tpu.matmul %130, %131, %cst_84 {dimension_numbers = #tpu.dot_dimension_numbers<[1], [0], [0], [1], [0, 0, 1, 1], [], []>} : vector<8x8xbf16>, vector<8x768xbf16>, vector<8x768xf32> -> vector<8x768xf32>
    %133 = arith.addf %128, %132 : vector<8x768xf32>
    %c1_85 = arith.constant 1 : index
    %c0_86 = arith.constant 0 : index
    %c0_87 = arith.constant 0 : index
    %134 = vector.load %arg4[%c1_85, %c0_86, %c0_87] : memref<9x8x8xbf16, #tpu.memory_space<vmem>>, vector<1x8x8xbf16>
    %135 = vector.shape_cast %134 : vector<1x8x8xbf16> to vector<8x8xbf16>
    %c0_88 = arith.constant 0 : index
    %c110_89 = arith.constant 110 : index
    %136 = vector.load %arg7[%c0_88, %c110_89] : memref<8x1024xbf16, #tpu.memory_space<vmem>>, vector<8x768xbf16>
    %cst_90 = arith.constant dense<0.000000e+00> : vector<8x768xf32>
    %137 = tpu.matmul %135, %136, %cst_90 {dimension_numbers = #tpu.dot_dimension_numbers<[1], [0], [0], [1], [0, 0, 1, 1], [], []>} : vector<8x8xbf16>, vector<8x768xbf16>, vector<8x768xf32> -> vector<8x768xf32>
    %138 = arith.addf %133, %137 : vector<8x768xf32>
    %c2_91 = arith.constant 2 : index
    %c0_92 = arith.constant 0 : index
    %c0_93 = arith.constant 0 : index
    %139 = vector.load %arg4[%c2_91, %c0_92, %c0_93] : memref<9x8x8xbf16, #tpu.memory_space<vmem>>, vector<1x8x8xbf16>
    %140 = vector.shape_cast %139 : vector<1x8x8xbf16> to vector<8x8xbf16>
    %c0_94 = arith.constant 0 : index
    %c111_95 = arith.constant 111 : index
    %141 = vector.load %arg7[%c0_94, %c111_95] : memref<8x1024xbf16, #tpu.memory_space<vmem>>, vector<8x768xbf16>
    %cst_96 = arith.constant dense<0.000000e+00> : vector<8x768xf32>
    %142 = tpu.matmul %140, %141, %cst_96 {dimension_numbers = #tpu.dot_dimension_numbers<[1], [0], [0], [1], [0, 0, 1, 1], [], []>} : vector<8x8xbf16>, vector<8x768xbf16>, vector<8x768xf32> -> vector<8x768xf32>
    %143 = arith.addf %138, %142 : vector<8x768xf32>
    %c3_97 = arith.constant 3 : index
    %c0_98 = arith.constant 0 : index
    %c0_99 = arith.constant 0 : index
    %144 = vector.load %arg4[%c3_97, %c0_98, %c0_99] : memref<9x8x8xbf16, #tpu.memory_space<vmem>>, vector<1x8x8xbf16>
    %145 = vector.shape_cast %144 : vector<1x8x8xbf16> to vector<8x8xbf16>
    %c0_100 = arith.constant 0 : index
    %c127_101 = arith.constant 127 : index
    %146 = vector.load %arg7[%c0_100, %c127_101] : memref<8x1024xbf16, #tpu.memory_space<vmem>>, vector<8x768xbf16>
    %cst_102 = arith.constant dense<0.000000e+00> : vector<8x768xf32>
    %147 = tpu.matmul %145, %146, %cst_102 {dimension_numbers = #tpu.dot_dimension_numbers<[1], [0], [0], [1], [0, 0, 1, 1], [], []>} : vector<8x8xbf16>, vector<8x768xbf16>, vector<8x768xf32> -> vector<8x768xf32>
    %148 = arith.addf %143, %147 : vector<8x768xf32>
    %c4_103 = arith.constant 4 : index
    %c0_104 = arith.constant 0 : index
    %c0_105 = arith.constant 0 : index
    %149 = vector.load %arg4[%c4_103, %c0_104, %c0_105] : memref<9x8x8xbf16, #tpu.memory_space<vmem>>, vector<1x8x8xbf16>
    %150 = vector.shape_cast %149 : vector<1x8x8xbf16> to vector<8x8xbf16>
    %c0_106 = arith.constant 0 : index
    %c128_107 = arith.constant 128 : index
    %151 = vector.load %arg7[%c0_106, %c128_107] : memref<8x1024xbf16, #tpu.memory_space<vmem>>, vector<8x768xbf16>
    %cst_108 = arith.constant dense<0.000000e+00> : vector<8x768xf32>
    %152 = tpu.matmul %150, %151, %cst_108 {dimension_numbers = #tpu.dot_dimension_numbers<[1], [0], [0], [1], [0, 0, 1, 1], [], []>} : vector<8x8xbf16>, vector<8x768xbf16>, vector<8x768xf32> -> vector<8x768xf32>
    %153 = arith.addf %148, %152 : vector<8x768xf32>
    %c5_109 = arith.constant 5 : index
    %c0_110 = arith.constant 0 : index
    %c0_111 = arith.constant 0 : index
    %154 = vector.load %arg4[%c5_109, %c0_110, %c0_111] : memref<9x8x8xbf16, #tpu.memory_space<vmem>>, vector<1x8x8xbf16>
    %155 = vector.shape_cast %154 : vector<1x8x8xbf16> to vector<8x8xbf16>
    %c0_112 = arith.constant 0 : index
    %c129_113 = arith.constant 129 : index
    %156 = vector.load %arg7[%c0_112, %c129_113] : memref<8x1024xbf16, #tpu.memory_space<vmem>>, vector<8x768xbf16>
    %cst_114 = arith.constant dense<0.000000e+00> : vector<8x768xf32>
    %157 = tpu.matmul %155, %156, %cst_114 {dimension_numbers = #tpu.dot_dimension_numbers<[1], [0], [0], [1], [0, 0, 1, 1], [], []>} : vector<8x8xbf16>, vector<8x768xbf16>, vector<8x768xf32> -> vector<8x768xf32>
    %158 = arith.addf %153, %157 : vector<8x768xf32>
    %c6_115 = arith.constant 6 : index
    %c0_116 = arith.constant 0 : index
    %c0_117 = arith.constant 0 : index
    %159 = vector.load %arg4[%c6_115, %c0_116, %c0_117] : memref<9x8x8xbf16, #tpu.memory_space<vmem>>, vector<1x8x8xbf16>
    %160 = vector.shape_cast %159 : vector<1x8x8xbf16> to vector<8x8xbf16>
    %c0_118 = arith.constant 0 : index
    %c145_119 = arith.constant 145 : index
    %161 = vector.load %arg7[%c0_118, %c145_119] : memref<8x1024xbf16, #tpu.memory_space<vmem>>, vector<8x768xbf16>
    %cst_120 = arith.constant dense<0.000000e+00> : vector<8x768xf32>
    %162 = tpu.matmul %160, %161, %cst_120 {dimension_numbers = #tpu.dot_dimension_numbers<[1], [0], [0], [1], [0, 0, 1, 1], [], []>} : vector<8x8xbf16>, vector<8x768xbf16>, vector<8x768xf32> -> vector<8x768xf32>
    %163 = arith.addf %158, %162 : vector<8x768xf32>
    %c7_121 = arith.constant 7 : index
    %c0_122 = arith.constant 0 : index
    %c0_123 = arith.constant 0 : index
    %164 = vector.load %arg4[%c7_121, %c0_122, %c0_123] : memref<9x8x8xbf16, #tpu.memory_space<vmem>>, vector<1x8x8xbf16>
    %165 = vector.shape_cast %164 : vector<1x8x8xbf16> to vector<8x8xbf16>
    %c0_124 = arith.constant 0 : index
    %c146_125 = arith.constant 146 : index
    %166 = vector.load %arg7[%c0_124, %c146_125] : memref<8x1024xbf16, #tpu.memory_space<vmem>>, vector<8x768xbf16>
    %cst_126 = arith.constant dense<0.000000e+00> : vector<8x768xf32>
    %167 = tpu.matmul %165, %166, %cst_126 {dimension_numbers = #tpu.dot_dimension_numbers<[1], [0], [0], [1], [0, 0, 1, 1], [], []>} : vector<8x8xbf16>, vector<8x768xbf16>, vector<8x768xf32> -> vector<8x768xf32>
    %168 = arith.addf %163, %167 : vector<8x768xf32>
    %c8_127 = arith.constant 8 : index
    %c0_128 = arith.constant 0 : index
    %c0_129 = arith.constant 0 : index
    %169 = vector.load %arg4[%c8_127, %c0_128, %c0_129] : memref<9x8x8xbf16, #tpu.memory_space<vmem>>, vector<1x8x8xbf16>
    %170 = vector.shape_cast %169 : vector<1x8x8xbf16> to vector<8x8xbf16>
    %c0_130 = arith.constant 0 : index
    %c147_131 = arith.constant 147 : index
    %171 = vector.load %arg7[%c0_130, %c147_131] : memref<8x1024xbf16, #tpu.memory_space<vmem>>, vector<8x768xbf16>
    %cst_132 = arith.constant dense<0.000000e+00> : vector<8x768xf32>
    %172 = tpu.matmul %170, %171, %cst_132 {dimension_numbers = #tpu.dot_dimension_numbers<[1], [0], [0], [1], [0, 0, 1, 1], [], []>} : vector<8x8xbf16>, vector<8x768xbf16>, vector<8x768xf32> -> vector<8x768xf32>
    %173 = arith.addf %168, %172 : vector<8x768xf32>
    %174 = vector.broadcast %4 : vector<8x1xf32> to vector<8x768xf32>
    %175 = arith.addf %173, %174 : vector<8x768xf32>
    %176 = vector.broadcast %0 : vector<1x768xf32> to vector<8x768xf32>
    %177 = arith.mulf %175, %176 : vector<8x768xf32>
    %cst_133 = arith.constant dense<0.000000e+00> : vector<8xf32>
    %178 = vector.multi_reduction <add>, %177, %cst_133 [1] : vector<8x768xf32> to vector<8xf32>
    %179 = vector.shape_cast %178 : vector<8xf32> to vector<8x1xf32>
    %cst_134 = arith.constant 0.001953125 : f32
    %180 = vector.broadcast %cst_134 : f32 to vector<8x1xf32>
    %181 = arith.mulf %179, %180 : vector<8x1xf32>
    %182 = arith.mulf %177, %175 : vector<8x768xf32>
    %cst_135 = arith.constant dense<0.000000e+00> : vector<8xf32>
    %183 = vector.multi_reduction <add>, %182, %cst_135 [1] : vector<8x768xf32> to vector<8xf32>
    %184 = vector.shape_cast %183 : vector<8xf32> to vector<8x1xf32>
    %cst_136 = arith.constant 0.001953125 : f32
    %185 = vector.broadcast %cst_136 : f32 to vector<8x1xf32>
    %186 = arith.mulf %184, %185 : vector<8x1xf32>
    %187 = arith.mulf %181, %181 : vector<8x1xf32>
    %188 = arith.subf %186, %187 : vector<8x1xf32>
    %189 = vector.broadcast %181 : vector<8x1xf32> to vector<8x768xf32>
    %190 = arith.subf %175, %189 : vector<8x768xf32>
    %cst_137 = arith.constant 9.99999974E-6 : f32
    %191 = vector.broadcast %cst_137 : f32 to vector<8x1xf32>
    %192 = arith.addf %188, %191 : vector<8x1xf32>
    %193 = math.rsqrt %192 : vector<8x1xf32>
    %194 = vector.broadcast %193 : vector<8x1xf32> to vector<8x768xf32>
    %195 = arith.mulf %190, %194 : vector<8x768xf32>
    %196 = vector.broadcast %5 : vector<8x1xf32> to vector<8x768xf32>
    %197 = arith.mulf %195, %196 : vector<8x768xf32>
    %198 = vector.broadcast %6 : vector<8x1xf32> to vector<8x768xf32>
    %199 = arith.addf %197, %198 : vector<8x768xf32>
    %cst_138 = arith.constant 0.707106769 : f32
    %200 = vector.broadcast %cst_138 : f32 to vector<8x768xf32>
    %201 = arith.mulf %199, %200 : vector<8x768xf32>
    %cst_139 = arith.constant 0.000000e+00 : f32
    %202 = vector.broadcast %cst_139 : f32 to vector<8x768xf32>
    %203 = arith.cmpf oge, %201, %202 : vector<8x768xf32>
    %cst_140 = arith.constant 1.000000e+00 : f32
    %cst_141 = arith.constant -1.000000e+00 : f32
    %204 = vector.broadcast %cst_140 : f32 to vector<8x768xf32>
    %205 = vector.broadcast %cst_141 : f32 to vector<8x768xf32>
    %206 = arith.select %203, %204, %205 : vector<8x768xi1>, vector<8x768xf32>
    %207 = math.absf %201 : vector<8x768xf32>
    %cst_142 = arith.constant 0.327591091 : f32
    %208 = vector.broadcast %cst_142 : f32 to vector<8x768xf32>
    %209 = arith.mulf %208, %207 : vector<8x768xf32>
    %cst_143 = arith.constant 1.000000e+00 : f32
    %210 = vector.broadcast %cst_143 : f32 to vector<8x768xf32>
    %211 = arith.addf %210, %209 : vector<8x768xf32>
    %cst_144 = arith.constant 1.000000e+00 : f32
    %212 = vector.broadcast %cst_144 : f32 to vector<8x768xf32>
    %213 = arith.divf %212, %211 : vector<8x768xf32>
    %cst_145 = arith.constant 1.06140542 : f32
    %214 = vector.broadcast %cst_145 : f32 to vector<8x768xf32>
    %215 = arith.mulf %214, %213 : vector<8x768xf32>
    %cst_146 = arith.constant -1.45315206 : f32
    %216 = vector.broadcast %cst_146 : f32 to vector<8x768xf32>
    %217 = arith.addf %215, %216 : vector<8x768xf32>
    %218 = arith.mulf %217, %213 : vector<8x768xf32>
    %cst_147 = arith.constant 1.42141378 : f32
    %219 = vector.broadcast %cst_147 : f32 to vector<8x768xf32>
    %220 = arith.addf %218, %219 : vector<8x768xf32>
    %221 = arith.mulf %220, %213 : vector<8x768xf32>
    %cst_148 = arith.constant -0.284496725 : f32
    %222 = vector.broadcast %cst_148 : f32 to vector<8x768xf32>
    %223 = arith.addf %221, %222 : vector<8x768xf32>
    %224 = arith.mulf %223, %213 : vector<8x768xf32>
    %cst_149 = arith.constant 0.254829586 : f32
    %225 = vector.broadcast %cst_149 : f32 to vector<8x768xf32>
    %226 = arith.addf %224, %225 : vector<8x768xf32>
    %227 = arith.mulf %226, %213 : vector<8x768xf32>
    %cst_150 = arith.constant 0.000000e+00 : f32
    %228 = vector.broadcast %cst_150 : f32 to vector<8x768xf32>
    %229 = arith.subf %228, %207 : vector<8x768xf32>
    %230 = arith.mulf %229, %207 : vector<8x768xf32>
    %231 = math.exp %230 : vector<8x768xf32>
    %232 = arith.mulf %227, %231 : vector<8x768xf32>
    %cst_151 = arith.constant 1.000000e+00 : f32
    %233 = vector.broadcast %cst_151 : f32 to vector<8x768xf32>
    %234 = arith.subf %233, %232 : vector<8x768xf32>
    %235 = arith.mulf %206, %234 : vector<8x768xf32>
    %cst_152 = arith.constant 5.000000e-01 : f32
    %236 = vector.broadcast %cst_152 : f32 to vector<8x768xf32>
    %237 = arith.mulf %236, %199 : vector<8x768xf32>
    %cst_153 = arith.constant 1.000000e+00 : f32
    %238 = vector.broadcast %cst_153 : f32 to vector<8x768xf32>
    %239 = arith.addf %238, %235 : vector<8x768xf32>
    %240 = arith.mulf %237, %239 : vector<8x768xf32>
    %241 = arith.addf %240, %119 : vector<8x768xf32>
    %cst_154 = arith.constant 0.70721358 : f32
    %242 = vector.broadcast %cst_154 : f32 to vector<8x768xf32>
    %243 = arith.mulf %241, %242 : vector<8x768xf32>
    %c0_155 = arith.constant 0 : index
    %c0_156 = arith.constant 0 : index
    %244 = vector.load %arg6[%c0_155, %c0_156] : memref<8x768xf32, #tpu.memory_space<vmem>>, vector<8x768xf32>
    tpu.vector_store %arg6[%c0_155, %c0_156], %243 {strides = array<i32>} : memref<8x768xf32, #tpu.memory_space<vmem>>, vector<8x768xf32>,
    return
  }
  func.func @transform_0(%arg0: i32) -> (i32, i32) {
    %c0_i32 = arith.constant 0 : i32
    %c0_i32_0 = arith.constant 0 : i32
    %c0_i32_1 = arith.constant 0 : i32
    return %c0_i32, %c0_i32_0 : i32, i32
  }
  func.func @transform_1(%arg0: i32) -> (i32, i32) {
    %c0_i32 = arith.constant 0 : i32
    %c0_i32_0 = arith.constant 0 : i32
    %c0_i32_1 = arith.constant 0 : i32
    return %c0_i32, %c0_i32_0 : i32, i32
  }
  func.func @transform_2(%arg0: i32) -> (i32, i32, i32) {
    %c0_i32 = arith.constant 0 : i32
    %c0_i32_0 = arith.constant 0 : i32
    %c0_i32_1 = arith.constant 0 : i32
    %c0_i32_2 = arith.constant 0 : i32
    return %c0_i32, %c0_i32_0, %c0_i32_1 : i32, i32, i32
  }
  func.func @transform_3(%arg0: i32) -> (i32, i32, i32) {
    %c0_i32 = arith.constant 0 : i32
    %c0_i32_0 = arith.constant 0 : i32
    %c0_i32_1 = arith.constant 0 : i32
    %c0_i32_2 = arith.constant 0 : i32
    return %c0_i32, %c0_i32_0, %c0_i32_1 : i32, i32, i32
  }
  func.func @transform_4(%arg0: i32) -> (i32, i32) {
    %c0_i32 = arith.constant 0 : i32
    %c0_i32_0 = arith.constant 0 : i32
    %c0_i32_1 = arith.constant 0 : i32
    return %c0_i32, %c0_i32_0 : i32, i32
  }
  func.func @transform_5(%arg0: i32) -> (i32, i32) {
    %c0_i32 = arith.constant 0 : i32
    %c0_i32_0 = arith.constant 0 : i32
    %c0_i32_1 = arith.constant 0 : i32
    return %c0_i32, %c0_i32_0 : i32, i32
  }
}

</mosaic_0001>

<llo_original>
// kernel: tpu_custom_call.1
$region0: #{tpu_custom_call.1}
  #allocation0 [shape = 'u32[]', space=smem, size = 0x4, offset = 0x4, fixed_abs, tag = 'smem constant byte address 0x4 - core index']
  #allocation1 [shape = 'u32[144,128]{1,0:T(1,128)}', space=vmem, size = 0x12000, scoped, tag = 'internal scratch']
  #allocation2 [shape = 'bf16[8,1024]{1,0:T(8,128)(2,1)}', space=vmem, size = 0x4000, scoped, tag = 'scratch operand']
  %s0 = inlined_call_operand.hbm [shape: f32[1,768], index: 0, kind: input, shape index: {}]
  %s1 = inlined_call_operand.hbm [shape: bf16[8,1024], index: 1, kind: input, shape index: {}]
  %s2 = inlined_call_operand.hbm [shape: bf16[9,8,8], index: 2, kind: input, shape index: {}]
  %s3 = inlined_call_operand.hbm [shape: bf16[9,8,8], index: 3, kind: input, shape index: {}]
  %s4 = inlined_call_operand.hbm [shape: f32[8,8], index: 4, kind: input, shape index: {}]
  %s5 = inlined_call_operand.hbm [shape: f32[8,768], index: 5, kind: output, shape index: {}]
  %s6 = sld [smem:[#allocation0]]
  $region50: #{tpu_custom_call.1} parent=0
    _
  %s8 = ssub.s32 1, %s6
  %s9 = scalar_select 0, %s8, %s6
  $region1: #{tpu_custom_call.1} parent=0
    #allocation3 [shape = 'u8[3072]{0}', space=vmem, size = 0xc00, scoped, tag = 'input window, operand 0, single buffered']
    #allocation4 [shape = 's32[1]{0}', space=sflag, size = 0x4, scoped, tag = 'scoped memory for tpu_custom_call.1']
    #allocation5 [shape = 's32[1]{0}', space=sflag, size = 0x4, scoped, tag = 'scoped memory for tpu_custom_call.1']
    #allocation6 [shape = 'u8[16384]{0}', space=vmem, size = 0x4000, scoped, tag = 'input window, operand 1, single buffered']
    #allocation7 [shape = 's32[1]{0}', space=sflag, size = 0x4, scoped, tag = 'scoped memory for tpu_custom_call.1']
    #allocation8 [shape = 'u8[18432]{0}', space=vmem, size = 0x4800, scoped, tag = 'input window, operand 2, single buffered']
    #allocation9 [shape = 'u8[18432]{0}', space=vmem, size = 0x4800, scoped, tag = 'input window, operand 3, single buffered']
    #allocation10 [shape = 's32[1]{0}', space=sflag, size = 0x4, scoped, tag = 'scoped memory for tpu_custom_call.1']
    #allocation11 [shape = 'u8[4096]{0}', space=vmem, size = 0x1000, scoped, tag = 'input window, operand 4, single buffered']
    #allocation12 [shape = 'u8[24576]{0}', space=vmem, size = 0x6000, scoped, tag = 'output window, operand 0, single buffered']
    %10 = vsyncpa [#allocation4], 0
    %11 = vsyncpa [#allocation7], 0
    %12 = vsyncpa [#allocation10], 0
    %13 = vsyncpa [#allocation5], 0
    // Predicated region
    $region2: #{tpu_custom_call.1} parent=1 // pred_check
      _
    $region3: #{tpu_custom_call.1} parent=1 // pred_check_branch
      %15 = sbr.rel (0) target = $region5
    $region4: #{tpu_custom_call.1} parent=1 // pred_region
      %s17 = ssub.s32 96, 96
      %18 = vsyncadd [#allocation4], %s17
      %s20 = sshll.u32 [#allocation3], 4
      %s21 = int_to_ptr.vmem [resolvable:$true] %s20
      %23 = dma.hbm_to_vmem [thread:$0]  %s0, 96, %s21, [#allocation4]
    $region5: #{tpu_custom_call.1} parent=1 // pred_fallthru
      _
    // Predicated region
    $region6: #{tpu_custom_call.1} parent=1 // pred_check
      _
    $region7: #{tpu_custom_call.1} parent=1 // pred_check_branch
      %25 = sbr.rel (0) target = $region9
    $region8: #{tpu_custom_call.1} parent=1 // pred_region
      %s27 = ssub.s32 512, 512
      %28 = vsyncadd [#allocation7], %s27
      %s30 = sshll.u32 [#allocation6], 4
      %s31 = int_to_ptr.vmem [resolvable:$true] %s30
      %33 = dma.hbm_to_vmem [thread:$0]  %s1, 512, %s31, [#allocation7]
    $region9: #{tpu_custom_call.1} parent=1 // pred_fallthru
      _
    // Predicated region
    $region10: #{tpu_custom_call.1} parent=1 // pred_check
      _
    $region11: #{tpu_custom_call.1} parent=1 // pred_check_branch
      %35 = sbr.rel (0) target = $region13
    $region12: #{tpu_custom_call.1} parent=1 // pred_region
      %s37 = ssub.s32 576, 576
      %38 = vsyncadd [#allocation7], %s37
      %s39 = sshll.u32 [#allocation8], 4
      %s40 = int_to_ptr.vmem [resolvable:$true] %s39
      %45 = dma.hbm_to_vmem [thread:$0]  %s2, 576, %s40, [#allocation7], 64, 64, 4
    $region13: #{tpu_custom_call.1} parent=1 // pred_fallthru
      _
    // Predicated region
    $region14: #{tpu_custom_call.1} parent=1 // pred_check
      _
    $region15: #{tpu_custom_call.1} parent=1 // pred_check_branch
      %47 = sbr.rel (0) target = $region17
    $region16: #{tpu_custom_call.1} parent=1 // pred_region
      %s49 = ssub.s32 576, 576
      %50 = vsyncadd [#allocation10], %s49
      %s51 = sshll.u32 [#allocation9], 4
      %s52 = int_to_ptr.vmem [resolvable:$true] %s51
      %57 = dma.hbm_to_vmem [thread:$0]  %s3, 576, %s52, [#allocation10], 64, 64, 4
    $region17: #{tpu_custom_call.1} parent=1 // pred_fallthru
      _
    // Predicated region
    $region18: #{tpu_custom_call.1} parent=1 // pred_check
      _
    $region19: #{tpu_custom_call.1} parent=1 // pred_check_branch
      %59 = sbr.rel (0) target = $region21
    $region20: #{tpu_custom_call.1} parent=1 // pred_region
      %s61 = ssub.s32 128, 128
      %62 = vsyncadd [#allocation10], %s61
      %s64 = sshll.u32 [#allocation11], 4
      %s65 = int_to_ptr.vmem [resolvable:$true] %s64
      %67 = dma.hbm_to_vmem [thread:$0]  %s4, 128, %s65, [#allocation10]
    $region21: #{tpu_custom_call.1} parent=1 // pred_fallthru
      _
    // Predicated region
    $region22: #{tpu_custom_call.1} parent=1 // pred_check
      _
    $region23: #{tpu_custom_call.1} parent=1 // pred_check_branch
      %69 = sbr.rel (0) target = $region25
    $region24: #{tpu_custom_call.1} parent=1 // pred_region
      %70 = dma.done [#allocation4], 96
    $region25: #{tpu_custom_call.1} parent=1 // pred_fallthru
      _
    // Predicated region
    $region26: #{tpu_custom_call.1} parent=1 // pred_check
      _
    $region27: #{tpu_custom_call.1} parent=1 // pred_check_branch
      %72 = sbr.rel (0) target = $region29
    $region28: #{tpu_custom_call.1} parent=1 // pred_region
      %73 = dma.done [#allocation7], 512
    $region29: #{tpu_custom_call.1} parent=1 // pred_fallthru
      _
    // Predicated region
    $region30: #{tpu_custom_call.1} parent=1 // pred_check
      _
    $region31: #{tpu_custom_call.1} parent=1 // pred_check_branch
      %75 = sbr.rel (0) target = $region33
    $region32: #{tpu_custom_call.1} parent=1 // pred_region
      %76 = dma.done [#allocation7], 576
    $region33: #{tpu_custom_call.1} parent=1 // pred_fallthru
      _
    // Predicated region
    $region34: #{tpu_custom_call.1} parent=1 // pred_check
      _
    $region35: #{tpu_custom_call.1} parent=1 // pred_check_branch
      %78 = sbr.rel (0) target = $region37
    $region36: #{tpu_custom_call.1} parent=1 // pred_region
      %79 = dma.done [#allocation10], 576
    $region37: #{tpu_custom_call.1} parent=1 // pred_fallthru
      _
    // Predicated region
    $region38: #{tpu_custom_call.1} parent=1 // pred_check
      _
    $region39: #{tpu_custom_call.1} parent=1 // pred_check_branch
      %81 = sbr.rel (0) target = $region41
    $region40: #{tpu_custom_call.1} parent=1 // pred_region
      %82 = dma.done [#allocation10], 128
    $region41: #{tpu_custom_call.1} parent=1 // pred_fallthru
      _
    %v84 = vld [vmem:[#allocation3] sm:$0x3f]
    %v85 = vld [vmem:[#allocation11] sm:$0xff]
    %v86 = vld [vmem:[#allocation8] sm:$0xf]
    %v87 = vld [vmem:[#allocation6] sm:$0xff]
    %v88 = vld [vmem:[#allocation6 + $0x8] sm:$0xff]
    %v89 = vld [vmem:[#allocation6 + $0x10] sm:$0xff]
    %v90 = vld [vmem:[#allocation6 + $0x18] sm:$0xf]
    %s91 = scalar_lea.vmem [#allocation8], 4
    %v92 = vld [vmem:[%s91] sm:$0xf]
    %v97 = vunpack.c.l.b16 %v87
    %v98 = vunpack.c.h.b16 %v87
    %v99 = vunpack.c.l.b16 %v88
    %v100 = vunpack.c.h.b16 %v88
    %v101 = vunpack.c.l.b16 %v89
    %v102 = vunpack.c.h.b16 %v89
    %v103 = vunpack.c.l.b16 %v90
    %v104 = vpack.c.b16 %v97, %v97
    %v105 = vpack.c.b16 %v98, %v98
    %v106 = vpack.c.b16 %v99, %v99
    %v107 = vpack.c.b16 %v100, %v100
    %v108 = vpack.c.b16 %v101, %v101
    %v109 = vpack.c.b16 %v102, %v102
    %v110 = vpack.c.b16 %v103, %v103
    %111 = vrot.lane.b32.xlu0 %v104, 18
    %v112 = vpop.permute.xlu0 %111
    %113 = vrot.lane.b32.xlu0 %v105, 18
    %v114 = vpop.permute.xlu0 %113
    %115 = vrot.lane.b32.xlu0 %v106, 18
    %v116 = vpop.permute.xlu0 %115
    %117 = vrot.lane.b32.xlu0 %v107, 18
    %v118 = vpop.permute.xlu0 %117
    %119 = vrot.lane.b32.xlu0 %v108, 18
    %v120 = vpop.permute.xlu0 %119
    %121 = vrot.lane.b32.xlu0 %v109, 18
    %v122 = vpop.permute.xlu0 %121
    %123 = vrot.lane.b32.xlu0 %v110, 18
    %v124 = vpop.permute.xlu0 %123
    %vm125 = vcmask 146432
    %v126 = vsel %vm125, %v112, %v114
    %v127 = vsel %vm125, %v114, %v116
    %v128 = vsel %vm125, %v116, %v118
    %v129 = vsel %vm125, %v118, %v120
    %v130 = vsel %vm125, %v120, %v122
    %v131 = vsel %vm125, %v122, %v124
    %vm132 = vcmask 64512
    %v134 = vsel %vm132, %v92, 0
    %vm136 = vcmask 1043456
    %v138 = vsel %vm136, %v126, 0
    %v141 = vsel %vm136, %v127, 0
    %v144 = vsel %vm136, %v128, 0
    %v147 = vsel %vm136, %v129, 0
    %v150 = vsel %vm136, %v130, 0
    %v153 = vsel %vm136, %v131, 0
    %155 = vmatprep.subr.bf16.mxu0 %v141
    %156 = vmatpush1.bf16.msra.mxu0 %v138
    %157 = vmatprep.subr.bf16.mxu0 0
    %158 = vmatpush1.bf16.msra.mxu0 0
    %159 = vmatprep.subr.bf16.mxu0 0
    %160 = vmatpush1.bf16.msra.mxu0 0
    %161 = vmatprep.subr.bf16.mxu0 0
    %162 = vmatpush1.bf16.msra.mxu0 0
    %163 = vmatprep.subr.bf16.mxu0 0
    %164 = vmatpush1.bf16.msra.mxu0 0
    %165 = vmatprep.subr.bf16.mxu0 0
    %166 = vmatpush1.bf16.msra.mxu0 0
    %167 = vmatprep.subr.bf16.mxu0 0
    %168 = vmatpush1.bf16.msra.mxu0 0
    %169 = vmatprep.subr.bf16.mxu0 0
    %170 = vmatpush1.bf16.msra.mxu0 0
    %171 = vmatprep.subr.bf16.mxu0 0
    %172 = vmatpush1.bf16.msra.mxu0 0
    %173 = vmatprep.subr.bf16.mxu0 0
    %174 = vmatpush1.bf16.msra.mxu0 0
    %175 = vmatprep.subr.bf16.mxu0 0
    %176 = vmatpush1.bf16.msra.mxu0 0
    %177 = vmatprep.subr.bf16.mxu0 0
    %178 = vmatpush1.bf16.msra.mxu0 0
    %179 = vmatprep.subr.bf16.mxu0 0
    %180 = vmatpush1.bf16.msra.mxu0 0
    %181 = vmatprep.subr.bf16.mxu0 0
    %182 = vmatpush1.bf16.msra.mxu0 0
    %183 = vmatprep.subr.bf16.mxu0 0
    %184 = vmatpush1.bf16.msra.mxu0 0
    %185 = vmatprep.subr.bf16.mxu0 0
    %186 = vmatpush1.bf16.msra.mxu0 0
    %187 = vmatprep.mubr.bf16.mxu0 0
    %188 = vmatmul.mubr.bf16.gmra.mrb[0].mxu0 %v134
    %v189 = vpop.f32.mrb[0].mxu0
    %v190 = vadd.f32 0.0, %v189
    %v191 = vpop.f32.mrb[0].mxu0
    %v192 = vadd.f32 0.0, %v191
    %v193 = vpop.f32.mrb[0].mxu0
    %v194 = vpop.f32.mrb[0].mxu0
    %195 = vdwg.mxu0
    %196 = vmatprep.subr.bf16.mxu0 %v147
    %197 = vmatpush1.bf16.msra.mxu0 %v144
    %198 = vmatprep.subr.bf16.mxu0 0
    %199 = vmatpush1.bf16.msra.mxu0 0
    %200 = vmatprep.subr.bf16.mxu0 0
    %201 = vmatpush1.bf16.msra.mxu0 0
    %202 = vmatprep.subr.bf16.mxu0 0
    %203 = vmatpush1.bf16.msra.mxu0 0
    %204 = vmatprep.subr.bf16.mxu0 0
    %205 = vmatpush1.bf16.msra.mxu0 0
    %206 = vmatprep.subr.bf16.mxu0 0
    %207 = vmatpush1.bf16.msra.mxu0 0
    %208 = vmatprep.subr.bf16.mxu0 0
    %209 = vmatpush1.bf16.msra.mxu0 0
    %210 = vmatprep.subr.bf16.mxu0 0
    %211 = vmatpush1.bf16.msra.mxu0 0
    %212 = vmatprep.subr.bf16.mxu0 0
    %213 = vmatpush1.bf16.msra.mxu0 0
    %214 = vmatprep.subr.bf16.mxu0 0
    %215 = vmatpush1.bf16.msra.mxu0 0
    %216 = vmatprep.subr.bf16.mxu0 0
    %217 = vmatpush1.bf16.msra.mxu0 0
    %218 = vmatprep.subr.bf16.mxu0 0
    %219 = vmatpush1.bf16.msra.mxu0 0
    %220 = vmatprep.subr.bf16.mxu0 0
    %221 = vmatpush1.bf16.msra.mxu0 0
    %222 = vmatprep.subr.bf16.mxu0 0
    %223 = vmatpush1.bf16.msra.mxu0 0
    %224 = vmatprep.subr.bf16.mxu0 0
    %225 = vmatpush1.bf16.msra.mxu0 0
    %226 = vmatprep.subr.bf16.mxu0 0
    %227 = vmatpush1.bf16.msra.mxu0 0
    %228 = vmatprep.mubr.bf16.mxu0 0
    %229 = vmatmul.mubr.bf16.gmra.mrb[0].mxu0 %v134
    %v230 = vpop.f32.mrb[0].mxu0
    %v231 = vadd.f32 0.0, %v230
    %v232 = vpop.f32.mrb[0].mxu0
    %v233 = vadd.f32 0.0, %v232
    %v234 = vpop.f32.mrb[0].mxu0
    %v235 = vpop.f32.mrb[0].mxu0
    %236 = vdwg.mxu0
    %237 = vmatprep.subr.bf16.mxu0 %v153
    %238 = vmatpush1.bf16.msra.mxu0 %v150
    %239 = vmatprep.subr.bf16.mxu0 0
    %240 = vmatpush1.bf16.msra.mxu0 0
    %241 = vmatprep.subr.bf16.mxu0 0
    %242 = vmatpush1.bf16.msra.mxu0 0
    %243 = vmatprep.subr.bf16.mxu0 0
    %244 = vmatpush1.bf16.msra.mxu0 0
    %245 = vmatprep.subr.bf16.mxu0 0
    %246 = vmatpush1.bf16.msra.mxu0 0
    %247 = vmatprep.subr.bf16.mxu0 0
    %248 = vmatpush1.bf16.msra.mxu0 0
    %249 = vmatprep.subr.bf16.mxu0 0
    %250 = vmatpush1.bf16.msra.mxu0 0
    %251 = vmatprep.subr.bf16.mxu0 0
    %252 = vmatpush1.bf16.msra.mxu0 0
    %253 = vmatprep.subr.bf16.mxu0 0
    %254 = vmatpush1.bf16.msra.mxu0 0
    %255 = vmatprep.subr.bf16.mxu0 0
    %256 = vmatpush1.bf16.msra.mxu0 0
    %257 = vmatprep.subr.bf16.mxu0 0
    %258 = vmatpush1.bf16.msra.mxu0 0
    %259 = vmatprep.subr.bf16.mxu0 0
    %260 = vmatpush1.bf16.msra.mxu0 0
    %261 = vmatprep.subr.bf16.mxu0 0
    %262 = vmatpush1.bf16.msra.mxu0 0
    %263 = vmatprep.subr.bf16.mxu0 0
    %264 = vmatpush1.bf16.msra.mxu0 0
    %265 = vmatprep.subr.bf16.mxu0 0
    %266 = vmatpush1.bf16.msra.mxu0 0
    %267 = vmatprep.subr.bf16.mxu0 0
    %268 = vmatpush1.bf16.msra.mxu0 0
    %269 = vmatprep.mubr.bf16.mxu0 0
    %270 = vmatmul.mubr.bf16.gmra.mrb[0].mxu0 %v134
    %v271 = vpop.f32.mrb[0].mxu0
    %v272 = vadd.f32 0.0, %v271
    %v273 = vpop.f32.mrb[0].mxu0
    %v274 = vadd.f32 0.0, %v273
    %v275 = vpop.f32.mrb[0].mxu0
    %v276 = vpop.f32.mrb[0].mxu0
    %277 = vdwg.mxu0
    %278 = vrot.lane.b32.xlu0 %v104, 19
    %v279 = vpop.permute.xlu0 %278
    %280 = vrot.lane.b32.xlu0 %v105, 19
    %v281 = vpop.permute.xlu0 %280
    %282 = vrot.lane.b32.xlu0 %v106, 19
    %v283 = vpop.permute.xlu0 %282
    %284 = vrot.lane.b32.xlu0 %v107, 19
    %v285 = vpop.permute.xlu0 %284
    %286 = vrot.lane.b32.xlu0 %v108, 19
    %v287 = vpop.permute.xlu0 %286
    %288 = vrot.lane.b32.xlu0 %v109, 19
    %v289 = vpop.permute.xlu0 %288
    %290 = vrot.lane.b32.xlu0 %v110, 19
    %v291 = vpop.permute.xlu0 %290
    %vm292 = vcmask 154624
    %v293 = vsel %vm292, %v279, %v281
    %v294 = vsel %vm292, %v281, %v283
    %v295 = vsel %vm292, %v283, %v285
    %v296 = vsel %vm292, %v285, %v287
    %v297 = vsel %vm292, %v287, %v289
    %v298 = vsel %vm292, %v289, %v291
    %v300 = vsel %vm132, %v86, 0
    %v303 = vsel %vm136, %v293, 0
    %v306 = vsel %vm136, %v294, 0
    %v309 = vsel %vm136, %v295, 0
    %v312 = vsel %vm136, %v296, 0
    %v315 = vsel %vm136, %v297, 0
    %v318 = vsel %vm136, %v298, 0
    %320 = vmatprep.subr.bf16.mxu0 %v306
    %321 = vmatpush1.bf16.msra.mxu0 %v303
    %322 = vmatprep.subr.bf16.mxu0 0
    %323 = vmatpush1.bf16.msra.mxu0 0
    %324 = vmatprep.subr.bf16.mxu0 0
    %325 = vmatpush1.bf16.msra.mxu0 0
    %326 = vmatprep.subr.bf16.mxu0 0
    %327 = vmatpush1.bf16.msra.mxu0 0
    %328 = vmatprep.subr.bf16.mxu0 0
    %329 = vmatpush1.bf16.msra.mxu0 0
    %330 = vmatprep.subr.bf16.mxu0 0
    %331 = vmatpush1.bf16.msra.mxu0 0
    %332 = vmatprep.subr.bf16.mxu0 0
    %333 = vmatpush1.bf16.msra.mxu0 0
    %334 = vmatprep.subr.bf16.mxu0 0
    %335 = vmatpush1.bf16.msra.mxu0 0
    %336 = vmatprep.subr.bf16.mxu0 0
    %337 = vmatpush1.bf16.msra.mxu0 0
    %338 = vmatprep.subr.bf16.mxu0 0
    %339 = vmatpush1.bf16.msra.mxu0 0
    %340 = vmatprep.subr.bf16.mxu0 0
    %341 = vmatpush1.bf16.msra.mxu0 0
    %342 = vmatprep.subr.bf16.mxu0 0
    %343 = vmatpush1.bf16.msra.mxu0 0
    %344 = vmatprep.subr.bf16.mxu0 0
    %345 = vmatpush1.bf16.msra.mxu0 0
    %346 = vmatprep.subr.bf16.mxu0 0
    %347 = vmatpush1.bf16.msra.mxu0 0
    %348 = vmatprep.subr.bf16.mxu0 0
    %349 = vmatpush1.bf16.msra.mxu0 0
    %350 = vmatprep.subr.bf16.mxu0 0
    %351 = vmatpush1.bf16.msra.mxu0 0
    %352 = vmatprep.mubr.bf16.mxu0 0
    %353 = vmatmul.mubr.bf16.gmra.mrb[0].mxu0 %v300
    %v354 = vpop.f32.mrb[0].mxu0
    %v355 = vadd.f32 %v190, %v354
    %v356 = vpop.f32.mrb[0].mxu0
    %v357 = vadd.f32 %v192, %v356
    %v358 = vpop.f32.mrb[0].mxu0
    %v359 = vpop.f32.mrb[0].mxu0
    %360 = vdwg.mxu0
    %361 = vmatprep.subr.bf16.mxu0 %v312
    %362 = vmatpush1.bf16.msra.mxu0 %v309
    %363 = vmatprep.subr.bf16.mxu0 0
    %364 = vmatpush1.bf16.msra.mxu0 0
    %365 = vmatprep.subr.bf16.mxu0 0
    %366 = vmatpush1.bf16.msra.mxu0 0
    %367 = vmatprep.subr.bf16.mxu0 0
    %368 = vmatpush1.bf16.msra.mxu0 0
    %369 = vmatprep.subr.bf16.mxu0 0
    %370 = vmatpush1.bf16.msra.mxu0 0
    %371 = vmatprep.subr.bf16.mxu0 0
    %372 = vmatpush1.bf16.msra.mxu0 0
    %373 = vmatprep.subr.bf16.mxu0 0
    %374 = vmatpush1.bf16.msra.mxu0 0
    %375 = vmatprep.subr.bf16.mxu0 0
    %376 = vmatpush1.bf16.msra.mxu0 0
    %377 = vmatprep.subr.bf16.mxu0 0
    %378 = vmatpush1.bf16.msra.mxu0 0
    %379 = vmatprep.subr.bf16.mxu0 0
    %380 = vmatpush1.bf16.msra.mxu0 0
    %381 = vmatprep.subr.bf16.mxu0 0
    %382 = vmatpush1.bf16.msra.mxu0 0
    %383 = vmatprep.subr.bf16.mxu0 0
    %384 = vmatpush1.bf16.msra.mxu0 0
    %385 = vmatprep.subr.bf16.mxu0 0
    %386 = vmatpush1.bf16.msra.mxu0 0
    %387 = vmatprep.subr.bf16.mxu0 0
    %388 = vmatpush1.bf16.msra.mxu0 0
    %389 = vmatprep.subr.bf16.mxu0 0
    %390 = vmatpush1.bf16.msra.mxu0 0
    %391 = vmatprep.subr.bf16.mxu0 0
    %392 = vmatpush1.bf16.msra.mxu0 0
    %393 = vmatprep.mubr.bf16.mxu0 0
    %394 = vmatmul.mubr.bf16.gmra.mrb[0].mxu0 %v300
    %v395 = vpop.f32.mrb[0].mxu0
    %v396 = vadd.f32 %v231, %v395
    %v397 = vpop.f32.mrb[0].mxu0
    %v398 = vadd.f32 %v233, %v397
    %v399 = vpop.f32.mrb[0].mxu0
    %v400 = vpop.f32.mrb[0].mxu0
    %401 = vdwg.mxu0
    %402 = vmatprep.subr.bf16.mxu0 %v318
    %403 = vmatpush1.bf16.msra.mxu0 %v315
    %404 = vmatprep.subr.bf16.mxu0 0
    %405 = vmatpush1.bf16.msra.mxu0 0
    %406 = vmatprep.subr.bf16.mxu0 0
    %407 = vmatpush1.bf16.msra.mxu0 0
    %408 = vmatprep.subr.bf16.mxu0 0
    %409 = vmatpush1.bf16.msra.mxu0 0
    %410 = vmatprep.subr.bf16.mxu0 0
    %411 = vmatpush1.bf16.msra.mxu0 0
    %412 = vmatprep.subr.bf16.mxu0 0
    %413 = vmatpush1.bf16.msra.mxu0 0
    %414 = vmatprep.subr.bf16.mxu0 0
    %415 = vmatpush1.bf16.msra.mxu0 0
    %416 = vmatprep.subr.bf16.mxu0 0
    %417 = vmatpush1.bf16.msra.mxu0 0
    %418 = vmatprep.subr.bf16.mxu0 0
    %419 = vmatpush1.bf16.msra.mxu0 0
    %420 = vmatprep.subr.bf16.mxu0 0
    %421 = vmatpush1.bf16.msra.mxu0 0
    %422 = vmatprep.subr.bf16.mxu0 0
    %423 = vmatpush1.bf16.msra.mxu0 0
    %424 = vmatprep.subr.bf16.mxu0 0
    %425 = vmatpush1.bf16.msra.mxu0 0
    %426 = vmatprep.subr.bf16.mxu0 0
    %427 = vmatpush1.bf16.msra.mxu0 0
    %428 = vmatprep.subr.bf16.mxu0 0
    %429 = vmatpush1.bf16.msra.mxu0 0
    %430 = vmatprep.subr.bf16.mxu0 0
    %431 = vmatpush1.bf16.msra.mxu0 0
    %432 = vmatprep.subr.bf16.mxu0 0
    %433 = vmatpush1.bf16.msra.mxu0 0
    %434 = vmatprep.mubr.bf16.mxu0 0
    %435 = vmatmul.mubr.bf16.gmra.mrb[0].mxu0 %v300
    %v436 = vpop.f32.mrb[0].mxu0
    %v437 = vadd.f32 %v272, %v436
    %v438 = vpop.f32.mrb[0].mxu0
    %v439 = vadd.f32 %v274, %v438
    %v440 = vpop.f32.mrb[0].mxu0
    %v441 = vpop.f32.mrb[0].mxu0
    %442 = vdwg.mxu0
    %s443 = scalar_lea.vmem [#allocation8], 8
    %v444 = vld [vmem:[%s443] sm:$0xf]
    %445 = vrot.lane.b32.xlu0 %v104, 17
    %v446 = vpop.permute.xlu0 %445
    %447 = vrot.lane.b32.xlu0 %v105, 17
    %v448 = vpop.permute.xlu0 %447
    %449 = vrot.lane.b32.xlu0 %v106, 17
    %v450 = vpop.permute.xlu0 %449
    %451 = vrot.lane.b32.xlu0 %v107, 17
    %v452 = vpop.permute.xlu0 %451
    %453 = vrot.lane.b32.xlu0 %v108, 17
    %v454 = vpop.permute.xlu0 %453
    %455 = vrot.lane.b32.xlu0 %v109, 17
    %v456 = vpop.permute.xlu0 %455
    %457 = vrot.lane.b32.xlu0 %v110, 17
    %v458 = vpop.permute.xlu0 %457
    %vm459 = vcmask 138240
    %v460 = vsel %vm459, %v446, %v448
    %v461 = vsel %vm459, %v448, %v450
    %v462 = vsel %vm459, %v450, %v452
    %v463 = vsel %vm459, %v452, %v454
    %v464 = vsel %vm459, %v454, %v456
    %v465 = vsel %vm459, %v456, %v458
    %v467 = vsel %vm132, %v444, 0
    %v470 = vsel %vm136, %v460, 0
    %v473 = vsel %vm136, %v461, 0
    %v476 = vsel %vm136, %v462, 0
    %v479 = vsel %vm136, %v463, 0
    %v482 = vsel %vm136, %v464, 0
    %v485 = vsel %vm136, %v465, 0
    %487 = vmatprep.subr.bf16.mxu0 %v473
    %488 = vmatpush1.bf16.msra.mxu0 %v470
    %489 = vmatprep.subr.bf16.mxu0 0
    %490 = vmatpush1.bf16.msra.mxu0 0
    %491 = vmatprep.subr.bf16.mxu0 0
    %492 = vmatpush1.bf16.msra.mxu0 0
    %493 = vmatprep.subr.bf16.mxu0 0
    %494 = vmatpush1.bf16.msra.mxu0 0
    %495 = vmatprep.subr.bf16.mxu0 0
    %496 = vmatpush1.bf16.msra.mxu0 0
    %497 = vmatprep.subr.bf16.mxu0 0
    %498 = vmatpush1.bf16.msra.mxu0 0
    %499 = vmatprep.subr.bf16.mxu0 0
    %500 = vmatpush1.bf16.msra.mxu0 0
    %501 = vmatprep.subr.bf16.mxu0 0
    %502 = vmatpush1.bf16.msra.mxu0 0
    %503 = vmatprep.subr.bf16.mxu0 0
    %504 = vmatpush1.bf16.msra.mxu0 0
    %505 = vmatprep.subr.bf16.mxu0 0
    %506 = vmatpush1.bf16.msra.mxu0 0
    %507 = vmatprep.subr.bf16.mxu0 0
    %508 = vmatpush1.bf16.msra.mxu0 0
    %509 = vmatprep.subr.bf16.mxu0 0
    %510 = vmatpush1.bf16.msra.mxu0 0
    %511 = vmatprep.subr.bf16.mxu0 0
    %512 = vmatpush1.bf16.msra.mxu0 0
    %513 = vmatprep.subr.bf16.mxu0 0
    %514 = vmatpush1.bf16.msra.mxu0 0
    %515 = vmatprep.subr.bf16.mxu0 0
    %516 = vmatpush1.bf16.msra.mxu0 0
    %517 = vmatprep.subr.bf16.mxu0 0
    %518 = vmatpush1.bf16.msra.mxu0 0
    %519 = vmatprep.mubr.bf16.mxu0 0
    %520 = vmatmul.mubr.bf16.gmra.mrb[0].mxu0 %v467
    %v521 = vpop.f32.mrb[0].mxu0
    %v522 = vadd.f32 0.0, %v521
    %v523 = vpop.f32.mrb[0].mxu0
    %v524 = vadd.f32 0.0, %v523
    %v525 = vpop.f32.mrb[0].mxu0
    %v526 = vpop.f32.mrb[0].mxu0
    %527 = vdwg.mxu0
    %528 = vmatprep.subr.bf16.mxu0 %v479
    %529 = vmatpush1.bf16.msra.mxu0 %v476
    %530 = vmatprep.subr.bf16.mxu0 0
    %531 = vmatpush1.bf16.msra.mxu0 0
    %532 = vmatprep.subr.bf16.mxu0 0
    %533 = vmatpush1.bf16.msra.mxu0 0
    %534 = vmatprep.subr.bf16.mxu0 0
    %535 = vmatpush1.bf16.msra.mxu0 0
    %536 = vmatprep.subr.bf16.mxu0 0
    %537 = vmatpush1.bf16.msra.mxu0 0
    %538 = vmatprep.subr.bf16.mxu0 0
    %539 = vmatpush1.bf16.msra.mxu0 0
    %540 = vmatprep.subr.bf16.mxu0 0
    %541 = vmatpush1.bf16.msra.mxu0 0
    %542 = vmatprep.subr.bf16.mxu0 0
    %543 = vmatpush1.bf16.msra.mxu0 0
    %544 = vmatprep.subr.bf16.mxu0 0
    %545 = vmatpush1.bf16.msra.mxu0 0
    %546 = vmatprep.subr.bf16.mxu0 0
    %547 = vmatpush1.bf16.msra.mxu0 0
    %548 = vmatprep.subr.bf16.mxu0 0
    %549 = vmatpush1.bf16.msra.mxu0 0
    %550 = vmatprep.subr.bf16.mxu0 0
    %551 = vmatpush1.bf16.msra.mxu0 0
    %552 = vmatprep.subr.bf16.mxu0 0
    %553 = vmatpush1.bf16.msra.mxu0 0
    %554 = vmatprep.subr.bf16.mxu0 0
    %555 = vmatpush1.bf16.msra.mxu0 0
    %556 = vmatprep.subr.bf16.mxu0 0
    %557 = vmatpush1.bf16.msra.mxu0 0
    %558 = vmatprep.subr.bf16.mxu0 0
    %559 = vmatpush1.bf16.msra.mxu0 0
    %560 = vmatprep.mubr.bf16.mxu0 0
    %561 = vmatmul.mubr.bf16.gmra.mrb[0].mxu0 %v467
    %v562 = vpop.f32.mrb[0].mxu0
    %v563 = vadd.f32 0.0, %v562
    %v564 = vpop.f32.mrb[0].mxu0
    %v565 = vadd.f32 0.0, %v564
    %v566 = vpop.f32.mrb[0].mxu0
    %v567 = vpop.f32.mrb[0].mxu0
    %568 = vdwg.mxu0
    %569 = vmatprep.subr.bf16.mxu0 %v485
    %570 = vmatpush1.bf16.msra.mxu0 %v482
    %571 = vmatprep.subr.bf16.mxu0 0
    %572 = vmatpush1.bf16.msra.mxu0 0
    %573 = vmatprep.subr.bf16.mxu0 0
    %574 = vmatpush1.bf16.msra.mxu0 0
    %575 = vmatprep.subr.bf16.mxu0 0
    %576 = vmatpush1.bf16.msra.mxu0 0
    %577 = vmatprep.subr.bf16.mxu0 0
    %578 = vmatpush1.bf16.msra.mxu0 0
    %579 = vmatprep.subr.bf16.mxu0 0
    %580 = vmatpush1.bf16.msra.mxu0 0
    %581 = vmatprep.subr.bf16.mxu0 0
    %582 = vmatpush1.bf16.msra.mxu0 0
    %583 = vmatprep.subr.bf16.mxu0 0
    %584 = vmatpush1.bf16.msra.mxu0 0
    %585 = vmatprep.subr.bf16.mxu0 0
    %586 = vmatpush1.bf16.msra.mxu0 0
    %587 = vmatprep.subr.bf16.mxu0 0
    %588 = vmatpush1.bf16.msra.mxu0 0
    %589 = vmatprep.subr.bf16.mxu0 0
    %590 = vmatpush1.bf16.msra.mxu0 0
    %591 = vmatprep.subr.bf16.mxu0 0
    %592 = vmatpush1.bf16.msra.mxu0 0
    %593 = vmatprep.subr.bf16.mxu0 0
    %594 = vmatpush1.bf16.msra.mxu0 0
    %595 = vmatprep.subr.bf16.mxu0 0
    %596 = vmatpush1.bf16.msra.mxu0 0
    %597 = vmatprep.subr.bf16.mxu0 0
    %598 = vmatpush1.bf16.msra.mxu0 0
    %599 = vmatprep.subr.bf16.mxu0 0
    %600 = vmatpush1.bf16.msra.mxu0 0
    %601 = vmatprep.mubr.bf16.mxu0 0
    %602 = vmatmul.mubr.bf16.gmra.mrb[0].mxu0 %v467
    %v603 = vpop.f32.mrb[0].mxu0
    %v604 = vadd.f32 0.0, %v603
    %v605 = vpop.f32.mrb[0].mxu0
    %v606 = vadd.f32 0.0, %v605
    %v607 = vpop.f32.mrb[0].mxu0
    %v608 = vpop.f32.mrb[0].mxu0
    %609 = vdwg.mxu0
    %v610 = vadd.f32 %v355, %v522
    %v611 = vadd.f32 %v357, %v524
    %v612 = vadd.f32 %v396, %v563
    %v613 = vadd.f32 %v398, %v565
    %v614 = vadd.f32 %v437, %v604
    %v615 = vadd.f32 %v439, %v606
    %s616 = scalar_lea.vmem [#allocation8], 12
    %v617 = vld [vmem:[%s616] sm:$0xf]
    %618 = vrot.lane.b32.xlu0 %v104, 1
    %v619 = vpop.permute.xlu0 %618
    %620 = vrot.lane.b32.xlu0 %v105, 1
    %v621 = vpop.permute.xlu0 %620
    %622 = vrot.lane.b32.xlu0 %v106, 1
    %v623 = vpop.permute.xlu0 %622
    %624 = vrot.lane.b32.xlu0 %v107, 1
    %v625 = vpop.permute.xlu0 %624
    %626 = vrot.lane.b32.xlu0 %v108, 1
    %v627 = vpop.permute.xlu0 %626
    %628 = vrot.lane.b32.xlu0 %v109, 1
    %v629 = vpop.permute.xlu0 %628
    %630 = vrot.lane.b32.xlu0 %v110, 1
    %v631 = vpop.permute.xlu0 %630
    %vm632 = vcmask 7168
    %v633 = vsel %vm632, %v619, %v621
    %v634 = vsel %vm632, %v621, %v623
    %v635 = vsel %vm632, %v623, %v625
    %v636 = vsel %vm632, %v625, %v627
    %v637 = vsel %vm632, %v627, %v629
    %v638 = vsel %vm632, %v629, %v631
    %v640 = vsel %vm132, %v617, 0
    %v643 = vsel %vm136, %v633, 0
    %v646 = vsel %vm136, %v634, 0
    %v649 = vsel %vm136, %v635, 0
    %v652 = vsel %vm136, %v636, 0
    %v655 = vsel %vm136, %v637, 0
    %v658 = vsel %vm136, %v638, 0
    %660 = vmatprep.subr.bf16.mxu0 %v646
    %661 = vmatpush1.bf16.msra.mxu0 %v643
    %662 = vmatprep.subr.bf16.mxu0 0
    %663 = vmatpush1.bf16.msra.mxu0 0
    %664 = vmatprep.subr.bf16.mxu0 0
    %665 = vmatpush1.bf16.msra.mxu0 0
    %666 = vmatprep.subr.bf16.mxu0 0
    %667 = vmatpush1.bf16.msra.mxu0 0
    %668 = vmatprep.subr.bf16.mxu0 0
    %669 = vmatpush1.bf16.msra.mxu0 0
    %670 = vmatprep.subr.bf16.mxu0 0
    %671 = vmatpush1.bf16.msra.mxu0 0
    %672 = vmatprep.subr.bf16.mxu0 0
    %673 = vmatpush1.bf16.msra.mxu0 0
    %674 = vmatprep.subr.bf16.mxu0 0
    %675 = vmatpush1.bf16.msra.mxu0 0
    %676 = vmatprep.subr.bf16.mxu0 0
    %677 = vmatpush1.bf16.msra.mxu0 0
    %678 = vmatprep.subr.bf16.mxu0 0
    %679 = vmatpush1.bf16.msra.mxu0 0
    %680 = vmatprep.subr.bf16.mxu0 0
    %681 = vmatpush1.bf16.msra.mxu0 0
    %682 = vmatprep.subr.bf16.mxu0 0
    %683 = vmatpush1.bf16.msra.mxu0 0
    %684 = vmatprep.subr.bf16.mxu0 0
    %685 = vmatpush1.bf16.msra.mxu0 0
    %686 = vmatprep.subr.bf16.mxu0 0
    %687 = vmatpush1.bf16.msra.mxu0 0
    %688 = vmatprep.subr.bf16.mxu0 0
    %689 = vmatpush1.bf16.msra.mxu0 0
    %690 = vmatprep.subr.bf16.mxu0 0
    %691 = vmatpush1.bf16.msra.mxu0 0
    %692 = vmatprep.mubr.bf16.mxu0 0
    %693 = vmatmul.mubr.bf16.gmra.mrb[0].mxu0 %v640
    %v694 = vpop.f32.mrb[0].mxu0
    %v695 = vadd.f32 0.0, %v694
    %v696 = vpop.f32.mrb[0].mxu0
    %v697 = vadd.f32 0.0, %v696
    %v698 = vpop.f32.mrb[0].mxu0
    %v699 = vpop.f32.mrb[0].mxu0
    %700 = vdwg.mxu0
    %701 = vmatprep.subr.bf16.mxu0 %v652
    %702 = vmatpush1.bf16.msra.mxu0 %v649
    %703 = vmatprep.subr.bf16.mxu0 0
    %704 = vmatpush1.bf16.msra.mxu0 0
    %705 = vmatprep.subr.bf16.mxu0 0
    %706 = vmatpush1.bf16.msra.mxu0 0
    %707 = vmatprep.subr.bf16.mxu0 0
    %708 = vmatpush1.bf16.msra.mxu0 0
    %709 = vmatprep.subr.bf16.mxu0 0
    %710 = vmatpush1.bf16.msra.mxu0 0
    %711 = vmatprep.subr.bf16.mxu0 0
    %712 = vmatpush1.bf16.msra.mxu0 0
    %713 = vmatprep.subr.bf16.mxu0 0
    %714 = vmatpush1.bf16.msra.mxu0 0
    %715 = vmatprep.subr.bf16.mxu0 0
    %716 = vmatpush1.bf16.msra.mxu0 0
    %717 = vmatprep.subr.bf16.mxu0 0
    %718 = vmatpush1.bf16.msra.mxu0 0
    %719 = vmatprep.subr.bf16.mxu0 0
    %720 = vmatpush1.bf16.msra.mxu0 0
    %721 = vmatprep.subr.bf16.mxu0 0
    %722 = vmatpush1.bf16.msra.mxu0 0
    %723 = vmatprep.subr.bf16.mxu0 0
    %724 = vmatpush1.bf16.msra.mxu0 0
    %725 = vmatprep.subr.bf16.mxu0 0
    %726 = vmatpush1.bf16.msra.mxu0 0
    %727 = vmatprep.subr.bf16.mxu0 0
    %728 = vmatpush1.bf16.msra.mxu0 0
    %729 = vmatprep.subr.bf16.mxu0 0
    %730 = vmatpush1.bf16.msra.mxu0 0
    %731 = vmatprep.subr.bf16.mxu0 0
    %732 = vmatpush1.bf16.msra.mxu0 0
    %733 = vmatprep.mubr.bf16.mxu0 0
    %734 = vmatmul.mubr.bf16.gmra.mrb[0].mxu0 %v640
    %v735 = vpop.f32.mrb[0].mxu0
    %v736 = vadd.f32 0.0, %v735
    %v737 = vpop.f32.mrb[0].mxu0
    %v738 = vadd.f32 0.0, %v737
    %v739 = vpop.f32.mrb[0].mxu0
    %v740 = vpop.f32.mrb[0].mxu0
    %741 = vdwg.mxu0
    %742 = vmatprep.subr.bf16.mxu0 %v658
    %743 = vmatpush1.bf16.msra.mxu0 %v655
    %744 = vmatprep.subr.bf16.mxu0 0
    %745 = vmatpush1.bf16.msra.mxu0 0
    %746 = vmatprep.subr.bf16.mxu0 0
    %747 = vmatpush1.bf16.msra.mxu0 0
    %748 = vmatprep.subr.bf16.mxu0 0
    %749 = vmatpush1.bf16.msra.mxu0 0
    %750 = vmatprep.subr.bf16.mxu0 0
    %751 = vmatpush1.bf16.msra.mxu0 0
    %752 = vmatprep.subr.bf16.mxu0 0
    %753 = vmatpush1.bf16.msra.mxu0 0
    %754 = vmatprep.subr.bf16.mxu0 0
    %755 = vmatpush1.bf16.msra.mxu0 0
    %756 = vmatprep.subr.bf16.mxu0 0
    %757 = vmatpush1.bf16.msra.mxu0 0
    %758 = vmatprep.subr.bf16.mxu0 0
    %759 = vmatpush1.bf16.msra.mxu0 0
    %760 = vmatprep.subr.bf16.mxu0 0
    %761 = vmatpush1.bf16.msra.mxu0 0
    %762 = vmatprep.subr.bf16.mxu0 0
    %763 = vmatpush1.bf16.msra.mxu0 0
    %764 = vmatprep.subr.bf16.mxu0 0
    %765 = vmatpush1.bf16.msra.mxu0 0
    %766 = vmatprep.subr.bf16.mxu0 0
    %767 = vmatpush1.bf16.msra.mxu0 0
    %768 = vmatprep.subr.bf16.mxu0 0
    %769 = vmatpush1.bf16.msra.mxu0 0
    %770 = vmatprep.subr.bf16.mxu0 0
    %771 = vmatpush1.bf16.msra.mxu0 0
    %772 = vmatprep.subr.bf16.mxu0 0
    %773 = vmatpush1.bf16.msra.mxu0 0
    %774 = vmatprep.mubr.bf16.mxu0 0
    %775 = vmatmul.mubr.bf16.gmra.mrb[0].mxu0 %v640
    %v776 = vpop.f32.mrb[0].mxu0
    %v777 = vadd.f32 0.0, %v776
    %v778 = vpop.f32.mrb[0].mxu0
    %v779 = vadd.f32 0.0, %v778
    %v780 = vpop.f32.mrb[0].mxu0
    %v781 = vpop.f32.mrb[0].mxu0
    %782 = vdwg.mxu0
    %v783 = vadd.f32 %v610, %v695
    %v784 = vadd.f32 %v611, %v697
    %v785 = vadd.f32 %v612, %v736
    %v786 = vadd.f32 %v613, %v738
    %v787 = vadd.f32 %v614, %v777
    %v788 = vadd.f32 %v615, %v779
    %s789 = scalar_lea.vmem [#allocation8], 16
    %v790 = vld [vmem:[%s789] sm:$0xf]
    %v791 = vld [vmem:[#allocation6 + $0x4] sm:$0xff]
    %v792 = vld [vmem:[#allocation6 + $0xc] sm:$0xff]
    %v793 = vld [vmem:[#allocation6 + $0x14] sm:$0xff]
    %v797 = vunpack.c.l.b16 %v791
    %v798 = vunpack.c.h.b16 %v791
    %v799 = vunpack.c.l.b16 %v792
    %v800 = vunpack.c.h.b16 %v792
    %v801 = vunpack.c.l.b16 %v793
    %v802 = vunpack.c.h.b16 %v793
    %v803 = vpack.c.b16 %v797, %v797
    %v804 = vpack.c.b16 %v798, %v798
    %v805 = vpack.c.b16 %v799, %v799
    %v806 = vpack.c.b16 %v800, %v800
    %v807 = vpack.c.b16 %v801, %v801
    %v808 = vpack.c.b16 %v802, %v802
    %v810 = vsel %vm132, %v790, 0
    %v813 = vsel %vm136, %v803, 0
    %v816 = vsel %vm136, %v804, 0
    %v819 = vsel %vm136, %v805, 0
    %v822 = vsel %vm136, %v806, 0
    %v825 = vsel %vm136, %v807, 0
    %v828 = vsel %vm136, %v808, 0
    %830 = vmatprep.subr.bf16.mxu0 %v816
    %831 = vmatpush1.bf16.msra.mxu0 %v813
    %832 = vmatprep.subr.bf16.mxu0 0
    %833 = vmatpush1.bf16.msra.mxu0 0
    %834 = vmatprep.subr.bf16.mxu0 0
    %835 = vmatpush1.bf16.msra.mxu0 0
    %836 = vmatprep.subr.bf16.mxu0 0
    %837 = vmatpush1.bf16.msra.mxu0 0
    %838 = vmatprep.subr.bf16.mxu0 0
    %839 = vmatpush1.bf16.msra.mxu0 0
    %840 = vmatprep.subr.bf16.mxu0 0
    %841 = vmatpush1.bf16.msra.mxu0 0
    %842 = vmatprep.subr.bf16.mxu0 0
    %843 = vmatpush1.bf16.msra.mxu0 0
    %844 = vmatprep.subr.bf16.mxu0 0
    %845 = vmatpush1.bf16.msra.mxu0 0
    %846 = vmatprep.subr.bf16.mxu0 0
    %847 = vmatpush1.bf16.msra.mxu0 0
    %848 = vmatprep.subr.bf16.mxu0 0
    %849 = vmatpush1.bf16.msra.mxu0 0
    %850 = vmatprep.subr.bf16.mxu0 0
    %851 = vmatpush1.bf16.msra.mxu0 0
    %852 = vmatprep.subr.bf16.mxu0 0
    %853 = vmatpush1.bf16.msra.mxu0 0
    %854 = vmatprep.subr.bf16.mxu0 0
    %855 = vmatpush1.bf16.msra.mxu0 0
    %856 = vmatprep.subr.bf16.mxu0 0
    %857 = vmatpush1.bf16.msra.mxu0 0
    %858 = vmatprep.subr.bf16.mxu0 0
    %859 = vmatpush1.bf16.msra.mxu0 0
    %860 = vmatprep.subr.bf16.mxu0 0
    %861 = vmatpush1.bf16.msra.mxu0 0
    %862 = vmatprep.mubr.bf16.mxu0 0
    %863 = vmatmul.mubr.bf16.gmra.mrb[0].mxu0 %v810
    %v864 = vpop.f32.mrb[0].mxu0
    %v865 = vadd.f32 0.0, %v864
    %v866 = vpop.f32.mrb[0].mxu0
    %v867 = vadd.f32 0.0, %v866
    %v868 = vpop.f32.mrb[0].mxu0
    %v869 = vpop.f32.mrb[0].mxu0
    %870 = vdwg.mxu0
    %871 = vmatprep.subr.bf16.mxu0 %v822
    %872 = vmatpush1.bf16.msra.mxu0 %v819
    %873 = vmatprep.subr.bf16.mxu0 0
    %874 = vmatpush1.bf16.msra.mxu0 0
    %875 = vmatprep.subr.bf16.mxu0 0
    %876 = vmatpush1.bf16.msra.mxu0 0
    %877 = vmatprep.subr.bf16.mxu0 0
    %878 = vmatpush1.bf16.msra.mxu0 0
    %879 = vmatprep.subr.bf16.mxu0 0
    %880 = vmatpush1.bf16.msra.mxu0 0
    %881 = vmatprep.subr.bf16.mxu0 0
    %882 = vmatpush1.bf16.msra.mxu0 0
    %883 = vmatprep.subr.bf16.mxu0 0
    %884 = vmatpush1.bf16.msra.mxu0 0
    %885 = vmatprep.subr.bf16.mxu0 0
    %886 = vmatpush1.bf16.msra.mxu0 0
    %887 = vmatprep.subr.bf16.mxu0 0
    %888 = vmatpush1.bf16.msra.mxu0 0
    %889 = vmatprep.subr.bf16.mxu0 0
    %890 = vmatpush1.bf16.msra.mxu0 0
    %891 = vmatprep.subr.bf16.mxu0 0
    %892 = vmatpush1.bf16.msra.mxu0 0
    %893 = vmatprep.subr.bf16.mxu0 0
    %894 = vmatpush1.bf16.msra.mxu0 0
    %895 = vmatprep.subr.bf16.mxu0 0
    %896 = vmatpush1.bf16.msra.mxu0 0
    %897 = vmatprep.subr.bf16.mxu0 0
    %898 = vmatpush1.bf16.msra.mxu0 0
    %899 = vmatprep.subr.bf16.mxu0 0
    %900 = vmatpush1.bf16.msra.mxu0 0
    %901 = vmatprep.subr.bf16.mxu0 0
    %902 = vmatpush1.bf16.msra.mxu0 0
    %903 = vmatprep.mubr.bf16.mxu0 0
    %904 = vmatmul.mubr.bf16.gmra.mrb[0].mxu0 %v810
    %v905 = vpop.f32.mrb[0].mxu0
    %v906 = vadd.f32 0.0, %v905
    %v907 = vpop.f32.mrb[0].mxu0
    %v908 = vadd.f32 0.0, %v907
    %v909 = vpop.f32.mrb[0].mxu0
    %v910 = vpop.f32.mrb[0].mxu0
    %911 = vdwg.mxu0
    %912 = vmatprep.subr.bf16.mxu0 %v828
    %913 = vmatpush1.bf16.msra.mxu0 %v825
    %914 = vmatprep.subr.bf16.mxu0 0
    %915 = vmatpush1.bf16.msra.mxu0 0
    %916 = vmatprep.subr.bf16.mxu0 0
    %917 = vmatpush1.bf16.msra.mxu0 0
    %918 = vmatprep.subr.bf16.mxu0 0
    %919 = vmatpush1.bf16.msra.mxu0 0
    %920 = vmatprep.subr.bf16.mxu0 0
    %921 = vmatpush1.bf16.msra.mxu0 0
    %922 = vmatprep.subr.bf16.mxu0 0
    %923 = vmatpush1.bf16.msra.mxu0 0
    %924 = vmatprep.subr.bf16.mxu0 0
    %925 = vmatpush1.bf16.msra.mxu0 0
    %926 = vmatprep.subr.bf16.mxu0 0
    %927 = vmatpush1.bf16.msra.mxu0 0
    %928 = vmatprep.subr.bf16.mxu0 0
    %929 = vmatpush1.bf16.msra.mxu0 0
    %930 = vmatprep.subr.bf16.mxu0 0
    %931 = vmatpush1.bf16.msra.mxu0 0
    %932 = vmatprep.subr.bf16.mxu0 0
    %933 = vmatpush1.bf16.msra.mxu0 0
    %934 = vmatprep.subr.bf16.mxu0 0
    %935 = vmatpush1.bf16.msra.mxu0 0
    %936 = vmatprep.subr.bf16.mxu0 0
    %937 = vmatpush1.bf16.msra.mxu0 0
    %938 = vmatprep.subr.bf16.mxu0 0
    %939 = vmatpush1.bf16.msra.mxu0 0
    %940 = vmatprep.subr.bf16.mxu0 0
    %941 = vmatpush1.bf16.msra.mxu0 0
    %942 = vmatprep.subr.bf16.mxu0 0
    %943 = vmatpush1.bf16.msra.mxu0 0
    %944 = vmatprep.mubr.bf16.mxu0 0
    %945 = vmatmul.mubr.bf16.gmra.mrb[0].mxu0 %v810
    %v946 = vpop.f32.mrb[0].mxu0
    %v947 = vadd.f32 0.0, %v946
    %v948 = vpop.f32.mrb[0].mxu0
    %v949 = vadd.f32 0.0, %v948
    %v950 = vpop.f32.mrb[0].mxu0
    %v951 = vpop.f32.mrb[0].mxu0
    %952 = vdwg.mxu0
    %v953 = vadd.f32 %v783, %v865
    %v954 = vadd.f32 %v784, %v867
    %v955 = vadd.f32 %v785, %v906
    %v956 = vadd.f32 %v786, %v908
    %v957 = vadd.f32 %v787, %v947
    %v958 = vadd.f32 %v788, %v949
    %s959 = scalar_lea.vmem [#allocation8], 20
    %v960 = vld [vmem:[%s959] sm:$0xf]
    %v961 = vld [vmem:[#allocation6 + $0x4] sm:$0xff]
    %v962 = vld [vmem:[#allocation6 + $0xc] sm:$0xff]
    %v963 = vld [vmem:[#allocation6 + $0x14] sm:$0xff]
    %v964 = vld [vmem:[#allocation6 + $0x1c] sm:$0xf]
    %v969 = vunpack.c.l.b16 %v961
    %v970 = vunpack.c.h.b16 %v961
    %v971 = vunpack.c.l.b16 %v962
    %v972 = vunpack.c.h.b16 %v962
    %v973 = vunpack.c.l.b16 %v963
    %v974 = vunpack.c.h.b16 %v963
    %v975 = vunpack.c.l.b16 %v964
    %v976 = vpack.c.b16 %v969, %v969
    %v977 = vpack.c.b16 %v970, %v970
    %v978 = vpack.c.b16 %v971, %v971
    %v979 = vpack.c.b16 %v972, %v972
    %v980 = vpack.c.b16 %v973, %v973
    %v981 = vpack.c.b16 %v974, %v974
    %v982 = vpack.c.b16 %v975, %v975
    %983 = vrot.lane.b32.xlu0 %v976, 127
    %v984 = vpop.permute.xlu0 %983
    %985 = vrot.lane.b32.xlu0 %v977, 127
    %v986 = vpop.permute.xlu0 %985
    %987 = vrot.lane.b32.xlu0 %v978, 127
    %v988 = vpop.permute.xlu0 %987
    %989 = vrot.lane.b32.xlu0 %v979, 127
    %v990 = vpop.permute.xlu0 %989
    %991 = vrot.lane.b32.xlu0 %v980, 127
    %v992 = vpop.permute.xlu0 %991
    %993 = vrot.lane.b32.xlu0 %v981, 127
    %v994 = vpop.permute.xlu0 %993
    %995 = vrot.lane.b32.xlu0 %v982, 127
    %v996 = vpop.permute.xlu0 %995
    %vm997 = vcmask 1039360
    %v998 = vsel %vm997, %v984, %v986
    %v999 = vsel %vm997, %v986, %v988
    %v1000 = vsel %vm997, %v988, %v990
    %v1001 = vsel %vm997, %v990, %v992
    %v1002 = vsel %vm997, %v992, %v994
    %v1003 = vsel %vm997, %v994, %v996
    %v1005 = vsel %vm132, %v960, 0
    %v1008 = vsel %vm136, %v998, 0
    %v1011 = vsel %vm136, %v999, 0
    %v1014 = vsel %vm136, %v1000, 0
    %v1017 = vsel %vm136, %v1001, 0
    %v1020 = vsel %vm136, %v1002, 0
    %v1023 = vsel %vm136, %v1003, 0
    %1025 = vmatprep.subr.bf16.mxu0 %v1011
    %1026 = vmatpush1.bf16.msra.mxu0 %v1008
    %1027 = vmatprep.subr.bf16.mxu0 0
    %1028 = vmatpush1.bf16.msra.mxu0 0
    %1029 = vmatprep.subr.bf16.mxu0 0
    %1030 = vmatpush1.bf16.msra.mxu0 0
    %1031 = vmatprep.subr.bf16.mxu0 0
    %1032 = vmatpush1.bf16.msra.mxu0 0
    %1033 = vmatprep.subr.bf16.mxu0 0
    %1034 = vmatpush1.bf16.msra.mxu0 0
    %1035 = vmatprep.subr.bf16.mxu0 0
    %1036 = vmatpush1.bf16.msra.mxu0 0
    %1037 = vmatprep.subr.bf16.mxu0 0
    %1038 = vmatpush1.bf16.msra.mxu0 0
    %1039 = vmatprep.subr.bf16.mxu0 0
    %1040 = vmatpush1.bf16.msra.mxu0 0
    %1041 = vmatprep.subr.bf16.mxu0 0
    %1042 = vmatpush1.bf16.msra.mxu0 0
    %1043 = vmatprep.subr.bf16.mxu0 0
    %1044 = vmatpush1.bf16.msra.mxu0 0
    %1045 = vmatprep.subr.bf16.mxu0 0
    %1046 = vmatpush1.bf16.msra.mxu0 0
    %1047 = vmatprep.subr.bf16.mxu0 0
    %1048 = vmatpush1.bf16.msra.mxu0 0
    %1049 = vmatprep.subr.bf16.mxu0 0
    %1050 = vmatpush1.bf16.msra.mxu0 0
    %1051 = vmatprep.subr.bf16.mxu0 0
    %1052 = vmatpush1.bf16.msra.mxu0 0
    %1053 = vmatprep.subr.bf16.mxu0 0
    %1054 = vmatpush1.bf16.msra.mxu0 0
    %1055 = vmatprep.subr.bf16.mxu0 0
    %1056 = vmatpush1.bf16.msra.mxu0 0
    %1057 = vmatprep.mubr.bf16.mxu0 0
    %1058 = vmatmul.mubr.bf16.gmra.mrb[0].mxu0 %v1005
    %v1059 = vpop.f32.mrb[0].mxu0
    %v1060 = vadd.f32 0.0, %v1059
    %v1061 = vpop.f32.mrb[0].mxu0
    %v1062 = vadd.f32 0.0, %v1061
    %v1063 = vpop.f32.mrb[0].mxu0
    %v1064 = vpop.f32.mrb[0].mxu0
    %1065 = vdwg.mxu0
    %1066 = vmatprep.subr.bf16.mxu0 %v1017
    %1067 = vmatpush1.bf16.msra.mxu0 %v1014
    %1068 = vmatprep.subr.bf16.mxu0 0
    %1069 = vmatpush1.bf16.msra.mxu0 0
    %1070 = vmatprep.subr.bf16.mxu0 0
    %1071 = vmatpush1.bf16.msra.mxu0 0
    %1072 = vmatprep.subr.bf16.mxu0 0
    %1073 = vmatpush1.bf16.msra.mxu0 0
    %1074 = vmatprep.subr.bf16.mxu0 0
    %1075 = vmatpush1.bf16.msra.mxu0 0
    %1076 = vmatprep.subr.bf16.mxu0 0
    %1077 = vmatpush1.bf16.msra.mxu0 0
    %1078 = vmatprep.subr.bf16.mxu0 0
    %1079 = vmatpush1.bf16.msra.mxu0 0
    %1080 = vmatprep.subr.bf16.mxu0 0
    %1081 = vmatpush1.bf16.msra.mxu0 0
    %1082 = vmatprep.subr.bf16.mxu0 0
    %1083 = vmatpush1.bf16.msra.mxu0 0
    %1084 = vmatprep.subr.bf16.mxu0 0
    %1085 = vmatpush1.bf16.msra.mxu0 0
    %1086 = vmatprep.subr.bf16.mxu0 0
    %1087 = vmatpush1.bf16.msra.mxu0 0
    %1088 = vmatprep.subr.bf16.mxu0 0
    %1089 = vmatpush1.bf16.msra.mxu0 0
    %1090 = vmatprep.subr.bf16.mxu0 0
    %1091 = vmatpush1.bf16.msra.mxu0 0
    %1092 = vmatprep.subr.bf16.mxu0 0
    %1093 = vmatpush1.bf16.msra.mxu0 0
    %1094 = vmatprep.subr.bf16.mxu0 0
    %1095 = vmatpush1.bf16.msra.mxu0 0
    %1096 = vmatprep.subr.bf16.mxu0 0
    %1097 = vmatpush1.bf16.msra.mxu0 0
    %1098 = vmatprep.mubr.bf16.mxu0 0
    %1099 = vmatmul.mubr.bf16.gmra.mrb[0].mxu0 %v1005
    %v1100 = vpop.f32.mrb[0].mxu0
    %v1101 = vadd.f32 0.0, %v1100
    %v1102 = vpop.f32.mrb[0].mxu0
    %v1103 = vadd.f32 0.0, %v1102
    %v1104 = vpop.f32.mrb[0].mxu0
    %v1105 = vpop.f32.mrb[0].mxu0
    %1106 = vdwg.mxu0
    %1107 = vmatprep.subr.bf16.mxu0 %v1023
    %1108 = vmatpush1.bf16.msra.mxu0 %v1020
    %1109 = vmatprep.subr.bf16.mxu0 0
    %1110 = vmatpush1.bf16.msra.mxu0 0
    %1111 = vmatprep.subr.bf16.mxu0 0
    %1112 = vmatpush1.bf16.msra.mxu0 0
    %1113 = vmatprep.subr.bf16.mxu0 0
    %1114 = vmatpush1.bf16.msra.mxu0 0
    %1115 = vmatprep.subr.bf16.mxu0 0
    %1116 = vmatpush1.bf16.msra.mxu0 0
    %1117 = vmatprep.subr.bf16.mxu0 0
    %1118 = vmatpush1.bf16.msra.mxu0 0
    %1119 = vmatprep.subr.bf16.mxu0 0
    %1120 = vmatpush1.bf16.msra.mxu0 0
    %1121 = vmatprep.subr.bf16.mxu0 0
    %1122 = vmatpush1.bf16.msra.mxu0 0
    %1123 = vmatprep.subr.bf16.mxu0 0
    %1124 = vmatpush1.bf16.msra.mxu0 0
    %1125 = vmatprep.subr.bf16.mxu0 0
    %1126 = vmatpush1.bf16.msra.mxu0 0
    %1127 = vmatprep.subr.bf16.mxu0 0
    %1128 = vmatpush1.bf16.msra.mxu0 0
    %1129 = vmatprep.subr.bf16.mxu0 0
    %1130 = vmatpush1.bf16.msra.mxu0 0
    %1131 = vmatprep.subr.bf16.mxu0 0
    %1132 = vmatpush1.bf16.msra.mxu0 0
    %1133 = vmatprep.subr.bf16.mxu0 0
    %1134 = vmatpush1.bf16.msra.mxu0 0
    %1135 = vmatprep.subr.bf16.mxu0 0
    %1136 = vmatpush1.bf16.msra.mxu0 0
    %1137 = vmatprep.subr.bf16.mxu0 0
    %1138 = vmatpush1.bf16.msra.mxu0 0
    %1139 = vmatprep.mubr.bf16.mxu0 0
    %1140 = vmatmul.mubr.bf16.gmra.mrb[0].mxu0 %v1005
    %v1141 = vpop.f32.mrb[0].mxu0
    %v1142 = vadd.f32 0.0, %v1141
    %v1143 = vpop.f32.mrb[0].mxu0
    %v1144 = vadd.f32 0.0, %v1143
    %v1145 = vpop.f32.mrb[0].mxu0
    %v1146 = vpop.f32.mrb[0].mxu0
    %1147 = vdwg.mxu0
    %v1148 = vadd.f32 %v953, %v1060
    %v1149 = vadd.f32 %v954, %v1062
    %v1150 = vadd.f32 %v955, %v1101
    %v1151 = vadd.f32 %v956, %v1103
    %v1152 = vadd.f32 %v957, %v1142
    %v1153 = vadd.f32 %v958, %v1144
    %s1154 = scalar_lea.vmem [#allocation8], 24
    %v1155 = vld [vmem:[%s1154] sm:$0xf]
    %1156 = vrot.lane.b32.xlu0 %v976, 111
    %v1157 = vpop.permute.xlu0 %1156
    %1158 = vrot.lane.b32.xlu0 %v977, 111
    %v1159 = vpop.permute.xlu0 %1158
    %1160 = vrot.lane.b32.xlu0 %v978, 111
    %v1161 = vpop.permute.xlu0 %1160
    %1162 = vrot.lane.b32.xlu0 %v979, 111
    %v1163 = vpop.permute.xlu0 %1162
    %1164 = vrot.lane.b32.xlu0 %v980, 111
    %v1165 = vpop.permute.xlu0 %1164
    %1166 = vrot.lane.b32.xlu0 %v981, 111
    %v1167 = vpop.permute.xlu0 %1166
    %1168 = vrot.lane.b32.xlu0 %v982, 111
    %v1169 = vpop.permute.xlu0 %1168
    %vm1170 = vcmask 908288
    %v1171 = vsel %vm1170, %v1157, %v1159
    %v1172 = vsel %vm1170, %v1159, %v1161
    %v1173 = vsel %vm1170, %v1161, %v1163
    %v1174 = vsel %vm1170, %v1163, %v1165
    %v1175 = vsel %vm1170, %v1165, %v1167
    %v1176 = vsel %vm1170, %v1167, %v1169
    %v1178 = vsel %vm132, %v1155, 0
    %v1181 = vsel %vm136, %v1171, 0
    %v1184 = vsel %vm136, %v1172, 0
    %v1187 = vsel %vm136, %v1173, 0
    %v1190 = vsel %vm136, %v1174, 0
    %v1193 = vsel %vm136, %v1175, 0
    %v1196 = vsel %vm136, %v1176, 0
    %1198 = vmatprep.subr.bf16.mxu0 %v1184
    %1199 = vmatpush1.bf16.msra.mxu0 %v1181
    %1200 = vmatprep.subr.bf16.mxu0 0
    %1201 = vmatpush1.bf16.msra.mxu0 0
    %1202 = vmatprep.subr.bf16.mxu0 0
    %1203 = vmatpush1.bf16.msra.mxu0 0
    %1204 = vmatprep.subr.bf16.mxu0 0
    %1205 = vmatpush1.bf16.msra.mxu0 0
    %1206 = vmatprep.subr.bf16.mxu0 0
    %1207 = vmatpush1.bf16.msra.mxu0 0
    %1208 = vmatprep.subr.bf16.mxu0 0
    %1209 = vmatpush1.bf16.msra.mxu0 0
    %1210 = vmatprep.subr.bf16.mxu0 0
    %1211 = vmatpush1.bf16.msra.mxu0 0
    %1212 = vmatprep.subr.bf16.mxu0 0
    %1213 = vmatpush1.bf16.msra.mxu0 0
    %1214 = vmatprep.subr.bf16.mxu0 0
    %1215 = vmatpush1.bf16.msra.mxu0 0
    %1216 = vmatprep.subr.bf16.mxu0 0
    %1217 = vmatpush1.bf16.msra.mxu0 0
    %1218 = vmatprep.subr.bf16.mxu0 0
    %1219 = vmatpush1.bf16.msra.mxu0 0
    %1220 = vmatprep.subr.bf16.mxu0 0
    %1221 = vmatpush1.bf16.msra.mxu0 0
    %1222 = vmatprep.subr.bf16.mxu0 0
    %1223 = vmatpush1.bf16.msra.mxu0 0
    %1224 = vmatprep.subr.bf16.mxu0 0
    %1225 = vmatpush1.bf16.msra.mxu0 0
    %1226 = vmatprep.subr.bf16.mxu0 0
    %1227 = vmatpush1.bf16.msra.mxu0 0
    %1228 = vmatprep.subr.bf16.mxu0 0
    %1229 = vmatpush1.bf16.msra.mxu0 0
    %1230 = vmatprep.mubr.bf16.mxu0 0
    %1231 = vmatmul.mubr.bf16.gmra.mrb[0].mxu0 %v1178
    %v1232 = vpop.f32.mrb[0].mxu0
    %v1233 = vadd.f32 0.0, %v1232
    %v1234 = vpop.f32.mrb[0].mxu0
    %v1235 = vadd.f32 0.0, %v1234
    %v1236 = vpop.f32.mrb[0].mxu0
    %v1237 = vpop.f32.mrb[0].mxu0
    %1238 = vdwg.mxu0
    %1239 = vmatprep.subr.bf16.mxu0 %v1190
    %1240 = vmatpush1.bf16.msra.mxu0 %v1187
    %1241 = vmatprep.subr.bf16.mxu0 0
    %1242 = vmatpush1.bf16.msra.mxu0 0
    %1243 = vmatprep.subr.bf16.mxu0 0
    %1244 = vmatpush1.bf16.msra.mxu0 0
    %1245 = vmatprep.subr.bf16.mxu0 0
    %1246 = vmatpush1.bf16.msra.mxu0 0
    %1247 = vmatprep.subr.bf16.mxu0 0
    %1248 = vmatpush1.bf16.msra.mxu0 0
    %1249 = vmatprep.subr.bf16.mxu0 0
    %1250 = vmatpush1.bf16.msra.mxu0 0
    %1251 = vmatprep.subr.bf16.mxu0 0
    %1252 = vmatpush1.bf16.msra.mxu0 0
    %1253 = vmatprep.subr.bf16.mxu0 0
    %1254 = vmatpush1.bf16.msra.mxu0 0
    %1255 = vmatprep.subr.bf16.mxu0 0
    %1256 = vmatpush1.bf16.msra.mxu0 0
    %1257 = vmatprep.subr.bf16.mxu0 0
    %1258 = vmatpush1.bf16.msra.mxu0 0
    %1259 = vmatprep.subr.bf16.mxu0 0
    %1260 = vmatpush1.bf16.msra.mxu0 0
    %1261 = vmatprep.subr.bf16.mxu0 0
    %1262 = vmatpush1.bf16.msra.mxu0 0
    %1263 = vmatprep.subr.bf16.mxu0 0
    %1264 = vmatpush1.bf16.msra.mxu0 0
    %1265 = vmatprep.subr.bf16.mxu0 0
    %1266 = vmatpush1.bf16.msra.mxu0 0
    %1267 = vmatprep.subr.bf16.mxu0 0
    %1268 = vmatpush1.bf16.msra.mxu0 0
    %1269 = vmatprep.subr.bf16.mxu0 0
    %1270 = vmatpush1.bf16.msra.mxu0 0
    %1271 = vmatprep.mubr.bf16.mxu0 0
    %1272 = vmatmul.mubr.bf16.gmra.mrb[0].mxu0 %v1178
    %v1273 = vpop.f32.mrb[0].mxu0
    %v1274 = vadd.f32 0.0, %v1273
    %v1275 = vpop.f32.mrb[0].mxu0
    %v1276 = vadd.f32 0.0, %v1275
    %v1277 = vpop.f32.mrb[0].mxu0
    %v1278 = vpop.f32.mrb[0].mxu0
    %1279 = vdwg.mxu0
    %1280 = vmatprep.subr.bf16.mxu0 %v1196
    %1281 = vmatpush1.bf16.msra.mxu0 %v1193
    %1282 = vmatprep.subr.bf16.mxu0 0
    %1283 = vmatpush1.bf16.msra.mxu0 0
    %1284 = vmatprep.subr.bf16.mxu0 0
    %1285 = vmatpush1.bf16.msra.mxu0 0
    %1286 = vmatprep.subr.bf16.mxu0 0
    %1287 = vmatpush1.bf16.msra.mxu0 0
    %1288 = vmatprep.subr.bf16.mxu0 0
    %1289 = vmatpush1.bf16.msra.mxu0 0
    %1290 = vmatprep.subr.bf16.mxu0 0
    %1291 = vmatpush1.bf16.msra.mxu0 0
    %1292 = vmatprep.subr.bf16.mxu0 0
    %1293 = vmatpush1.bf16.msra.mxu0 0
    %1294 = vmatprep.subr.bf16.mxu0 0
    %1295 = vmatpush1.bf16.msra.mxu0 0
    %1296 = vmatprep.subr.bf16.mxu0 0
    %1297 = vmatpush1.bf16.msra.mxu0 0
    %1298 = vmatprep.subr.bf16.mxu0 0
    %1299 = vmatpush1.bf16.msra.mxu0 0
    %1300 = vmatprep.subr.bf16.mxu0 0
    %1301 = vmatpush1.bf16.msra.mxu0 0
    %1302 = vmatprep.subr.bf16.mxu0 0
    %1303 = vmatpush1.bf16.msra.mxu0 0
    %1304 = vmatprep.subr.bf16.mxu0 0
    %1305 = vmatpush1.bf16.msra.mxu0 0
    %1306 = vmatprep.subr.bf16.mxu0 0
    %1307 = vmatpush1.bf16.msra.mxu0 0
    %1308 = vmatprep.subr.bf16.mxu0 0
    %1309 = vmatpush1.bf16.msra.mxu0 0
    %1310 = vmatprep.subr.bf16.mxu0 0
    %1311 = vmatpush1.bf16.msra.mxu0 0
    %1312 = vmatprep.mubr.bf16.mxu0 0
    %1313 = vmatmul.mubr.bf16.gmra.mrb[0].mxu0 %v1178
    %v1314 = vpop.f32.mrb[0].mxu0
    %v1315 = vadd.f32 0.0, %v1314
    %v1316 = vpop.f32.mrb[0].mxu0
    %v1317 = vadd.f32 0.0, %v1316
    %v1318 = vpop.f32.mrb[0].mxu0
    %v1319 = vpop.f32.mrb[0].mxu0
    %1320 = vdwg.mxu0
    %v1321 = vadd.f32 %v1148, %v1233
    %v1322 = vadd.f32 %v1149, %v1235
    %v1323 = vadd.f32 %v1150, %v1274
    %v1324 = vadd.f32 %v1151, %v1276
    %v1325 = vadd.f32 %v1152, %v1315
    %v1326 = vadd.f32 %v1153, %v1317
    %s1327 = scalar_lea.vmem [#allocation8], 28
    %v1328 = vld [vmem:[%s1327] sm:$0xf]
    %1329 = vrot.lane.b32.xlu0 %v976, 110
    %v1330 = vpop.permute.xlu0 %1329
    %1331 = vrot.lane.b32.xlu0 %v977, 110
    %v1332 = vpop.permute.xlu0 %1331
    %1333 = vrot.lane.b32.xlu0 %v978, 110
    %v1334 = vpop.permute.xlu0 %1333
    %1335 = vrot.lane.b32.xlu0 %v979, 110
    %v1336 = vpop.permute.xlu0 %1335
    %1337 = vrot.lane.b32.xlu0 %v980, 110
    %v1338 = vpop.permute.xlu0 %1337
    %1339 = vrot.lane.b32.xlu0 %v981, 110
    %v1340 = vpop.permute.xlu0 %1339
    %1341 = vrot.lane.b32.xlu0 %v982, 110
    %v1342 = vpop.permute.xlu0 %1341
    %vm1343 = vcmask 900096
    %v1344 = vsel %vm1343, %v1330, %v1332
    %v1345 = vsel %vm1343, %v1332, %v1334
    %v1346 = vsel %vm1343, %v1334, %v1336
    %v1347 = vsel %vm1343, %v1336, %v1338
    %v1348 = vsel %vm1343, %v1338, %v1340
    %v1349 = vsel %vm1343, %v1340, %v1342
    %v1351 = vsel %vm132, %v1328, 0
    %v1354 = vsel %vm136, %v1344, 0
    %v1357 = vsel %vm136, %v1345, 0
    %v1360 = vsel %vm136, %v1346, 0
    %v1363 = vsel %vm136, %v1347, 0
    %v1366 = vsel %vm136, %v1348, 0
    %v1369 = vsel %vm136, %v1349, 0
    %1371 = vmatprep.subr.bf16.mxu0 %v1357
    %1372 = vmatpush1.bf16.msra.mxu0 %v1354
    %1373 = vmatprep.subr.bf16.mxu0 0
    %1374 = vmatpush1.bf16.msra.mxu0 0
    %1375 = vmatprep.subr.bf16.mxu0 0
    %1376 = vmatpush1.bf16.msra.mxu0 0
    %1377 = vmatprep.subr.bf16.mxu0 0
    %1378 = vmatpush1.bf16.msra.mxu0 0
    %1379 = vmatprep.subr.bf16.mxu0 0
    %1380 = vmatpush1.bf16.msra.mxu0 0
    %1381 = vmatprep.subr.bf16.mxu0 0
    %1382 = vmatpush1.bf16.msra.mxu0 0
    %1383 = vmatprep.subr.bf16.mxu0 0
    %1384 = vmatpush1.bf16.msra.mxu0 0
    %1385 = vmatprep.subr.bf16.mxu0 0
    %1386 = vmatpush1.bf16.msra.mxu0 0
    %1387 = vmatprep.subr.bf16.mxu0 0
    %1388 = vmatpush1.bf16.msra.mxu0 0
    %1389 = vmatprep.subr.bf16.mxu0 0
    %1390 = vmatpush1.bf16.msra.mxu0 0
    %1391 = vmatprep.subr.bf16.mxu0 0
    %1392 = vmatpush1.bf16.msra.mxu0 0
    %1393 = vmatprep.subr.bf16.mxu0 0
    %1394 = vmatpush1.bf16.msra.mxu0 0
    %1395 = vmatprep.subr.bf16.mxu0 0
    %1396 = vmatpush1.bf16.msra.mxu0 0
    %1397 = vmatprep.subr.bf16.mxu0 0
    %1398 = vmatpush1.bf16.msra.mxu0 0
    %1399 = vmatprep.subr.bf16.mxu0 0
    %1400 = vmatpush1.bf16.msra.mxu0 0
    %1401 = vmatprep.subr.bf16.mxu0 0
    %1402 = vmatpush1.bf16.msra.mxu0 0
    %1403 = vmatprep.mubr.bf16.mxu0 0
    %1404 = vmatmul.mubr.bf16.gmra.mrb[0].mxu0 %v1351
    %v1405 = vpop.f32.mrb[0].mxu0
    %v1406 = vadd.f32 0.0, %v1405
    %v1407 = vpop.f32.mrb[0].mxu0
    %v1408 = vadd.f32 0.0, %v1407
    %v1409 = vpop.f32.mrb[0].mxu0
    %v1410 = vpop.f32.mrb[0].mxu0
    %1411 = vdwg.mxu0
    %1412 = vmatprep.subr.bf16.mxu0 %v1363
    %1413 = vmatpush1.bf16.msra.mxu0 %v1360
    %1414 = vmatprep.subr.bf16.mxu0 0
    %1415 = vmatpush1.bf16.msra.mxu0 0
    %1416 = vmatprep.subr.bf16.mxu0 0
    %1417 = vmatpush1.bf16.msra.mxu0 0
    %1418 = vmatprep.subr.bf16.mxu0 0
    %1419 = vmatpush1.bf16.msra.mxu0 0
    %1420 = vmatprep.subr.bf16.mxu0 0
    %1421 = vmatpush1.bf16.msra.mxu0 0
    %1422 = vmatprep.subr.bf16.mxu0 0
    %1423 = vmatpush1.bf16.msra.mxu0 0
    %1424 = vmatprep.subr.bf16.mxu0 0
    %1425 = vmatpush1.bf16.msra.mxu0 0
    %1426 = vmatprep.subr.bf16.mxu0 0
    %1427 = vmatpush1.bf16.msra.mxu0 0
    %1428 = vmatprep.subr.bf16.mxu0 0
    %1429 = vmatpush1.bf16.msra.mxu0 0
    %1430 = vmatprep.subr.bf16.mxu0 0
    %1431 = vmatpush1.bf16.msra.mxu0 0
    %1432 = vmatprep.subr.bf16.mxu0 0
    %1433 = vmatpush1.bf16.msra.mxu0 0
    %1434 = vmatprep.subr.bf16.mxu0 0
    %1435 = vmatpush1.bf16.msra.mxu0 0
    %1436 = vmatprep.subr.bf16.mxu0 0
    %1437 = vmatpush1.bf16.msra.mxu0 0
    %1438 = vmatprep.subr.bf16.mxu0 0
    %1439 = vmatpush1.bf16.msra.mxu0 0
    %1440 = vmatprep.subr.bf16.mxu0 0
    %1441 = vmatpush1.bf16.msra.mxu0 0
    %1442 = vmatprep.subr.bf16.mxu0 0
    %1443 = vmatpush1.bf16.msra.mxu0 0
    %1444 = vmatprep.mubr.bf16.mxu0 0
    %1445 = vmatmul.mubr.bf16.gmra.mrb[0].mxu0 %v1351
    %v1446 = vpop.f32.mrb[0].mxu0
    %v1447 = vadd.f32 0.0, %v1446
    %v1448 = vpop.f32.mrb[0].mxu0
    %v1449 = vadd.f32 0.0, %v1448
    %v1450 = vpop.f32.mrb[0].mxu0
    %v1451 = vpop.f32.mrb[0].mxu0
    %1452 = vdwg.mxu0
    %1453 = vmatprep.subr.bf16.mxu0 %v1369
    %1454 = vmatpush1.bf16.msra.mxu0 %v1366
    %1455 = vmatprep.subr.bf16.mxu0 0
    %1456 = vmatpush1.bf16.msra.mxu0 0
    %1457 = vmatprep.subr.bf16.mxu0 0
    %1458 = vmatpush1.bf16.msra.mxu0 0
    %1459 = vmatprep.subr.bf16.mxu0 0
    %1460 = vmatpush1.bf16.msra.mxu0 0
    %1461 = vmatprep.subr.bf16.mxu0 0
    %1462 = vmatpush1.bf16.msra.mxu0 0
    %1463 = vmatprep.subr.bf16.mxu0 0
    %1464 = vmatpush1.bf16.msra.mxu0 0
    %1465 = vmatprep.subr.bf16.mxu0 0
    %1466 = vmatpush1.bf16.msra.mxu0 0
    %1467 = vmatprep.subr.bf16.mxu0 0
    %1468 = vmatpush1.bf16.msra.mxu0 0
    %1469 = vmatprep.subr.bf16.mxu0 0
    %1470 = vmatpush1.bf16.msra.mxu0 0
    %1471 = vmatprep.subr.bf16.mxu0 0
    %1472 = vmatpush1.bf16.msra.mxu0 0
    %1473 = vmatprep.subr.bf16.mxu0 0
    %1474 = vmatpush1.bf16.msra.mxu0 0
    %1475 = vmatprep.subr.bf16.mxu0 0
    %1476 = vmatpush1.bf16.msra.mxu0 0
    %1477 = vmatprep.subr.bf16.mxu0 0
    %1478 = vmatpush1.bf16.msra.mxu0 0
    %1479 = vmatprep.subr.bf16.mxu0 0
    %1480 = vmatpush1.bf16.msra.mxu0 0
    %1481 = vmatprep.subr.bf16.mxu0 0
    %1482 = vmatpush1.bf16.msra.mxu0 0
    %1483 = vmatprep.subr.bf16.mxu0 0
    %1484 = vmatpush1.bf16.msra.mxu0 0
    %1485 = vmatprep.mubr.bf16.mxu0 0
    %1486 = vmatmul.mubr.bf16.gmra.mrb[0].mxu0 %v1351
    %v1487 = vpop.f32.mrb[0].mxu0
    %v1488 = vadd.f32 0.0, %v1487
    %v1489 = vpop.f32.mrb[0].mxu0
    %v1490 = vadd.f32 0.0, %v1489
    %v1491 = vpop.f32.mrb[0].mxu0
    %v1492 = vpop.f32.mrb[0].mxu0
    %1493 = vdwg.mxu0
    %v1494 = vadd.f32 %v1321, %v1406
    %v1495 = vadd.f32 %v1322, %v1408
    %v1496 = vadd.f32 %v1323, %v1447
    %v1497 = vadd.f32 %v1324, %v1449
    %v1498 = vadd.f32 %v1325, %v1488
    %v1499 = vadd.f32 %v1326, %v1490
    %s1500 = scalar_lea.vmem [#allocation8], 32
    %v1501 = vld [vmem:[%s1500] sm:$0xf]
    %1502 = vrot.lane.b32.xlu0 %v976, 109
    %v1503 = vpop.permute.xlu0 %1502
    %1504 = vrot.lane.b32.xlu0 %v977, 109
    %v1505 = vpop.permute.xlu0 %1504
    %1506 = vrot.lane.b32.xlu0 %v978, 109
    %v1507 = vpop.permute.xlu0 %1506
    %1508 = vrot.lane.b32.xlu0 %v979, 109
    %v1509 = vpop.permute.xlu0 %1508
    %1510 = vrot.lane.b32.xlu0 %v980, 109
    %v1511 = vpop.permute.xlu0 %1510
    %1512 = vrot.lane.b32.xlu0 %v981, 109
    %v1513 = vpop.permute.xlu0 %1512
    %1514 = vrot.lane.b32.xlu0 %v982, 109
    %v1515 = vpop.permute.xlu0 %1514
    %vm1516 = vcmask 891904
    %v1517 = vsel %vm1516, %v1503, %v1505
    %v1518 = vsel %vm1516, %v1505, %v1507
    %v1519 = vsel %vm1516, %v1507, %v1509
    %v1520 = vsel %vm1516, %v1509, %v1511
    %v1521 = vsel %vm1516, %v1511, %v1513
    %v1522 = vsel %vm1516, %v1513, %v1515
    %v1524 = vsel %vm132, %v1501, 0
    %v1527 = vsel %vm136, %v1517, 0
    %v1530 = vsel %vm136, %v1518, 0
    %v1533 = vsel %vm136, %v1519, 0
    %v1536 = vsel %vm136, %v1520, 0
    %v1539 = vsel %vm136, %v1521, 0
    %v1542 = vsel %vm136, %v1522, 0
    %1544 = vmatprep.subr.bf16.mxu0 %v1530
    %1545 = vmatpush1.bf16.msra.mxu0 %v1527
    %1546 = vmatprep.subr.bf16.mxu0 0
    %1547 = vmatpush1.bf16.msra.mxu0 0
    %1548 = vmatprep.subr.bf16.mxu0 0
    %1549 = vmatpush1.bf16.msra.mxu0 0
    %1550 = vmatprep.subr.bf16.mxu0 0
    %1551 = vmatpush1.bf16.msra.mxu0 0
    %1552 = vmatprep.subr.bf16.mxu0 0
    %1553 = vmatpush1.bf16.msra.mxu0 0
    %1554 = vmatprep.subr.bf16.mxu0 0
    %1555 = vmatpush1.bf16.msra.mxu0 0
    %1556 = vmatprep.subr.bf16.mxu0 0
    %1557 = vmatpush1.bf16.msra.mxu0 0
    %1558 = vmatprep.subr.bf16.mxu0 0
    %1559 = vmatpush1.bf16.msra.mxu0 0
    %1560 = vmatprep.subr.bf16.mxu0 0
    %1561 = vmatpush1.bf16.msra.mxu0 0
    %1562 = vmatprep.subr.bf16.mxu0 0
    %1563 = vmatpush1.bf16.msra.mxu0 0
    %1564 = vmatprep.subr.bf16.mxu0 0
    %1565 = vmatpush1.bf16.msra.mxu0 0
    %1566 = vmatprep.subr.bf16.mxu0 0
    %1567 = vmatpush1.bf16.msra.mxu0 0
    %1568 = vmatprep.subr.bf16.mxu0 0
    %1569 = vmatpush1.bf16.msra.mxu0 0
    %1570 = vmatprep.subr.bf16.mxu0 0
    %1571 = vmatpush1.bf16.msra.mxu0 0
    %1572 = vmatprep.subr.bf16.mxu0 0
    %1573 = vmatpush1.bf16.msra.mxu0 0
    %1574 = vmatprep.subr.bf16.mxu0 0
    %1575 = vmatpush1.bf16.msra.mxu0 0
    %1576 = vmatprep.mubr.bf16.mxu0 0
    %1577 = vmatmul.mubr.bf16.gmra.mrb[0].mxu0 %v1524
    %v1578 = vpop.f32.mrb[0].mxu0
    %v1579 = vadd.f32 0.0, %v1578
    %v1580 = vpop.f32.mrb[0].mxu0
    %v1581 = vadd.f32 0.0, %v1580
    %v1582 = vpop.f32.mrb[0].mxu0
    %v1583 = vpop.f32.mrb[0].mxu0
    %1584 = vdwg.mxu0
    %1585 = vmatprep.subr.bf16.mxu0 %v1536
    %1586 = vmatpush1.bf16.msra.mxu0 %v1533
    %1587 = vmatprep.subr.bf16.mxu0 0
    %1588 = vmatpush1.bf16.msra.mxu0 0
    %1589 = vmatprep.subr.bf16.mxu0 0
    %1590 = vmatpush1.bf16.msra.mxu0 0
    %1591 = vmatprep.subr.bf16.mxu0 0
    %1592 = vmatpush1.bf16.msra.mxu0 0
    %1593 = vmatprep.subr.bf16.mxu0 0
    %1594 = vmatpush1.bf16.msra.mxu0 0
    %1595 = vmatprep.subr.bf16.mxu0 0
    %1596 = vmatpush1.bf16.msra.mxu0 0
    %1597 = vmatprep.subr.bf16.mxu0 0
    %1598 = vmatpush1.bf16.msra.mxu0 0
    %1599 = vmatprep.subr.bf16.mxu0 0
    %1600 = vmatpush1.bf16.msra.mxu0 0
    %1601 = vmatprep.subr.bf16.mxu0 0
    %1602 = vmatpush1.bf16.msra.mxu0 0
    %1603 = vmatprep.subr.bf16.mxu0 0
    %1604 = vmatpush1.bf16.msra.mxu0 0
    %1605 = vmatprep.subr.bf16.mxu0 0
    %1606 = vmatpush1.bf16.msra.mxu0 0
    %1607 = vmatprep.subr.bf16.mxu0 0
    %1608 = vmatpush1.bf16.msra.mxu0 0
    %1609 = vmatprep.subr.bf16.mxu0 0
    %1610 = vmatpush1.bf16.msra.mxu0 0
    %1611 = vmatprep.subr.bf16.mxu0 0
    %1612 = vmatpush1.bf16.msra.mxu0 0
    %1613 = vmatprep.subr.bf16.mxu0 0
    %1614 = vmatpush1.bf16.msra.mxu0 0
    %1615 = vmatprep.subr.bf16.mxu0 0
    %1616 = vmatpush1.bf16.msra.mxu0 0
    %1617 = vmatprep.mubr.bf16.mxu0 0
    %1618 = vmatmul.mubr.bf16.gmra.mrb[0].mxu0 %v1524
    %v1619 = vpop.f32.mrb[0].mxu0
    %v1620 = vadd.f32 0.0, %v1619
    %v1621 = vpop.f32.mrb[0].mxu0
    %v1622 = vadd.f32 0.0, %v1621
    %v1623 = vpop.f32.mrb[0].mxu0
    %v1624 = vpop.f32.mrb[0].mxu0
    %1625 = vdwg.mxu0
    %1626 = vmatprep.subr.bf16.mxu0 %v1542
    %1627 = vmatpush1.bf16.msra.mxu0 %v1539
    %1628 = vmatprep.subr.bf16.mxu0 0
    %1629 = vmatpush1.bf16.msra.mxu0 0
    %1630 = vmatprep.subr.bf16.mxu0 0
    %1631 = vmatpush1.bf16.msra.mxu0 0
    %1632 = vmatprep.subr.bf16.mxu0 0
    %1633 = vmatpush1.bf16.msra.mxu0 0
    %1634 = vmatprep.subr.bf16.mxu0 0
    %1635 = vmatpush1.bf16.msra.mxu0 0
    %1636 = vmatprep.subr.bf16.mxu0 0
    %1637 = vmatpush1.bf16.msra.mxu0 0
    %1638 = vmatprep.subr.bf16.mxu0 0
    %1639 = vmatpush1.bf16.msra.mxu0 0
    %1640 = vmatprep.subr.bf16.mxu0 0
    %1641 = vmatpush1.bf16.msra.mxu0 0
    %1642 = vmatprep.subr.bf16.mxu0 0
    %1643 = vmatpush1.bf16.msra.mxu0 0
    %1644 = vmatprep.subr.bf16.mxu0 0
    %1645 = vmatpush1.bf16.msra.mxu0 0
    %1646 = vmatprep.subr.bf16.mxu0 0
    %1647 = vmatpush1.bf16.msra.mxu0 0
    %1648 = vmatprep.subr.bf16.mxu0 0
    %1649 = vmatpush1.bf16.msra.mxu0 0
    %1650 = vmatprep.subr.bf16.mxu0 0
    %1651 = vmatpush1.bf16.msra.mxu0 0
    %1652 = vmatprep.subr.bf16.mxu0 0
    %1653 = vmatpush1.bf16.msra.mxu0 0
    %1654 = vmatprep.subr.bf16.mxu0 0
    %1655 = vmatpush1.bf16.msra.mxu0 0
    %1656 = vmatprep.subr.bf16.mxu0 0
    %1657 = vmatpush1.bf16.msra.mxu0 0
    %1658 = vmatprep.mubr.bf16.mxu0 0
    %1659 = vmatmul.mubr.bf16.gmra.mrb[0].mxu0 %v1524
    %v1660 = vpop.f32.mrb[0].mxu0
    %v1661 = vadd.f32 0.0, %v1660
    %v1662 = vpop.f32.mrb[0].mxu0
    %v1663 = vadd.f32 0.0, %v1662
    %v1664 = vpop.f32.mrb[0].mxu0
    %v1665 = vpop.f32.mrb[0].mxu0
    %1666 = vdwg.mxu0
    %v1667 = vadd.f32 %v1494, %v1579
    %v1668 = vadd.f32 %v1495, %v1581
    %v1669 = vadd.f32 %v1496, %v1620
    %v1670 = vadd.f32 %v1497, %v1622
    %v1671 = vadd.f32 %v1498, %v1661
    %v1672 = vadd.f32 %v1499, %v1663
    %1674 = vset.pattern.permute.xlu0 0
    %1675 = vperm.xlu0 %1674, %v85
    %v1676 = vpop.permute.xlu0 %1675
    %v1678 = vadd.f32 %v1667, %v1676
    %v1679 = vadd.f32 %v1668, %v1676
    %v1680 = vadd.f32 %v1669, %v1676
    %v1681 = vadd.f32 %v1670, %v1676
    %v1682 = vadd.f32 %v1671, %v1676
    %v1683 = vadd.f32 %v1672, %v1676
    %v1685 = vlaneseq
    %v1686 = vshrl.u32 %v1685, 7
    %v1687 = vsub.s32 0, %v1686
    %v1688 = vrot.slane %v84, %v1687
    %v1689 = vlaneseq
    %v1690 = vshrl.u32 %v1689, 7
    %v1691 = vsub.s32 1, %v1690
    %v1692 = vrot.slane %v84, %v1691
    %v1693 = vlaneseq
    %v1694 = vshrl.u32 %v1693, 7
    %v1695 = vsub.s32 2, %v1694
    %v1696 = vrot.slane %v84, %v1695
    %v1697 = vlaneseq
    %v1698 = vshrl.u32 %v1697, 7
    %v1699 = vsub.s32 3, %v1698
    %v1700 = vrot.slane %v84, %v1699
    %v1701 = vlaneseq
    %v1702 = vshrl.u32 %v1701, 7
    %v1703 = vsub.s32 4, %v1702
    %v1704 = vrot.slane %v84, %v1703
    %v1705 = vlaneseq
    %v1706 = vshrl.u32 %v1705, 7
    %v1707 = vsub.s32 5, %v1706
    %v1708 = vrot.slane %v84, %v1707
    %v1715 = vmul.f32 %v1678, %v1688
    %v1716 = vmul.f32 %v1679, %v1692
    %v1717 = vmul.f32 %v1680, %v1696
    %v1718 = vmul.f32 %v1681, %v1700
    %v1719 = vmul.f32 %v1682, %v1704
    %v1720 = vmul.f32 %v1683, %v1708
    %v1721 = vadd.f32 %v1715, %v1716
    %v1722 = vadd.f32 %v1721, %v1717
    %v1723 = vadd.f32 %v1722, %v1718
    %v1724 = vadd.f32 %v1723, %v1719
    %v1725 = vadd.f32 %v1724, %v1720
    %1726 = vadd.xlane.f32.xlu0 %v1725
    %v1727 = vpop.xlane.xlu0 %1726
    %v1728 = vmul.f32 %v1727, 0.001953125
    %v1729 = vmul.f32 %v1715, %v1678
    %v1730 = vmul.f32 %v1716, %v1679
    %v1731 = vmul.f32 %v1717, %v1680
    %v1732 = vmul.f32 %v1718, %v1681
    %v1733 = vmul.f32 %v1719, %v1682
    %v1734 = vmul.f32 %v1720, %v1683
    %v1735 = vadd.f32 %v1729, %v1730
    %v1736 = vadd.f32 %v1735, %v1731
    %v1737 = vadd.f32 %v1736, %v1732
    %v1738 = vadd.f32 %v1737, %v1733
    %v1739 = vadd.f32 %v1738, %v1734
    %1740 = vadd.xlane.f32.xlu0 %v1739
    %v1741 = vpop.xlane.xlu0 %1740
    %v1742 = vmul.f32 %v1741, 0.001953125
    %v1743 = vmul.f32 %v1728, %v1728
    %v1744 = vsub.f32 %v1742, %v1743
    %v1745 = vsub.f32 %v1678, %v1728
    %v1746 = vsub.f32 %v1679, %v1728
    %v1747 = vsub.f32 %v1680, %v1728
    %v1748 = vsub.f32 %v1681, %v1728
    %v1749 = vsub.f32 %v1682, %v1728
    %v1750 = vsub.f32 %v1683, %v1728
    %v1751 = vadd.f32 %v1744, 1e-05
    %v1752 = vrsqrt.pop %v1751
    %v1753 = vmul.f32 %v1745, %v1752
    %v1754 = vmul.f32 %v1746, %v1752
    %v1755 = vmul.f32 %v1747, %v1752
    %v1756 = vmul.f32 %v1748, %v1752
    %v1757 = vmul.f32 %v1749, %v1752
    %v1758 = vmul.f32 %v1750, %v1752
    %1759 = vset.pattern.permute.xlu0 1
    %1760 = vperm.xlu0 %1759, %v85
    %v1761 = vpop.permute.xlu0 %1760
    %v1763 = vmul.f32 %v1753, %v1761
    %v1764 = vmul.f32 %v1754, %v1761
    %v1765 = vmul.f32 %v1755, %v1761
    %v1766 = vmul.f32 %v1756, %v1761
    %v1767 = vmul.f32 %v1757, %v1761
    %v1768 = vmul.f32 %v1758, %v1761
    %1769 = vset.pattern.permute.xlu0 2
    %1770 = vperm.xlu0 %1769, %v85
    %v1771 = vpop.permute.xlu0 %1770
    %v1773 = vadd.f32 %v1763, %v1771
    %v1774 = vadd.f32 %v1764, %v1771
    %v1775 = vadd.f32 %v1765, %v1771
    %v1776 = vadd.f32 %v1766, %v1771
    %v1777 = vadd.f32 %v1767, %v1771
    %v1778 = vadd.f32 %v1768, %v1771
    %v1779 = vmul.f32 %v1773, 0.70710677
    %v1780 = vmul.f32 %v1774, 0.70710677
    %v1781 = vmul.f32 %v1775, 0.70710677
    %v1782 = vmul.f32 %v1776, 0.70710677
    %v1783 = vmul.f32 %v1777, 0.70710677
    %v1784 = vmul.f32 %v1778, 0.70710677
    %vm1785 = vcmp.ge.f32.partialorder %v1779, 0.0
    %vm1786 = vcmp.ge.f32.partialorder %v1780, 0.0
    %vm1787 = vcmp.ge.f32.partialorder %v1781, 0.0
    %vm1788 = vcmp.ge.f32.partialorder %v1782, 0.0
    %vm1789 = vcmp.ge.f32.partialorder %v1783, 0.0
    %vm1790 = vcmp.ge.f32.partialorder %v1784, 0.0
    %v1791 = vsel %vm1785, 1.0, -1.0
    %v1792 = vsel %vm1786, 1.0, -1.0
    %v1793 = vsel %vm1787, 1.0, -1.0
    %v1794 = vsel %vm1788, 1.0, -1.0
    %v1795 = vsel %vm1789, 1.0, -1.0
    %v1796 = vsel %vm1790, 1.0, -1.0
    %v1797 = vand.u32 2147483647, %v1779
    %v1798 = vand.u32 2147483647, %v1780
    %v1799 = vand.u32 2147483647, %v1781
    %v1800 = vand.u32 2147483647, %v1782
    %v1801 = vand.u32 2147483647, %v1783
    %v1802 = vand.u32 2147483647, %v1784
    %v1803 = vmul.f32 %v1797, 0.3275911
    %v1804 = vmul.f32 %v1798, 0.3275911
    %v1805 = vmul.f32 %v1799, 0.3275911
    %v1806 = vmul.f32 %v1800, 0.3275911
    %v1807 = vmul.f32 %v1801, 0.3275911
    %v1808 = vmul.f32 %v1802, 0.3275911
    %v1809 = vadd.f32 %v1803, 1.0
    %v1810 = vadd.f32 %v1804, 1.0
    %v1811 = vadd.f32 %v1805, 1.0
    %v1812 = vadd.f32 %v1806, 1.0
    %v1813 = vadd.f32 %v1807, 1.0
    %v1814 = vadd.f32 %v1808, 1.0
    %v1815 = vrcp.pop %v1809
    %v1816 = vmul.f32 1.0, %v1815
    %v1817 = vrcp.pop %v1810
    %v1818 = vmul.f32 1.0, %v1817
    %v1819 = vrcp.pop %v1811
    %v1820 = vmul.f32 1.0, %v1819
    %v1821 = vrcp.pop %v1812
    %v1822 = vmul.f32 1.0, %v1821
    %v1823 = vrcp.pop %v1813
    %v1824 = vmul.f32 1.0, %v1823
    %v1825 = vrcp.pop %v1814
    %v1826 = vmul.f32 1.0, %v1825
    %v1827 = vmul.f32 %v1816, 1.0614054
    %v1828 = vmul.f32 %v1818, 1.0614054
    %v1829 = vmul.f32 %v1820, 1.0614054
    %v1830 = vmul.f32 %v1822, 1.0614054
    %v1831 = vmul.f32 %v1824, 1.0614054
    %v1832 = vmul.f32 %v1826, 1.0614054
    %v1833 = vadd.f32 %v1827, -1.4531521
    %v1834 = vadd.f32 %v1828, -1.4531521
    %v1835 = vadd.f32 %v1829, -1.4531521
    %v1836 = vadd.f32 %v1830, -1.4531521
    %v1837 = vadd.f32 %v1831, -1.4531521
    %v1838 = vadd.f32 %v1832, -1.4531521
    %v1839 = vmul.f32 %v1833, %v1816
    %v1840 = vmul.f32 %v1834, %v1818
    %v1841 = vmul.f32 %v1835, %v1820
    %v1842 = vmul.f32 %v1836, %v1822
    %v1843 = vmul.f32 %v1837, %v1824
    %v1844 = vmul.f32 %v1838, %v1826
    %v1845 = vadd.f32 %v1839, 1.4214138
    %v1846 = vadd.f32 %v1840, 1.4214138
    %v1847 = vadd.f32 %v1841, 1.4214138
    %v1848 = vadd.f32 %v1842, 1.4214138
    %v1849 = vadd.f32 %v1843, 1.4214138
    %v1850 = vadd.f32 %v1844, 1.4214138
    %v1851 = vmul.f32 %v1845, %v1816
    %v1852 = vmul.f32 %v1846, %v1818
    %v1853 = vmul.f32 %v1847, %v1820
    %v1854 = vmul.f32 %v1848, %v1822
    %v1855 = vmul.f32 %v1849, %v1824
    %v1856 = vmul.f32 %v1850, %v1826
    %v1857 = vadd.f32 %v1851, -0.28449672
    %v1858 = vadd.f32 %v1852, -0.28449672
    %v1859 = vadd.f32 %v1853, -0.28449672
    %v1860 = vadd.f32 %v1854, -0.28449672
    %v1861 = vadd.f32 %v1855, -0.28449672
    %v1862 = vadd.f32 %v1856, -0.28449672
    %v1863 = vmul.f32 %v1857, %v1816
    %v1864 = vmul.f32 %v1858, %v1818
    %v1865 = vmul.f32 %v1859, %v1820
    %v1866 = vmul.f32 %v1860, %v1822
    %v1867 = vmul.f32 %v1861, %v1824
    %v1868 = vmul.f32 %v1862, %v1826
    %v1869 = vadd.f32 %v1863, 0.2548296
    %v1870 = vadd.f32 %v1864, 0.2548296
    %v1871 = vadd.f32 %v1865, 0.2548296
    %v1872 = vadd.f32 %v1866, 0.2548296
    %v1873 = vadd.f32 %v1867, 0.2548296
    %v1874 = vadd.f32 %v1868, 0.2548296
    %v1875 = vmul.f32 %v1869, %v1816
    %v1876 = vmul.f32 %v1870, %v1818
    %v1877 = vmul.f32 %v1871, %v1820
    %v1878 = vmul.f32 %v1872, %v1822
    %v1879 = vmul.f32 %v1873, %v1824
    %v1880 = vmul.f32 %v1874, %v1826
    %v1881 = vsub.f32 0.0, %v1797
    %v1882 = vsub.f32 0.0, %v1798
    %v1883 = vsub.f32 0.0, %v1799
    %v1884 = vsub.f32 0.0, %v1800
    %v1885 = vsub.f32 0.0, %v1801
    %v1886 = vsub.f32 0.0, %v1802
    %v1887 = vmul.f32 %v1881, %v1797
    %v1888 = vmul.f32 %v1882, %v1798
    %v1889 = vmul.f32 %v1883, %v1799
    %v1890 = vmul.f32 %v1884, %v1800
    %v1891 = vmul.f32 %v1885, %v1801
    %v1892 = vmul.f32 %v1886, %v1802
    %v1893 = vmul.f32 %v1887, 1.442695
    %v1894 = vpow.pop %v1893
    %v1895 = vmul.f32 %v1888, 1.442695
    %v1896 = vpow.pop %v1895
    %v1897 = vmul.f32 %v1889, 1.442695
    %v1898 = vpow.pop %v1897
    %v1899 = vmul.f32 %v1890, 1.442695
    %v1900 = vpow.pop %v1899
    %v1901 = vmul.f32 %v1891, 1.442695
    %v1902 = vpow.pop %v1901
    %v1903 = vmul.f32 %v1892, 1.442695
    %v1904 = vpow.pop %v1903
    %v1905 = vmul.f32 %v1875, %v1894
    %v1906 = vmul.f32 %v1876, %v1896
    %v1907 = vmul.f32 %v1877, %v1898
    %v1908 = vmul.f32 %v1878, %v1900
    %v1909 = vmul.f32 %v1879, %v1902
    %v1910 = vmul.f32 %v1880, %v1904
    %v1911 = vsub.f32 1.0, %v1905
    %v1912 = vsub.f32 1.0, %v1906
    %v1913 = vsub.f32 1.0, %v1907
    %v1914 = vsub.f32 1.0, %v1908
    %v1915 = vsub.f32 1.0, %v1909
    %v1916 = vsub.f32 1.0, %v1910
    %v1917 = vmul.f32 %v1791, %v1911
    %v1918 = vmul.f32 %v1792, %v1912
    %v1919 = vmul.f32 %v1793, %v1913
    %v1920 = vmul.f32 %v1794, %v1914
    %v1921 = vmul.f32 %v1795, %v1915
    %v1922 = vmul.f32 %v1796, %v1916
    %v1923 = vmul.f32 %v1773, 0.5
    %v1924 = vmul.f32 %v1774, 0.5
    %v1925 = vmul.f32 %v1775, 0.5
    %v1926 = vmul.f32 %v1776, 0.5
    %v1927 = vmul.f32 %v1777, 0.5
    %v1928 = vmul.f32 %v1778, 0.5
    %v1929 = vadd.f32 %v1917, 1.0
    %v1930 = vadd.f32 %v1918, 1.0
    %v1931 = vadd.f32 %v1919, 1.0
    %v1932 = vadd.f32 %v1920, 1.0
    %v1933 = vadd.f32 %v1921, 1.0
    %v1934 = vadd.f32 %v1922, 1.0
    %v1935 = vmul.f32 %v1923, %v1929
    %v1936 = vmul.f32 %v1924, %v1930
    %v1937 = vmul.f32 %v1925, %v1931
    %v1938 = vmul.f32 %v1926, %v1932
    %v1939 = vmul.f32 %v1927, %v1933
    %v1940 = vmul.f32 %v1928, %v1934
    %1941 = vst [vmem:[#allocation2] sm:$0xf] 0
    %1942 = vst [vmem:[#allocation2 + $0x1c] sm:$0xf] 0
    %v1943 = vmul.f32 %v1935, %v1688
    %v1944 = vmul.f32 %v1936, %v1692
    %v1945 = vmul.f32 %v1937, %v1696
    %v1946 = vmul.f32 %v1938, %v1700
    %v1947 = vmul.f32 %v1939, %v1704
    %v1948 = vmul.f32 %v1940, %v1708
    %v1949 = vpack.c.bf16 %v1943, %v1943
    %v1950 = vpack.c.bf16 %v1944, %v1944
    %v1951 = vpack.c.bf16 %v1945, %v1945
    %v1952 = vpack.c.bf16 %v1946, %v1946
    %v1953 = vpack.c.bf16 %v1947, %v1947
    %v1954 = vpack.c.bf16 %v1948, %v1948
    %v1961 = vunpack.c.l.b16 %v1949
    %v1962 = vunpack.c.l.b16 %v1950
    %v1963 = vunpack.c.l.b16 %v1951
    %v1964 = vunpack.c.l.b16 %v1952
    %v1965 = vunpack.c.l.b16 %v1953
    %v1966 = vunpack.c.l.b16 %v1954
    %v1967 = vpack.c.b16 %v1962, %v1961
    %v1968 = vpack.c.b16 %v1964, %v1963
    %v1969 = vpack.c.b16 %v1966, %v1965
    %1973 = vst [vmem:[#allocation2 + $0x4] sm:$0xff] %v1967
    %1974 = vst [vmem:[#allocation2 + $0xc] sm:$0xff] %v1968
    %1975 = vst [vmem:[#allocation2 + $0x14] sm:$0xff] %v1969
    %v1976 = vld [vmem:[#allocation9] sm:$0xf]
    %v1977 = vld [vmem:[#allocation2] sm:$0xff]
    %v1978 = vld [vmem:[#allocation2 + $0x8] sm:$0xff]
    %v1979 = vld [vmem:[#allocation2 + $0x10] sm:$0xff]
    %v1980 = vld [vmem:[#allocation2 + $0x18] sm:$0xf]
    %s1981 = scalar_lea.vmem [#allocation9], 4
    %v1982 = vld [vmem:[%s1981] sm:$0xf]
    %v1987 = vunpack.c.l.b16 %v1977
    %v1988 = vunpack.c.h.b16 %v1977
    %v1989 = vunpack.c.l.b16 %v1978
    %v1990 = vunpack.c.h.b16 %v1978
    %v1991 = vunpack.c.l.b16 %v1979
    %v1992 = vunpack.c.h.b16 %v1979
    %v1993 = vunpack.c.l.b16 %v1980
    %v1994 = vpack.c.b16 %v1987, %v1987
    %v1995 = vpack.c.b16 %v1988, %v1988
    %v1996 = vpack.c.b16 %v1989, %v1989
    %v1997 = vpack.c.b16 %v1990, %v1990
    %v1998 = vpack.c.b16 %v1991, %v1991
    %v1999 = vpack.c.b16 %v1992, %v1992
    %v2000 = vpack.c.b16 %v1993, %v1993
    %2001 = vrot.lane.b32.xlu0 %v1994, 18
    %v2002 = vpop.permute.xlu0 %2001
    %2003 = vrot.lane.b32.xlu0 %v1995, 18
    %v2004 = vpop.permute.xlu0 %2003
    %2005 = vrot.lane.b32.xlu0 %v1996, 18
    %v2006 = vpop.permute.xlu0 %2005
    %2007 = vrot.lane.b32.xlu0 %v1997, 18
    %v2008 = vpop.permute.xlu0 %2007
    %2009 = vrot.lane.b32.xlu0 %v1998, 18
    %v2010 = vpop.permute.xlu0 %2009
    %2011 = vrot.lane.b32.xlu0 %v1999, 18
    %v2012 = vpop.permute.xlu0 %2011
    %2013 = vrot.lane.b32.xlu0 %v2000, 18
    %v2014 = vpop.permute.xlu0 %2013
    %v2015 = vsel %vm125, %v2002, %v2004
    %v2016 = vsel %vm125, %v2004, %v2006
    %v2017 = vsel %vm125, %v2006, %v2008
    %v2018 = vsel %vm125, %v2008, %v2010
    %v2019 = vsel %vm125, %v2010, %v2012
    %v2020 = vsel %vm125, %v2012, %v2014
    %v2022 = vsel %vm132, %v1982, 0
    %v2025 = vsel %vm136, %v2015, 0
    %v2028 = vsel %vm136, %v2016, 0
    %v2031 = vsel %vm136, %v2017, 0
    %v2034 = vsel %vm136, %v2018, 0
    %v2037 = vsel %vm136, %v2019, 0
    %v2040 = vsel %vm136, %v2020, 0
    %2042 = vmatprep.subr.bf16.mxu0 %v2028
    %2043 = vmatpush1.bf16.msra.mxu0 %v2025
    %2044 = vmatprep.subr.bf16.mxu0 0
    %2045 = vmatpush1.bf16.msra.mxu0 0
    %2046 = vmatprep.subr.bf16.mxu0 0
    %2047 = vmatpush1.bf16.msra.mxu0 0
    %2048 = vmatprep.subr.bf16.mxu0 0
    %2049 = vmatpush1.bf16.msra.mxu0 0
    %2050 = vmatprep.subr.bf16.mxu0 0
    %2051 = vmatpush1.bf16.msra.mxu0 0
    %2052 = vmatprep.subr.bf16.mxu0 0
    %2053 = vmatpush1.bf16.msra.mxu0 0
    %2054 = vmatprep.subr.bf16.mxu0 0
    %2055 = vmatpush1.bf16.msra.mxu0 0
    %2056 = vmatprep.subr.bf16.mxu0 0
    %2057 = vmatpush1.bf16.msra.mxu0 0
    %2058 = vmatprep.subr.bf16.mxu0 0
    %2059 = vmatpush1.bf16.msra.mxu0 0
    %2060 = vmatprep.subr.bf16.mxu0 0
    %2061 = vmatpush1.bf16.msra.mxu0 0
    %2062 = vmatprep.subr.bf16.mxu0 0
    %2063 = vmatpush1.bf16.msra.mxu0 0
    %2064 = vmatprep.subr.bf16.mxu0 0
    %2065 = vmatpush1.bf16.msra.mxu0 0
    %2066 = vmatprep.subr.bf16.mxu0 0
    %2067 = vmatpush1.bf16.msra.mxu0 0
    %2068 = vmatprep.subr.bf16.mxu0 0
    %2069 = vmatpush1.bf16.msra.mxu0 0
    %2070 = vmatprep.subr.bf16.mxu0 0
    %2071 = vmatpush1.bf16.msra.mxu0 0
    %2072 = vmatprep.subr.bf16.mxu0 0
    %2073 = vmatpush1.bf16.msra.mxu0 0
    %2074 = vmatprep.mubr.bf16.mxu0 0
    %2075 = vmatmul.mubr.bf16.gmra.mrb[0].mxu0 %v2022
    %v2076 = vpop.f32.mrb[0].mxu0
    %v2077 = vadd.f32 0.0, %v2076
    %v2078 = vpop.f32.mrb[0].mxu0
    %v2079 = vadd.f32 0.0, %v2078
    %v2080 = vpop.f32.mrb[0].mxu0
    %v2081 = vpop.f32.mrb[0].mxu0
    %2082 = vdwg.mxu0
    %2083 = vmatprep.subr.bf16.mxu0 %v2034
    %2084 = vmatpush1.bf16.msra.mxu0 %v2031
    %2085 = vmatprep.subr.bf16.mxu0 0
    %2086 = vmatpush1.bf16.msra.mxu0 0
    %2087 = vmatprep.subr.bf16.mxu0 0
    %2088 = vmatpush1.bf16.msra.mxu0 0
    %2089 = vmatprep.subr.bf16.mxu0 0
    %2090 = vmatpush1.bf16.msra.mxu0 0
    %2091 = vmatprep.subr.bf16.mxu0 0
    %2092 = vmatpush1.bf16.msra.mxu0 0
    %2093 = vmatprep.subr.bf16.mxu0 0
    %2094 = vmatpush1.bf16.msra.mxu0 0
    %2095 = vmatprep.subr.bf16.mxu0 0
    %2096 = vmatpush1.bf16.msra.mxu0 0
    %2097 = vmatprep.subr.bf16.mxu0 0
    %2098 = vmatpush1.bf16.msra.mxu0 0
    %2099 = vmatprep.subr.bf16.mxu0 0
    %2100 = vmatpush1.bf16.msra.mxu0 0
    %2101 = vmatprep.subr.bf16.mxu0 0
    %2102 = vmatpush1.bf16.msra.mxu0 0
    %2103 = vmatprep.subr.bf16.mxu0 0
    %2104 = vmatpush1.bf16.msra.mxu0 0
    %2105 = vmatprep.subr.bf16.mxu0 0
    %2106 = vmatpush1.bf16.msra.mxu0 0
    %2107 = vmatprep.subr.bf16.mxu0 0
    %2108 = vmatpush1.bf16.msra.mxu0 0
    %2109 = vmatprep.subr.bf16.mxu0 0
    %2110 = vmatpush1.bf16.msra.mxu0 0
    %2111 = vmatprep.subr.bf16.mxu0 0
    %2112 = vmatpush1.bf16.msra.mxu0 0
    %2113 = vmatprep.subr.bf16.mxu0 0
    %2114 = vmatpush1.bf16.msra.mxu0 0
    %2115 = vmatprep.mubr.bf16.mxu0 0
    %2116 = vmatmul.mubr.bf16.gmra.mrb[0].mxu0 %v2022
    %v2117 = vpop.f32.mrb[0].mxu0
    %v2118 = vadd.f32 0.0, %v2117
    %v2119 = vpop.f32.mrb[0].mxu0
    %v2120 = vadd.f32 0.0, %v2119
    %v2121 = vpop.f32.mrb[0].mxu0
    %v2122 = vpop.f32.mrb[0].mxu0
    %2123 = vdwg.mxu0
    %2124 = vmatprep.subr.bf16.mxu0 %v2040
    %2125 = vmatpush1.bf16.msra.mxu0 %v2037
    %2126 = vmatprep.subr.bf16.mxu0 0
    %2127 = vmatpush1.bf16.msra.mxu0 0
    %2128 = vmatprep.subr.bf16.mxu0 0
    %2129 = vmatpush1.bf16.msra.mxu0 0
    %2130 = vmatprep.subr.bf16.mxu0 0
    %2131 = vmatpush1.bf16.msra.mxu0 0
    %2132 = vmatprep.subr.bf16.mxu0 0
    %2133 = vmatpush1.bf16.msra.mxu0 0
    %2134 = vmatprep.subr.bf16.mxu0 0
    %2135 = vmatpush1.bf16.msra.mxu0 0
    %2136 = vmatprep.subr.bf16.mxu0 0
    %2137 = vmatpush1.bf16.msra.mxu0 0
    %2138 = vmatprep.subr.bf16.mxu0 0
    %2139 = vmatpush1.bf16.msra.mxu0 0
    %2140 = vmatprep.subr.bf16.mxu0 0
    %2141 = vmatpush1.bf16.msra.mxu0 0
    %2142 = vmatprep.subr.bf16.mxu0 0
    %2143 = vmatpush1.bf16.msra.mxu0 0
    %2144 = vmatprep.subr.bf16.mxu0 0
    %2145 = vmatpush1.bf16.msra.mxu0 0
    %2146 = vmatprep.subr.bf16.mxu0 0
    %2147 = vmatpush1.bf16.msra.mxu0 0
    %2148 = vmatprep.subr.bf16.mxu0 0
    %2149 = vmatpush1.bf16.msra.mxu0 0
    %2150 = vmatprep.subr.bf16.mxu0 0
    %2151 = vmatpush1.bf16.msra.mxu0 0
    %2152 = vmatprep.subr.bf16.mxu0 0
    %2153 = vmatpush1.bf16.msra.mxu0 0
    %2154 = vmatprep.subr.bf16.mxu0 0
    %2155 = vmatpush1.bf16.msra.mxu0 0
    %2156 = vmatprep.mubr.bf16.mxu0 0
    %2157 = vmatmul.mubr.bf16.gmra.mrb[0].mxu0 %v2022
    %v2158 = vpop.f32.mrb[0].mxu0
    %v2159 = vadd.f32 0.0, %v2158
    %v2160 = vpop.f32.mrb[0].mxu0
    %v2161 = vadd.f32 0.0, %v2160
    %v2162 = vpop.f32.mrb[0].mxu0
    %v2163 = vpop.f32.mrb[0].mxu0
    %2164 = vdwg.mxu0
    %2165 = vrot.lane.b32.xlu0 %v1994, 19
    %v2166 = vpop.permute.xlu0 %2165
    %2167 = vrot.lane.b32.xlu0 %v1995, 19
    %v2168 = vpop.permute.xlu0 %2167
    %2169 = vrot.lane.b32.xlu0 %v1996, 19
    %v2170 = vpop.permute.xlu0 %2169
    %2171 = vrot.lane.b32.xlu0 %v1997, 19
    %v2172 = vpop.permute.xlu0 %2171
    %2173 = vrot.lane.b32.xlu0 %v1998, 19
    %v2174 = vpop.permute.xlu0 %2173
    %2175 = vrot.lane.b32.xlu0 %v1999, 19
    %v2176 = vpop.permute.xlu0 %2175
    %2177 = vrot.lane.b32.xlu0 %v2000, 19
    %v2178 = vpop.permute.xlu0 %2177
    %v2179 = vsel %vm292, %v2166, %v2168
    %v2180 = vsel %vm292, %v2168, %v2170
    %v2181 = vsel %vm292, %v2170, %v2172
    %v2182 = vsel %vm292, %v2172, %v2174
    %v2183 = vsel %vm292, %v2174, %v2176
    %v2184 = vsel %vm292, %v2176, %v2178
    %v2186 = vsel %vm132, %v1976, 0
    %v2189 = vsel %vm136, %v2179, 0
    %v2192 = vsel %vm136, %v2180, 0
    %v2195 = vsel %vm136, %v2181, 0
    %v2198 = vsel %vm136, %v2182, 0
    %v2201 = vsel %vm136, %v2183, 0
    %v2204 = vsel %vm136, %v2184, 0
    %2206 = vmatprep.subr.bf16.mxu0 %v2192
    %2207 = vmatpush1.bf16.msra.mxu0 %v2189
    %2208 = vmatprep.subr.bf16.mxu0 0
    %2209 = vmatpush1.bf16.msra.mxu0 0
    %2210 = vmatprep.subr.bf16.mxu0 0
    %2211 = vmatpush1.bf16.msra.mxu0 0
    %2212 = vmatprep.subr.bf16.mxu0 0
    %2213 = vmatpush1.bf16.msra.mxu0 0
    %2214 = vmatprep.subr.bf16.mxu0 0
    %2215 = vmatpush1.bf16.msra.mxu0 0
    %2216 = vmatprep.subr.bf16.mxu0 0
    %2217 = vmatpush1.bf16.msra.mxu0 0
    %2218 = vmatprep.subr.bf16.mxu0 0
    %2219 = vmatpush1.bf16.msra.mxu0 0
    %2220 = vmatprep.subr.bf16.mxu0 0
    %2221 = vmatpush1.bf16.msra.mxu0 0
    %2222 = vmatprep.subr.bf16.mxu0 0
    %2223 = vmatpush1.bf16.msra.mxu0 0
    %2224 = vmatprep.subr.bf16.mxu0 0
    %2225 = vmatpush1.bf16.msra.mxu0 0
    %2226 = vmatprep.subr.bf16.mxu0 0
    %2227 = vmatpush1.bf16.msra.mxu0 0
    %2228 = vmatprep.subr.bf16.mxu0 0
    %2229 = vmatpush1.bf16.msra.mxu0 0
    %2230 = vmatprep.subr.bf16.mxu0 0
    %2231 = vmatpush1.bf16.msra.mxu0 0
    %2232 = vmatprep.subr.bf16.mxu0 0
    %2233 = vmatpush1.bf16.msra.mxu0 0
    %2234 = vmatprep.subr.bf16.mxu0 0
    %2235 = vmatpush1.bf16.msra.mxu0 0
    %2236 = vmatprep.subr.bf16.mxu0 0
    %2237 = vmatpush1.bf16.msra.mxu0 0
    %2238 = vmatprep.mubr.bf16.mxu0 0
    %2239 = vmatmul.mubr.bf16.gmra.mrb[0].mxu0 %v2186
    %v2240 = vpop.f32.mrb[0].mxu0
    %v2241 = vadd.f32 %v2077, %v2240
    %v2242 = vpop.f32.mrb[0].mxu0
    %v2243 = vadd.f32 %v2079, %v2242
    %v2244 = vpop.f32.mrb[0].mxu0
    %v2245 = vpop.f32.mrb[0].mxu0
    %2246 = vdwg.mxu0
    %2247 = vmatprep.subr.bf16.mxu0 %v2198
    %2248 = vmatpush1.bf16.msra.mxu0 %v2195
    %2249 = vmatprep.subr.bf16.mxu0 0
    %2250 = vmatpush1.bf16.msra.mxu0 0
    %2251 = vmatprep.subr.bf16.mxu0 0
    %2252 = vmatpush1.bf16.msra.mxu0 0
    %2253 = vmatprep.subr.bf16.mxu0 0
    %2254 = vmatpush1.bf16.msra.mxu0 0
    %2255 = vmatprep.subr.bf16.mxu0 0
    %2256 = vmatpush1.bf16.msra.mxu0 0
    %2257 = vmatprep.subr.bf16.mxu0 0
    %2258 = vmatpush1.bf16.msra.mxu0 0
    %2259 = vmatprep.subr.bf16.mxu0 0
    %2260 = vmatpush1.bf16.msra.mxu0 0
    %2261 = vmatprep.subr.bf16.mxu0 0
    %2262 = vmatpush1.bf16.msra.mxu0 0
    %2263 = vmatprep.subr.bf16.mxu0 0
    %2264 = vmatpush1.bf16.msra.mxu0 0
    %2265 = vmatprep.subr.bf16.mxu0 0
    %2266 = vmatpush1.bf16.msra.mxu0 0
    %2267 = vmatprep.subr.bf16.mxu0 0
    %2268 = vmatpush1.bf16.msra.mxu0 0
    %2269 = vmatprep.subr.bf16.mxu0 0
    %2270 = vmatpush1.bf16.msra.mxu0 0
    %2271 = vmatprep.subr.bf16.mxu0 0
    %2272 = vmatpush1.bf16.msra.mxu0 0
    %2273 = vmatprep.subr.bf16.mxu0 0
    %2274 = vmatpush1.bf16.msra.mxu0 0
    %2275 = vmatprep.subr.bf16.mxu0 0
    %2276 = vmatpush1.bf16.msra.mxu0 0
    %2277 = vmatprep.subr.bf16.mxu0 0
    %2278 = vmatpush1.bf16.msra.mxu0 0
    %2279 = vmatprep.mubr.bf16.mxu0 0
    %2280 = vmatmul.mubr.bf16.gmra.mrb[0].mxu0 %v2186
    %v2281 = vpop.f32.mrb[0].mxu0
    %v2282 = vadd.f32 %v2118, %v2281
    %v2283 = vpop.f32.mrb[0].mxu0
    %v2284 = vadd.f32 %v2120, %v2283
    %v2285 = vpop.f32.mrb[0].mxu0
    %v2286 = vpop.f32.mrb[0].mxu0
    %2287 = vdwg.mxu0
    %2288 = vmatprep.subr.bf16.mxu0 %v2204
    %2289 = vmatpush1.bf16.msra.mxu0 %v2201
    %2290 = vmatprep.subr.bf16.mxu0 0
    %2291 = vmatpush1.bf16.msra.mxu0 0
    %2292 = vmatprep.subr.bf16.mxu0 0
    %2293 = vmatpush1.bf16.msra.mxu0 0
    %2294 = vmatprep.subr.bf16.mxu0 0
    %2295 = vmatpush1.bf16.msra.mxu0 0
    %2296 = vmatprep.subr.bf16.mxu0 0
    %2297 = vmatpush1.bf16.msra.mxu0 0
    %2298 = vmatprep.subr.bf16.mxu0 0
    %2299 = vmatpush1.bf16.msra.mxu0 0
    %2300 = vmatprep.subr.bf16.mxu0 0
    %2301 = vmatpush1.bf16.msra.mxu0 0
    %2302 = vmatprep.subr.bf16.mxu0 0
    %2303 = vmatpush1.bf16.msra.mxu0 0
    %2304 = vmatprep.subr.bf16.mxu0 0
    %2305 = vmatpush1.bf16.msra.mxu0 0
    %2306 = vmatprep.subr.bf16.mxu0 0
    %2307 = vmatpush1.bf16.msra.mxu0 0
    %2308 = vmatprep.subr.bf16.mxu0 0
    %2309 = vmatpush1.bf16.msra.mxu0 0
    %2310 = vmatprep.subr.bf16.mxu0 0
    %2311 = vmatpush1.bf16.msra.mxu0 0
    %2312 = vmatprep.subr.bf16.mxu0 0
    %2313 = vmatpush1.bf16.msra.mxu0 0
    %2314 = vmatprep.subr.bf16.mxu0 0
    %2315 = vmatpush1.bf16.msra.mxu0 0
    %2316 = vmatprep.subr.bf16.mxu0 0
    %2317 = vmatpush1.bf16.msra.mxu0 0
    %2318 = vmatprep.subr.bf16.mxu0 0
    %2319 = vmatpush1.bf16.msra.mxu0 0
    %2320 = vmatprep.mubr.bf16.mxu0 0
    %2321 = vmatmul.mubr.bf16.gmra.mrb[0].mxu0 %v2186
    %v2322 = vpop.f32.mrb[0].mxu0
    %v2323 = vadd.f32 %v2159, %v2322
    %v2324 = vpop.f32.mrb[0].mxu0
    %v2325 = vadd.f32 %v2161, %v2324
    %v2326 = vpop.f32.mrb[0].mxu0
    %v2327 = vpop.f32.mrb[0].mxu0
    %2328 = vdwg.mxu0
    %s2329 = scalar_lea.vmem [#allocation9], 8
    %v2330 = vld [vmem:[%s2329] sm:$0xf]
    %2331 = vrot.lane.b32.xlu0 %v1994, 17
    %v2332 = vpop.permute.xlu0 %2331
    %2333 = vrot.lane.b32.xlu0 %v1995, 17
    %v2334 = vpop.permute.xlu0 %2333
    %2335 = vrot.lane.b32.xlu0 %v1996, 17
    %v2336 = vpop.permute.xlu0 %2335
    %2337 = vrot.lane.b32.xlu0 %v1997, 17
    %v2338 = vpop.permute.xlu0 %2337
    %2339 = vrot.lane.b32.xlu0 %v1998, 17
    %v2340 = vpop.permute.xlu0 %2339
    %2341 = vrot.lane.b32.xlu0 %v1999, 17
    %v2342 = vpop.permute.xlu0 %2341
    %2343 = vrot.lane.b32.xlu0 %v2000, 17
    %v2344 = vpop.permute.xlu0 %2343
    %v2345 = vsel %vm459, %v2332, %v2334
    %v2346 = vsel %vm459, %v2334, %v2336
    %v2347 = vsel %vm459, %v2336, %v2338
    %v2348 = vsel %vm459, %v2338, %v2340
    %v2349 = vsel %vm459, %v2340, %v2342
    %v2350 = vsel %vm459, %v2342, %v2344
    %v2352 = vsel %vm132, %v2330, 0
    %v2355 = vsel %vm136, %v2345, 0
    %v2358 = vsel %vm136, %v2346, 0
    %v2361 = vsel %vm136, %v2347, 0
    %v2364 = vsel %vm136, %v2348, 0
    %v2367 = vsel %vm136, %v2349, 0
    %v2370 = vsel %vm136, %v2350, 0
    %2372 = vmatprep.subr.bf16.mxu0 %v2358
    %2373 = vmatpush1.bf16.msra.mxu0 %v2355
    %2374 = vmatprep.subr.bf16.mxu0 0
    %2375 = vmatpush1.bf16.msra.mxu0 0
    %2376 = vmatprep.subr.bf16.mxu0 0
    %2377 = vmatpush1.bf16.msra.mxu0 0
    %2378 = vmatprep.subr.bf16.mxu0 0
    %2379 = vmatpush1.bf16.msra.mxu0 0
    %2380 = vmatprep.subr.bf16.mxu0 0
    %2381 = vmatpush1.bf16.msra.mxu0 0
    %2382 = vmatprep.subr.bf16.mxu0 0
    %2383 = vmatpush1.bf16.msra.mxu0 0
    %2384 = vmatprep.subr.bf16.mxu0 0
    %2385 = vmatpush1.bf16.msra.mxu0 0
    %2386 = vmatprep.subr.bf16.mxu0 0
    %2387 = vmatpush1.bf16.msra.mxu0 0
    %2388 = vmatprep.subr.bf16.mxu0 0
    %2389 = vmatpush1.bf16.msra.mxu0 0
    %2390 = vmatprep.subr.bf16.mxu0 0
    %2391 = vmatpush1.bf16.msra.mxu0 0
    %2392 = vmatprep.subr.bf16.mxu0 0
    %2393 = vmatpush1.bf16.msra.mxu0 0
    %2394 = vmatprep.subr.bf16.mxu0 0
    %2395 = vmatpush1.bf16.msra.mxu0 0
    %2396 = vmatprep.subr.bf16.mxu0 0
    %2397 = vmatpush1.bf16.msra.mxu0 0
    %2398 = vmatprep.subr.bf16.mxu0 0
    %2399 = vmatpush1.bf16.msra.mxu0 0
    %2400 = vmatprep.subr.bf16.mxu0 0
    %2401 = vmatpush1.bf16.msra.mxu0 0
    %2402 = vmatprep.subr.bf16.mxu0 0
    %2403 = vmatpush1.bf16.msra.mxu0 0
    %2404 = vmatprep.mubr.bf16.mxu0 0
    %2405 = vmatmul.mubr.bf16.gmra.mrb[0].mxu0 %v2352
    %v2406 = vpop.f32.mrb[0].mxu0
    %v2407 = vadd.f32 0.0, %v2406
    %v2408 = vpop.f32.mrb[0].mxu0
    %v2409 = vadd.f32 0.0, %v2408
    %v2410 = vpop.f32.mrb[0].mxu0
    %v2411 = vpop.f32.mrb[0].mxu0
    %2412 = vdwg.mxu0
    %2413 = vmatprep.subr.bf16.mxu0 %v2364
    %2414 = vmatpush1.bf16.msra.mxu0 %v2361
    %2415 = vmatprep.subr.bf16.mxu0 0
    %2416 = vmatpush1.bf16.msra.mxu0 0
    %2417 = vmatprep.subr.bf16.mxu0 0
    %2418 = vmatpush1.bf16.msra.mxu0 0
    %2419 = vmatprep.subr.bf16.mxu0 0
    %2420 = vmatpush1.bf16.msra.mxu0 0
    %2421 = vmatprep.subr.bf16.mxu0 0
    %2422 = vmatpush1.bf16.msra.mxu0 0
    %2423 = vmatprep.subr.bf16.mxu0 0
    %2424 = vmatpush1.bf16.msra.mxu0 0
    %2425 = vmatprep.subr.bf16.mxu0 0
    %2426 = vmatpush1.bf16.msra.mxu0 0
    %2427 = vmatprep.subr.bf16.mxu0 0
    %2428 = vmatpush1.bf16.msra.mxu0 0
    %2429 = vmatprep.subr.bf16.mxu0 0
    %2430 = vmatpush1.bf16.msra.mxu0 0
    %2431 = vmatprep.subr.bf16.mxu0 0
    %2432 = vmatpush1.bf16.msra.mxu0 0
    %2433 = vmatprep.subr.bf16.mxu0 0
    %2434 = vmatpush1.bf16.msra.mxu0 0
    %2435 = vmatprep.subr.bf16.mxu0 0
    %2436 = vmatpush1.bf16.msra.mxu0 0
    %2437 = vmatprep.subr.bf16.mxu0 0
    %2438 = vmatpush1.bf16.msra.mxu0 0
    %2439 = vmatprep.subr.bf16.mxu0 0
    %2440 = vmatpush1.bf16.msra.mxu0 0
    %2441 = vmatprep.subr.bf16.mxu0 0
    %2442 = vmatpush1.bf16.msra.mxu0 0
    %2443 = vmatprep.subr.bf16.mxu0 0
    %2444 = vmatpush1.bf16.msra.mxu0 0
    %2445 = vmatprep.mubr.bf16.mxu0 0
    %2446 = vmatmul.mubr.bf16.gmra.mrb[0].mxu0 %v2352
    %v2447 = vpop.f32.mrb[0].mxu0
    %v2448 = vadd.f32 0.0, %v2447
    %v2449 = vpop.f32.mrb[0].mxu0
    %v2450 = vadd.f32 0.0, %v2449
    %v2451 = vpop.f32.mrb[0].mxu0
    %v2452 = vpop.f32.mrb[0].mxu0
    %2453 = vdwg.mxu0
    %2454 = vmatprep.subr.bf16.mxu0 %v2370
    %2455 = vmatpush1.bf16.msra.mxu0 %v2367
    %2456 = vmatprep.subr.bf16.mxu0 0
    %2457 = vmatpush1.bf16.msra.mxu0 0
    %2458 = vmatprep.subr.bf16.mxu0 0
    %2459 = vmatpush1.bf16.msra.mxu0 0
    %2460 = vmatprep.subr.bf16.mxu0 0
    %2461 = vmatpush1.bf16.msra.mxu0 0
    %2462 = vmatprep.subr.bf16.mxu0 0
    %2463 = vmatpush1.bf16.msra.mxu0 0
    %2464 = vmatprep.subr.bf16.mxu0 0
    %2465 = vmatpush1.bf16.msra.mxu0 0
    %2466 = vmatprep.subr.bf16.mxu0 0
    %2467 = vmatpush1.bf16.msra.mxu0 0
    %2468 = vmatprep.subr.bf16.mxu0 0
    %2469 = vmatpush1.bf16.msra.mxu0 0
    %2470 = vmatprep.subr.bf16.mxu0 0
    %2471 = vmatpush1.bf16.msra.mxu0 0
    %2472 = vmatprep.subr.bf16.mxu0 0
    %2473 = vmatpush1.bf16.msra.mxu0 0
    %2474 = vmatprep.subr.bf16.mxu0 0
    %2475 = vmatpush1.bf16.msra.mxu0 0
    %2476 = vmatprep.subr.bf16.mxu0 0
    %2477 = vmatpush1.bf16.msra.mxu0 0
    %2478 = vmatprep.subr.bf16.mxu0 0
    %2479 = vmatpush1.bf16.msra.mxu0 0
    %2480 = vmatprep.subr.bf16.mxu0 0
    %2481 = vmatpush1.bf16.msra.mxu0 0
    %2482 = vmatprep.subr.bf16.mxu0 0
    %2483 = vmatpush1.bf16.msra.mxu0 0
    %2484 = vmatprep.subr.bf16.mxu0 0
    %2485 = vmatpush1.bf16.msra.mxu0 0
    %2486 = vmatprep.mubr.bf16.mxu0 0
    %2487 = vmatmul.mubr.bf16.gmra.mrb[0].mxu0 %v2352
    %v2488 = vpop.f32.mrb[0].mxu0
    %v2489 = vadd.f32 0.0, %v2488
    %v2490 = vpop.f32.mrb[0].mxu0
    %v2491 = vadd.f32 0.0, %v2490
    %v2492 = vpop.f32.mrb[0].mxu0
    %v2493 = vpop.f32.mrb[0].mxu0
    %2494 = vdwg.mxu0
    %v2495 = vadd.f32 %v2241, %v2407
    %v2496 = vadd.f32 %v2243, %v2409
    %v2497 = vadd.f32 %v2282, %v2448
    %v2498 = vadd.f32 %v2284, %v2450
    %v2499 = vadd.f32 %v2323, %v2489
    %v2500 = vadd.f32 %v2325, %v2491
    %s2501 = scalar_lea.vmem [#allocation9], 12
    %v2502 = vld [vmem:[%s2501] sm:$0xf]
    %2503 = vrot.lane.b32.xlu0 %v1994, 1
    %v2504 = vpop.permute.xlu0 %2503
    %2505 = vrot.lane.b32.xlu0 %v1995, 1
    %v2506 = vpop.permute.xlu0 %2505
    %2507 = vrot.lane.b32.xlu0 %v1996, 1
    %v2508 = vpop.permute.xlu0 %2507
    %2509 = vrot.lane.b32.xlu0 %v1997, 1
    %v2510 = vpop.permute.xlu0 %2509
    %2511 = vrot.lane.b32.xlu0 %v1998, 1
    %v2512 = vpop.permute.xlu0 %2511
    %2513 = vrot.lane.b32.xlu0 %v1999, 1
    %v2514 = vpop.permute.xlu0 %2513
    %2515 = vrot.lane.b32.xlu0 %v2000, 1
    %v2516 = vpop.permute.xlu0 %2515
    %v2517 = vsel %vm632, %v2504, %v2506
    %v2518 = vsel %vm632, %v2506, %v2508
    %v2519 = vsel %vm632, %v2508, %v2510
    %v2520 = vsel %vm632, %v2510, %v2512
    %v2521 = vsel %vm632, %v2512, %v2514
    %v2522 = vsel %vm632, %v2514, %v2516
    %v2524 = vsel %vm132, %v2502, 0
    %v2527 = vsel %vm136, %v2517, 0
    %v2530 = vsel %vm136, %v2518, 0
    %v2533 = vsel %vm136, %v2519, 0
    %v2536 = vsel %vm136, %v2520, 0
    %v2539 = vsel %vm136, %v2521, 0
    %v2542 = vsel %vm136, %v2522, 0
    %2544 = vmatprep.subr.bf16.mxu0 %v2530
    %2545 = vmatpush1.bf16.msra.mxu0 %v2527
    %2546 = vmatprep.subr.bf16.mxu0 0
    %2547 = vmatpush1.bf16.msra.mxu0 0
    %2548 = vmatprep.subr.bf16.mxu0 0
    %2549 = vmatpush1.bf16.msra.mxu0 0
    %2550 = vmatprep.subr.bf16.mxu0 0
    %2551 = vmatpush1.bf16.msra.mxu0 0
    %2552 = vmatprep.subr.bf16.mxu0 0
    %2553 = vmatpush1.bf16.msra.mxu0 0
    %2554 = vmatprep.subr.bf16.mxu0 0
    %2555 = vmatpush1.bf16.msra.mxu0 0
    %2556 = vmatprep.subr.bf16.mxu0 0
    %2557 = vmatpush1.bf16.msra.mxu0 0
    %2558 = vmatprep.subr.bf16.mxu0 0
    %2559 = vmatpush1.bf16.msra.mxu0 0
    %2560 = vmatprep.subr.bf16.mxu0 0
    %2561 = vmatpush1.bf16.msra.mxu0 0
    %2562 = vmatprep.subr.bf16.mxu0 0
    %2563 = vmatpush1.bf16.msra.mxu0 0
    %2564 = vmatprep.subr.bf16.mxu0 0
    %2565 = vmatpush1.bf16.msra.mxu0 0
    %2566 = vmatprep.subr.bf16.mxu0 0
    %2567 = vmatpush1.bf16.msra.mxu0 0
    %2568 = vmatprep.subr.bf16.mxu0 0
    %2569 = vmatpush1.bf16.msra.mxu0 0
    %2570 = vmatprep.subr.bf16.mxu0 0
    %2571 = vmatpush1.bf16.msra.mxu0 0
    %2572 = vmatprep.subr.bf16.mxu0 0
    %2573 = vmatpush1.bf16.msra.mxu0 0
    %2574 = vmatprep.subr.bf16.mxu0 0
    %2575 = vmatpush1.bf16.msra.mxu0 0
    %2576 = vmatprep.mubr.bf16.mxu0 0
    %2577 = vmatmul.mubr.bf16.gmra.mrb[0].mxu0 %v2524
    %v2578 = vpop.f32.mrb[0].mxu0
    %v2579 = vadd.f32 0.0, %v2578
    %v2580 = vpop.f32.mrb[0].mxu0
    %v2581 = vadd.f32 0.0, %v2580
    %v2582 = vpop.f32.mrb[0].mxu0
    %v2583 = vpop.f32.mrb[0].mxu0
    %2584 = vdwg.mxu0
    %2585 = vmatprep.subr.bf16.mxu0 %v2536
    %2586 = vmatpush1.bf16.msra.mxu0 %v2533
    %2587 = vmatprep.subr.bf16.mxu0 0
    %2588 = vmatpush1.bf16.msra.mxu0 0
    %2589 = vmatprep.subr.bf16.mxu0 0
    %2590 = vmatpush1.bf16.msra.mxu0 0
    %2591 = vmatprep.subr.bf16.mxu0 0
    %2592 = vmatpush1.bf16.msra.mxu0 0
    %2593 = vmatprep.subr.bf16.mxu0 0
    %2594 = vmatpush1.bf16.msra.mxu0 0
    %2595 = vmatprep.subr.bf16.mxu0 0
    %2596 = vmatpush1.bf16.msra.mxu0 0
    %2597 = vmatprep.subr.bf16.mxu0 0
    %2598 = vmatpush1.bf16.msra.mxu0 0
    %2599 = vmatprep.subr.bf16.mxu0 0
    %2600 = vmatpush1.bf16.msra.mxu0 0
    %2601 = vmatprep.subr.bf16.mxu0 0
    %2602 = vmatpush1.bf16.msra.mxu0 0
    %2603 = vmatprep.subr.bf16.mxu0 0
    %2604 = vmatpush1.bf16.msra.mxu0 0
    %2605 = vmatprep.subr.bf16.mxu0 0
    %2606 = vmatpush1.bf16.msra.mxu0 0
    %2607 = vmatprep.subr.bf16.mxu0 0
    %2608 = vmatpush1.bf16.msra.mxu0 0
    %2609 = vmatprep.subr.bf16.mxu0 0
    %2610 = vmatpush1.bf16.msra.mxu0 0
    %2611 = vmatprep.subr.bf16.mxu0 0
    %2612 = vmatpush1.bf16.msra.mxu0 0
    %2613 = vmatprep.subr.bf16.mxu0 0
    %2614 = vmatpush1.bf16.msra.mxu0 0
    %2615 = vmatprep.subr.bf16.mxu0 0
    %2616 = vmatpush1.bf16.msra.mxu0 0
    %2617 = vmatprep.mubr.bf16.mxu0 0
    %2618 = vmatmul.mubr.bf16.gmra.mrb[0].mxu0 %v2524
    %v2619 = vpop.f32.mrb[0].mxu0
    %v2620 = vadd.f32 0.0, %v2619
    %v2621 = vpop.f32.mrb[0].mxu0
    %v2622 = vadd.f32 0.0, %v2621
    %v2623 = vpop.f32.mrb[0].mxu0
    %v2624 = vpop.f32.mrb[0].mxu0
    %2625 = vdwg.mxu0
    %2626 = vmatprep.subr.bf16.mxu0 %v2542
    %2627 = vmatpush1.bf16.msra.mxu0 %v2539
    %2628 = vmatprep.subr.bf16.mxu0 0
    %2629 = vmatpush1.bf16.msra.mxu0 0
    %2630 = vmatprep.subr.bf16.mxu0 0
    %2631 = vmatpush1.bf16.msra.mxu0 0
    %2632 = vmatprep.subr.bf16.mxu0 0
    %2633 = vmatpush1.bf16.msra.mxu0 0
    %2634 = vmatprep.subr.bf16.mxu0 0
    %2635 = vmatpush1.bf16.msra.mxu0 0
    %2636 = vmatprep.subr.bf16.mxu0 0
    %2637 = vmatpush1.bf16.msra.mxu0 0
    %2638 = vmatprep.subr.bf16.mxu0 0
    %2639 = vmatpush1.bf16.msra.mxu0 0
    %2640 = vmatprep.subr.bf16.mxu0 0
    %2641 = vmatpush1.bf16.msra.mxu0 0
    %2642 = vmatprep.subr.bf16.mxu0 0
    %2643 = vmatpush1.bf16.msra.mxu0 0
    %2644 = vmatprep.subr.bf16.mxu0 0
    %2645 = vmatpush1.bf16.msra.mxu0 0
    %2646 = vmatprep.subr.bf16.mxu0 0
    %2647 = vmatpush1.bf16.msra.mxu0 0
    %2648 = vmatprep.subr.bf16.mxu0 0
    %2649 = vmatpush1.bf16.msra.mxu0 0
    %2650 = vmatprep.subr.bf16.mxu0 0
    %2651 = vmatpush1.bf16.msra.mxu0 0
    %2652 = vmatprep.subr.bf16.mxu0 0
    %2653 = vmatpush1.bf16.msra.mxu0 0
    %2654 = vmatprep.subr.bf16.mxu0 0
    %2655 = vmatpush1.bf16.msra.mxu0 0
    %2656 = vmatprep.subr.bf16.mxu0 0
    %2657 = vmatpush1.bf16.msra.mxu0 0
    %2658 = vmatprep.mubr.bf16.mxu0 0
    %2659 = vmatmul.mubr.bf16.gmra.mrb[0].mxu0 %v2524
    %v2660 = vpop.f32.mrb[0].mxu0
    %v2661 = vadd.f32 0.0, %v2660
    %v2662 = vpop.f32.mrb[0].mxu0
    %v2663 = vadd.f32 0.0, %v2662
    %v2664 = vpop.f32.mrb[0].mxu0
    %v2665 = vpop.f32.mrb[0].mxu0
    %2666 = vdwg.mxu0
    %v2667 = vadd.f32 %v2495, %v2579
    %v2668 = vadd.f32 %v2496, %v2581
    %v2669 = vadd.f32 %v2497, %v2620
    %v2670 = vadd.f32 %v2498, %v2622
    %v2671 = vadd.f32 %v2499, %v2661
    %v2672 = vadd.f32 %v2500, %v2663
    %s2673 = scalar_lea.vmem [#allocation9], 16
    %v2674 = vld [vmem:[%s2673] sm:$0xf]
    %v2675 = vld [vmem:[#allocation2 + $0x4] sm:$0xff]
    %v2676 = vld [vmem:[#allocation2 + $0xc] sm:$0xff]
    %v2677 = vld [vmem:[#allocation2 + $0x14] sm:$0xff]
    %v2681 = vunpack.c.l.b16 %v2675
    %v2682 = vunpack.c.h.b16 %v2675
    %v2683 = vunpack.c.l.b16 %v2676
    %v2684 = vunpack.c.h.b16 %v2676
    %v2685 = vunpack.c.l.b16 %v2677
    %v2686 = vunpack.c.h.b16 %v2677
    %v2687 = vpack.c.b16 %v2681, %v2681
    %v2688 = vpack.c.b16 %v2682, %v2682
    %v2689 = vpack.c.b16 %v2683, %v2683
    %v2690 = vpack.c.b16 %v2684, %v2684
    %v2691 = vpack.c.b16 %v2685, %v2685
    %v2692 = vpack.c.b16 %v2686, %v2686
    %v2694 = vsel %vm132, %v2674, 0
    %v2697 = vsel %vm136, %v2687, 0
    %v2700 = vsel %vm136, %v2688, 0
    %v2703 = vsel %vm136, %v2689, 0
    %v2706 = vsel %vm136, %v2690, 0
    %v2709 = vsel %vm136, %v2691, 0
    %v2712 = vsel %vm136, %v2692, 0
    %2714 = vmatprep.subr.bf16.mxu0 %v2700
    %2715 = vmatpush1.bf16.msra.mxu0 %v2697
    %2716 = vmatprep.subr.bf16.mxu0 0
    %2717 = vmatpush1.bf16.msra.mxu0 0
    %2718 = vmatprep.subr.bf16.mxu0 0
    %2719 = vmatpush1.bf16.msra.mxu0 0
    %2720 = vmatprep.subr.bf16.mxu0 0
    %2721 = vmatpush1.bf16.msra.mxu0 0
    %2722 = vmatprep.subr.bf16.mxu0 0
    %2723 = vmatpush1.bf16.msra.mxu0 0
    %2724 = vmatprep.subr.bf16.mxu0 0
    %2725 = vmatpush1.bf16.msra.mxu0 0
    %2726 = vmatprep.subr.bf16.mxu0 0
    %2727 = vmatpush1.bf16.msra.mxu0 0
    %2728 = vmatprep.subr.bf16.mxu0 0
    %2729 = vmatpush1.bf16.msra.mxu0 0
    %2730 = vmatprep.subr.bf16.mxu0 0
    %2731 = vmatpush1.bf16.msra.mxu0 0
    %2732 = vmatprep.subr.bf16.mxu0 0
    %2733 = vmatpush1.bf16.msra.mxu0 0
    %2734 = vmatprep.subr.bf16.mxu0 0
    %2735 = vmatpush1.bf16.msra.mxu0 0
    %2736 = vmatprep.subr.bf16.mxu0 0
    %2737 = vmatpush1.bf16.msra.mxu0 0
    %2738 = vmatprep.subr.bf16.mxu0 0
    %2739 = vmatpush1.bf16.msra.mxu0 0
    %2740 = vmatprep.subr.bf16.mxu0 0
    %2741 = vmatpush1.bf16.msra.mxu0 0
    %2742 = vmatprep.subr.bf16.mxu0 0
    %2743 = vmatpush1.bf16.msra.mxu0 0
    %2744 = vmatprep.subr.bf16.mxu0 0
    %2745 = vmatpush1.bf16.msra.mxu0 0
    %2746 = vmatprep.mubr.bf16.mxu0 0
    %2747 = vmatmul.mubr.bf16.gmra.mrb[0].mxu0 %v2694
    %v2748 = vpop.f32.mrb[0].mxu0
    %v2749 = vadd.f32 0.0, %v2748
    %v2750 = vpop.f32.mrb[0].mxu0
    %v2751 = vadd.f32 0.0, %v2750
    %v2752 = vpop.f32.mrb[0].mxu0
    %v2753 = vpop.f32.mrb[0].mxu0
    %2754 = vdwg.mxu0
    %2755 = vmatprep.subr.bf16.mxu0 %v2706
    %2756 = vmatpush1.bf16.msra.mxu0 %v2703
    %2757 = vmatprep.subr.bf16.mxu0 0
    %2758 = vmatpush1.bf16.msra.mxu0 0
    %2759 = vmatprep.subr.bf16.mxu0 0
    %2760 = vmatpush1.bf16.msra.mxu0 0
    %2761 = vmatprep.subr.bf16.mxu0 0
    %2762 = vmatpush1.bf16.msra.mxu0 0
    %2763 = vmatprep.subr.bf16.mxu0 0
    %2764 = vmatpush1.bf16.msra.mxu0 0
    %2765 = vmatprep.subr.bf16.mxu0 0
    %2766 = vmatpush1.bf16.msra.mxu0 0
    %2767 = vmatprep.subr.bf16.mxu0 0
    %2768 = vmatpush1.bf16.msra.mxu0 0
    %2769 = vmatprep.subr.bf16.mxu0 0
    %2770 = vmatpush1.bf16.msra.mxu0 0
    %2771 = vmatprep.subr.bf16.mxu0 0
    %2772 = vmatpush1.bf16.msra.mxu0 0
    %2773 = vmatprep.subr.bf16.mxu0 0
    %2774 = vmatpush1.bf16.msra.mxu0 0
    %2775 = vmatprep.subr.bf16.mxu0 0
    %2776 = vmatpush1.bf16.msra.mxu0 0
    %2777 = vmatprep.subr.bf16.mxu0 0
    %2778 = vmatpush1.bf16.msra.mxu0 0
    %2779 = vmatprep.subr.bf16.mxu0 0
    %2780 = vmatpush1.bf16.msra.mxu0 0
    %2781 = vmatprep.subr.bf16.mxu0 0
    %2782 = vmatpush1.bf16.msra.mxu0 0
    %2783 = vmatprep.subr.bf16.mxu0 0
    %2784 = vmatpush1.bf16.msra.mxu0 0
    %2785 = vmatprep.subr.bf16.mxu0 0
    %2786 = vmatpush1.bf16.msra.mxu0 0
    %2787 = vmatprep.mubr.bf16.mxu0 0
    %2788 = vmatmul.mubr.bf16.gmra.mrb[0].mxu0 %v2694
    %v2789 = vpop.f32.mrb[0].mxu0
    %v2790 = vadd.f32 0.0, %v2789
    %v2791 = vpop.f32.mrb[0].mxu0
    %v2792 = vadd.f32 0.0, %v2791
    %v2793 = vpop.f32.mrb[0].mxu0
    %v2794 = vpop.f32.mrb[0].mxu0
    %2795 = vdwg.mxu0
    %2796 = vmatprep.subr.bf16.mxu0 %v2712
    %2797 = vmatpush1.bf16.msra.mxu0 %v2709
    %2798 = vmatprep.subr.bf16.mxu0 0
    %2799 = vmatpush1.bf16.msra.mxu0 0
    %2800 = vmatprep.subr.bf16.mxu0 0
    %2801 = vmatpush1.bf16.msra.mxu0 0
    %2802 = vmatprep.subr.bf16.mxu0 0
    %2803 = vmatpush1.bf16.msra.mxu0 0
    %2804 = vmatprep.subr.bf16.mxu0 0
    %2805 = vmatpush1.bf16.msra.mxu0 0
    %2806 = vmatprep.subr.bf16.mxu0 0
    %2807 = vmatpush1.bf16.msra.mxu0 0
    %2808 = vmatprep.subr.bf16.mxu0 0
    %2809 = vmatpush1.bf16.msra.mxu0 0
    %2810 = vmatprep.subr.bf16.mxu0 0
    %2811 = vmatpush1.bf16.msra.mxu0 0
    %2812 = vmatprep.subr.bf16.mxu0 0
    %2813 = vmatpush1.bf16.msra.mxu0 0
    %2814 = vmatprep.subr.bf16.mxu0 0
    %2815 = vmatpush1.bf16.msra.mxu0 0
    %2816 = vmatprep.subr.bf16.mxu0 0
    %2817 = vmatpush1.bf16.msra.mxu0 0
    %2818 = vmatprep.subr.bf16.mxu0 0
    %2819 = vmatpush1.bf16.msra.mxu0 0
    %2820 = vmatprep.subr.bf16.mxu0 0
    %2821 = vmatpush1.bf16.msra.mxu0 0
    %2822 = vmatprep.subr.bf16.mxu0 0
    %2823 = vmatpush1.bf16.msra.mxu0 0
    %2824 = vmatprep.subr.bf16.mxu0 0
    %2825 = vmatpush1.bf16.msra.mxu0 0
    %2826 = vmatprep.subr.bf16.mxu0 0
    %2827 = vmatpush1.bf16.msra.mxu0 0
    %2828 = vmatprep.mubr.bf16.mxu0 0
    %2829 = vmatmul.mubr.bf16.gmra.mrb[0].mxu0 %v2694
    %v2830 = vpop.f32.mrb[0].mxu0
    %v2831 = vadd.f32 0.0, %v2830
    %v2832 = vpop.f32.mrb[0].mxu0
    %v2833 = vadd.f32 0.0, %v2832
    %v2834 = vpop.f32.mrb[0].mxu0
    %v2835 = vpop.f32.mrb[0].mxu0
    %2836 = vdwg.mxu0
    %v2837 = vadd.f32 %v2667, %v2749
    %v2838 = vadd.f32 %v2668, %v2751
    %v2839 = vadd.f32 %v2669, %v2790
    %v2840 = vadd.f32 %v2670, %v2792
    %v2841 = vadd.f32 %v2671, %v2831
    %v2842 = vadd.f32 %v2672, %v2833
    %s2843 = scalar_lea.vmem [#allocation9], 20
    %v2844 = vld [vmem:[%s2843] sm:$0xf]
    %v2845 = vld [vmem:[#allocation2 + $0x4] sm:$0xff]
    %v2846 = vld [vmem:[#allocation2 + $0xc] sm:$0xff]
    %v2847 = vld [vmem:[#allocation2 + $0x14] sm:$0xff]
    %v2848 = vld [vmem:[#allocation2 + $0x1c] sm:$0xf]
    %v2853 = vunpack.c.l.b16 %v2845
    %v2854 = vunpack.c.h.b16 %v2845
    %v2855 = vunpack.c.l.b16 %v2846
    %v2856 = vunpack.c.h.b16 %v2846
    %v2857 = vunpack.c.l.b16 %v2847
    %v2858 = vunpack.c.h.b16 %v2847
    %v2859 = vunpack.c.l.b16 %v2848
    %v2860 = vpack.c.b16 %v2853, %v2853
    %v2861 = vpack.c.b16 %v2854, %v2854
    %v2862 = vpack.c.b16 %v2855, %v2855
    %v2863 = vpack.c.b16 %v2856, %v2856
    %v2864 = vpack.c.b16 %v2857, %v2857
    %v2865 = vpack.c.b16 %v2858, %v2858
    %v2866 = vpack.c.b16 %v2859, %v2859
    %2867 = vrot.lane.b32.xlu0 %v2860, 127
    %v2868 = vpop.permute.xlu0 %2867
    %2869 = vrot.lane.b32.xlu0 %v2861, 127
    %v2870 = vpop.permute.xlu0 %2869
    %2871 = vrot.lane.b32.xlu0 %v2862, 127
    %v2872 = vpop.permute.xlu0 %2871
    %2873 = vrot.lane.b32.xlu0 %v2863, 127
    %v2874 = vpop.permute.xlu0 %2873
    %2875 = vrot.lane.b32.xlu0 %v2864, 127
    %v2876 = vpop.permute.xlu0 %2875
    %2877 = vrot.lane.b32.xlu0 %v2865, 127
    %v2878 = vpop.permute.xlu0 %2877
    %2879 = vrot.lane.b32.xlu0 %v2866, 127
    %v2880 = vpop.permute.xlu0 %2879
    %v2881 = vsel %vm997, %v2868, %v2870
    %v2882 = vsel %vm997, %v2870, %v2872
    %v2883 = vsel %vm997, %v2872, %v2874
    %v2884 = vsel %vm997, %v2874, %v2876
    %v2885 = vsel %vm997, %v2876, %v2878
    %v2886 = vsel %vm997, %v2878, %v2880
    %v2888 = vsel %vm132, %v2844, 0
    %v2891 = vsel %vm136, %v2881, 0
    %v2894 = vsel %vm136, %v2882, 0
    %v2897 = vsel %vm136, %v2883, 0
    %v2900 = vsel %vm136, %v2884, 0
    %v2903 = vsel %vm136, %v2885, 0
    %v2906 = vsel %vm136, %v2886, 0
    %2908 = vmatprep.subr.bf16.mxu0 %v2894
    %2909 = vmatpush1.bf16.msra.mxu0 %v2891
    %2910 = vmatprep.subr.bf16.mxu0 0
    %2911 = vmatpush1.bf16.msra.mxu0 0
    %2912 = vmatprep.subr.bf16.mxu0 0
    %2913 = vmatpush1.bf16.msra.mxu0 0
    %2914 = vmatprep.subr.bf16.mxu0 0
    %2915 = vmatpush1.bf16.msra.mxu0 0
    %2916 = vmatprep.subr.bf16.mxu0 0
    %2917 = vmatpush1.bf16.msra.mxu0 0
    %2918 = vmatprep.subr.bf16.mxu0 0
    %2919 = vmatpush1.bf16.msra.mxu0 0
    %2920 = vmatprep.subr.bf16.mxu0 0
    %2921 = vmatpush1.bf16.msra.mxu0 0
    %2922 = vmatprep.subr.bf16.mxu0 0
    %2923 = vmatpush1.bf16.msra.mxu0 0
    %2924 = vmatprep.subr.bf16.mxu0 0
    %2925 = vmatpush1.bf16.msra.mxu0 0
    %2926 = vmatprep.subr.bf16.mxu0 0
    %2927 = vmatpush1.bf16.msra.mxu0 0
    %2928 = vmatprep.subr.bf16.mxu0 0
    %2929 = vmatpush1.bf16.msra.mxu0 0
    %2930 = vmatprep.subr.bf16.mxu0 0
    %2931 = vmatpush1.bf16.msra.mxu0 0
    %2932 = vmatprep.subr.bf16.mxu0 0
    %2933 = vmatpush1.bf16.msra.mxu0 0
    %2934 = vmatprep.subr.bf16.mxu0 0
    %2935 = vmatpush1.bf16.msra.mxu0 0
    %2936 = vmatprep.subr.bf16.mxu0 0
    %2937 = vmatpush1.bf16.msra.mxu0 0
    %2938 = vmatprep.subr.bf16.mxu0 0
    %2939 = vmatpush1.bf16.msra.mxu0 0
    %2940 = vmatprep.mubr.bf16.mxu0 0
    %2941 = vmatmul.mubr.bf16.gmra.mrb[0].mxu0 %v2888
    %v2942 = vpop.f32.mrb[0].mxu0
    %v2943 = vadd.f32 0.0, %v2942
    %v2944 = vpop.f32.mrb[0].mxu0
    %v2945 = vadd.f32 0.0, %v2944
    %v2946 = vpop.f32.mrb[0].mxu0
    %v2947 = vpop.f32.mrb[0].mxu0
    %2948 = vdwg.mxu0
    %2949 = vmatprep.subr.bf16.mxu0 %v2900
    %2950 = vmatpush1.bf16.msra.mxu0 %v2897
    %2951 = vmatprep.subr.bf16.mxu0 0
    %2952 = vmatpush1.bf16.msra.mxu0 0
    %2953 = vmatprep.subr.bf16.mxu0 0
    %2954 = vmatpush1.bf16.msra.mxu0 0
    %2955 = vmatprep.subr.bf16.mxu0 0
    %2956 = vmatpush1.bf16.msra.mxu0 0
    %2957 = vmatprep.subr.bf16.mxu0 0
    %2958 = vmatpush1.bf16.msra.mxu0 0
    %2959 = vmatprep.subr.bf16.mxu0 0
    %2960 = vmatpush1.bf16.msra.mxu0 0
    %2961 = vmatprep.subr.bf16.mxu0 0
    %2962 = vmatpush1.bf16.msra.mxu0 0
    %2963 = vmatprep.subr.bf16.mxu0 0
    %2964 = vmatpush1.bf16.msra.mxu0 0
    %2965 = vmatprep.subr.bf16.mxu0 0
    %2966 = vmatpush1.bf16.msra.mxu0 0
    %2967 = vmatprep.subr.bf16.mxu0 0
    %2968 = vmatpush1.bf16.msra.mxu0 0
    %2969 = vmatprep.subr.bf16.mxu0 0
    %2970 = vmatpush1.bf16.msra.mxu0 0
    %2971 = vmatprep.subr.bf16.mxu0 0
    %2972 = vmatpush1.bf16.msra.mxu0 0
    %2973 = vmatprep.subr.bf16.mxu0 0
    %2974 = vmatpush1.bf16.msra.mxu0 0
    %2975 = vmatprep.subr.bf16.mxu0 0
    %2976 = vmatpush1.bf16.msra.mxu0 0
    %2977 = vmatprep.subr.bf16.mxu0 0
    %2978 = vmatpush1.bf16.msra.mxu0 0
    %2979 = vmatprep.subr.bf16.mxu0 0
    %2980 = vmatpush1.bf16.msra.mxu0 0
    %2981 = vmatprep.mubr.bf16.mxu0 0
    %2982 = vmatmul.mubr.bf16.gmra.mrb[0].mxu0 %v2888
    %v2983 = vpop.f32.mrb[0].mxu0
    %v2984 = vadd.f32 0.0, %v2983
    %v2985 = vpop.f32.mrb[0].mxu0
    %v2986 = vadd.f32 0.0, %v2985
    %v2987 = vpop.f32.mrb[0].mxu0
    %v2988 = vpop.f32.mrb[0].mxu0
    %2989 = vdwg.mxu0
    %2990 = vmatprep.subr.bf16.mxu0 %v2906
    %2991 = vmatpush1.bf16.msra.mxu0 %v2903
    %2992 = vmatprep.subr.bf16.mxu0 0
    %2993 = vmatpush1.bf16.msra.mxu0 0
    %2994 = vmatprep.subr.bf16.mxu0 0
    %2995 = vmatpush1.bf16.msra.mxu0 0
    %2996 = vmatprep.subr.bf16.mxu0 0
    %2997 = vmatpush1.bf16.msra.mxu0 0
    %2998 = vmatprep.subr.bf16.mxu0 0
    %2999 = vmatpush1.bf16.msra.mxu0 0
    %3000 = vmatprep.subr.bf16.mxu0 0
    %3001 = vmatpush1.bf16.msra.mxu0 0
    %3002 = vmatprep.subr.bf16.mxu0 0
    %3003 = vmatpush1.bf16.msra.mxu0 0
    %3004 = vmatprep.subr.bf16.mxu0 0
    %3005 = vmatpush1.bf16.msra.mxu0 0
    %3006 = vmatprep.subr.bf16.mxu0 0
    %3007 = vmatpush1.bf16.msra.mxu0 0
    %3008 = vmatprep.subr.bf16.mxu0 0
    %3009 = vmatpush1.bf16.msra.mxu0 0
    %3010 = vmatprep.subr.bf16.mxu0 0
    %3011 = vmatpush1.bf16.msra.mxu0 0
    %3012 = vmatprep.subr.bf16.mxu0 0
    %3013 = vmatpush1.bf16.msra.mxu0 0
    %3014 = vmatprep.subr.bf16.mxu0 0
    %3015 = vmatpush1.bf16.msra.mxu0 0
    %3016 = vmatprep.subr.bf16.mxu0 0
    %3017 = vmatpush1.bf16.msra.mxu0 0
    %3018 = vmatprep.subr.bf16.mxu0 0
    %3019 = vmatpush1.bf16.msra.mxu0 0
    %3020 = vmatprep.subr.bf16.mxu0 0
    %3021 = vmatpush1.bf16.msra.mxu0 0
    %3022 = vmatprep.mubr.bf16.mxu0 0
    %3023 = vmatmul.mubr.bf16.gmra.mrb[0].mxu0 %v2888
    %v3024 = vpop.f32.mrb[0].mxu0
    %v3025 = vadd.f32 0.0, %v3024
    %v3026 = vpop.f32.mrb[0].mxu0
    %v3027 = vadd.f32 0.0, %v3026
    %v3028 = vpop.f32.mrb[0].mxu0
    %v3029 = vpop.f32.mrb[0].mxu0
    %3030 = vdwg.mxu0
    %v3031 = vadd.f32 %v2837, %v2943
    %v3032 = vadd.f32 %v2838, %v2945
    %v3033 = vadd.f32 %v2839, %v2984
    %v3034 = vadd.f32 %v2840, %v2986
    %v3035 = vadd.f32 %v2841, %v3025
    %v3036 = vadd.f32 %v2842, %v3027
    %s3037 = scalar_lea.vmem [#allocation9], 24
    %v3038 = vld [vmem:[%s3037] sm:$0xf]
    %3039 = vrot.lane.b32.xlu0 %v2860, 111
    %v3040 = vpop.permute.xlu0 %3039
    %3041 = vrot.lane.b32.xlu0 %v2861, 111
    %v3042 = vpop.permute.xlu0 %3041
    %3043 = vrot.lane.b32.xlu0 %v2862, 111
    %v3044 = vpop.permute.xlu0 %3043
    %3045 = vrot.lane.b32.xlu0 %v2863, 111
    %v3046 = vpop.permute.xlu0 %3045
    %3047 = vrot.lane.b32.xlu0 %v2864, 111
    %v3048 = vpop.permute.xlu0 %3047
    %3049 = vrot.lane.b32.xlu0 %v2865, 111
    %v3050 = vpop.permute.xlu0 %3049
    %3051 = vrot.lane.b32.xlu0 %v2866, 111
    %v3052 = vpop.permute.xlu0 %3051
    %v3053 = vsel %vm1170, %v3040, %v3042
    %v3054 = vsel %vm1170, %v3042, %v3044
    %v3055 = vsel %vm1170, %v3044, %v3046
    %v3056 = vsel %vm1170, %v3046, %v3048
    %v3057 = vsel %vm1170, %v3048, %v3050
    %v3058 = vsel %vm1170, %v3050, %v3052
    %v3060 = vsel %vm132, %v3038, 0
    %v3063 = vsel %vm136, %v3053, 0
    %v3066 = vsel %vm136, %v3054, 0
    %v3069 = vsel %vm136, %v3055, 0
    %v3072 = vsel %vm136, %v3056, 0
    %v3075 = vsel %vm136, %v3057, 0
    %v3078 = vsel %vm136, %v3058, 0
    %3080 = vmatprep.subr.bf16.mxu0 %v3066
    %3081 = vmatpush1.bf16.msra.mxu0 %v3063
    %3082 = vmatprep.subr.bf16.mxu0 0
    %3083 = vmatpush1.bf16.msra.mxu0 0
    %3084 = vmatprep.subr.bf16.mxu0 0
    %3085 = vmatpush1.bf16.msra.mxu0 0
    %3086 = vmatprep.subr.bf16.mxu0 0
    %3087 = vmatpush1.bf16.msra.mxu0 0
    %3088 = vmatprep.subr.bf16.mxu0 0
    %3089 = vmatpush1.bf16.msra.mxu0 0
    %3090 = vmatprep.subr.bf16.mxu0 0
    %3091 = vmatpush1.bf16.msra.mxu0 0
    %3092 = vmatprep.subr.bf16.mxu0 0
    %3093 = vmatpush1.bf16.msra.mxu0 0
    %3094 = vmatprep.subr.bf16.mxu0 0
    %3095 = vmatpush1.bf16.msra.mxu0 0
    %3096 = vmatprep.subr.bf16.mxu0 0
    %3097 = vmatpush1.bf16.msra.mxu0 0
    %3098 = vmatprep.subr.bf16.mxu0 0
    %3099 = vmatpush1.bf16.msra.mxu0 0
    %3100 = vmatprep.subr.bf16.mxu0 0
    %3101 = vmatpush1.bf16.msra.mxu0 0
    %3102 = vmatprep.subr.bf16.mxu0 0
    %3103 = vmatpush1.bf16.msra.mxu0 0
    %3104 = vmatprep.subr.bf16.mxu0 0
    %3105 = vmatpush1.bf16.msra.mxu0 0
    %3106 = vmatprep.subr.bf16.mxu0 0
    %3107 = vmatpush1.bf16.msra.mxu0 0
    %3108 = vmatprep.subr.bf16.mxu0 0
    %3109 = vmatpush1.bf16.msra.mxu0 0
    %3110 = vmatprep.subr.bf16.mxu0 0
    %3111 = vmatpush1.bf16.msra.mxu0 0
    %3112 = vmatprep.mubr.bf16.mxu0 0
    %3113 = vmatmul.mubr.bf16.gmra.mrb[0].mxu0 %v3060
    %v3114 = vpop.f32.mrb[0].mxu0
    %v3115 = vadd.f32 0.0, %v3114
    %v3116 = vpop.f32.mrb[0].mxu0
    %v3117 = vadd.f32 0.0, %v3116
    %v3118 = vpop.f32.mrb[0].mxu0
    %v3119 = vpop.f32.mrb[0].mxu0
    %3120 = vdwg.mxu0
    %3121 = vmatprep.subr.bf16.mxu0 %v3072
    %3122 = vmatpush1.bf16.msra.mxu0 %v3069
    %3123 = vmatprep.subr.bf16.mxu0 0
    %3124 = vmatpush1.bf16.msra.mxu0 0
    %3125 = vmatprep.subr.bf16.mxu0 0
    %3126 = vmatpush1.bf16.msra.mxu0 0
    %3127 = vmatprep.subr.bf16.mxu0 0
    %3128 = vmatpush1.bf16.msra.mxu0 0
    %3129 = vmatprep.subr.bf16.mxu0 0
    %3130 = vmatpush1.bf16.msra.mxu0 0
    %3131 = vmatprep.subr.bf16.mxu0 0
    %3132 = vmatpush1.bf16.msra.mxu0 0
    %3133 = vmatprep.subr.bf16.mxu0 0
    %3134 = vmatpush1.bf16.msra.mxu0 0
    %3135 = vmatprep.subr.bf16.mxu0 0
    %3136 = vmatpush1.bf16.msra.mxu0 0
    %3137 = vmatprep.subr.bf16.mxu0 0
    %3138 = vmatpush1.bf16.msra.mxu0 0
    %3139 = vmatprep.subr.bf16.mxu0 0
    %3140 = vmatpush1.bf16.msra.mxu0 0
    %3141 = vmatprep.subr.bf16.mxu0 0
    %3142 = vmatpush1.bf16.msra.mxu0 0
    %3143 = vmatprep.subr.bf16.mxu0 0
    %3144 = vmatpush1.bf16.msra.mxu0 0
    %3145 = vmatprep.subr.bf16.mxu0 0
    %3146 = vmatpush1.bf16.msra.mxu0 0
    %3147 = vmatprep.subr.bf16.mxu0 0
    %3148 = vmatpush1.bf16.msra.mxu0 0
    %3149 = vmatprep.subr.bf16.mxu0 0
    %3150 = vmatpush1.bf16.msra.mxu0 0
    %3151 = vmatprep.subr.bf16.mxu0 0
    %3152 = vmatpush1.bf16.msra.mxu0 0
    %3153 = vmatprep.mubr.bf16.mxu0 0
    %3154 = vmatmul.mubr.bf16.gmra.mrb[0].mxu0 %v3060
    %v3155 = vpop.f32.mrb[0].mxu0
    %v3156 = vadd.f32 0.0, %v3155
    %v3157 = vpop.f32.mrb[0].mxu0
    %v3158 = vadd.f32 0.0, %v3157
    %v3159 = vpop.f32.mrb[0].mxu0
    %v3160 = vpop.f32.mrb[0].mxu0
    %3161 = vdwg.mxu0
    %3162 = vmatprep.subr.bf16.mxu0 %v3078
    %3163 = vmatpush1.bf16.msra.mxu0 %v3075
    %3164 = vmatprep.subr.bf16.mxu0 0
    %3165 = vmatpush1.bf16.msra.mxu0 0
    %3166 = vmatprep.subr.bf16.mxu0 0
    %3167 = vmatpush1.bf16.msra.mxu0 0
    %3168 = vmatprep.subr.bf16.mxu0 0
    %3169 = vmatpush1.bf16.msra.mxu0 0
    %3170 = vmatprep.subr.bf16.mxu0 0
    %3171 = vmatpush1.bf16.msra.mxu0 0
    %3172 = vmatprep.subr.bf16.mxu0 0
    %3173 = vmatpush1.bf16.msra.mxu0 0
    %3174 = vmatprep.subr.bf16.mxu0 0
    %3175 = vmatpush1.bf16.msra.mxu0 0
    %3176 = vmatprep.subr.bf16.mxu0 0
    %3177 = vmatpush1.bf16.msra.mxu0 0
    %3178 = vmatprep.subr.bf16.mxu0 0
    %3179 = vmatpush1.bf16.msra.mxu0 0
    %3180 = vmatprep.subr.bf16.mxu0 0
    %3181 = vmatpush1.bf16.msra.mxu0 0
    %3182 = vmatprep.subr.bf16.mxu0 0
    %3183 = vmatpush1.bf16.msra.mxu0 0
    %3184 = vmatprep.subr.bf16.mxu0 0
    %3185 = vmatpush1.bf16.msra.mxu0 0
    %3186 = vmatprep.subr.bf16.mxu0 0
    %3187 = vmatpush1.bf16.msra.mxu0 0
    %3188 = vmatprep.subr.bf16.mxu0 0
    %3189 = vmatpush1.bf16.msra.mxu0 0
    %3190 = vmatprep.subr.bf16.mxu0 0
    %3191 = vmatpush1.bf16.msra.mxu0 0
    %3192 = vmatprep.subr.bf16.mxu0 0
    %3193 = vmatpush1.bf16.msra.mxu0 0
    %3194 = vmatprep.mubr.bf16.mxu0 0
    %3195 = vmatmul.mubr.bf16.gmra.mrb[0].mxu0 %v3060
    %v3196 = vpop.f32.mrb[0].mxu0
    %v3197 = vadd.f32 0.0, %v3196
    %v3198 = vpop.f32.mrb[0].mxu0
    %v3199 = vadd.f32 0.0, %v3198
    %v3200 = vpop.f32.mrb[0].mxu0
    %v3201 = vpop.f32.mrb[0].mxu0
    %3202 = vdwg.mxu0
    %v3203 = vadd.f32 %v3031, %v3115
    %v3204 = vadd.f32 %v3032, %v3117
    %v3205 = vadd.f32 %v3033, %v3156
    %v3206 = vadd.f32 %v3034, %v3158
    %v3207 = vadd.f32 %v3035, %v3197
    %v3208 = vadd.f32 %v3036, %v3199
    %s3209 = scalar_lea.vmem [#allocation9], 28
    %v3210 = vld [vmem:[%s3209] sm:$0xf]
    %3211 = vrot.lane.b32.xlu0 %v2860, 110
    %v3212 = vpop.permute.xlu0 %3211
    %3213 = vrot.lane.b32.xlu0 %v2861, 110
    %v3214 = vpop.permute.xlu0 %3213
    %3215 = vrot.lane.b32.xlu0 %v2862, 110
    %v3216 = vpop.permute.xlu0 %3215
    %3217 = vrot.lane.b32.xlu0 %v2863, 110
    %v3218 = vpop.permute.xlu0 %3217
    %3219 = vrot.lane.b32.xlu0 %v2864, 110
    %v3220 = vpop.permute.xlu0 %3219
    %3221 = vrot.lane.b32.xlu0 %v2865, 110
    %v3222 = vpop.permute.xlu0 %3221
    %3223 = vrot.lane.b32.xlu0 %v2866, 110
    %v3224 = vpop.permute.xlu0 %3223
    %v3225 = vsel %vm1343, %v3212, %v3214
    %v3226 = vsel %vm1343, %v3214, %v3216
    %v3227 = vsel %vm1343, %v3216, %v3218
    %v3228 = vsel %vm1343, %v3218, %v3220
    %v3229 = vsel %vm1343, %v3220, %v3222
    %v3230 = vsel %vm1343, %v3222, %v3224
    %v3232 = vsel %vm132, %v3210, 0
    %v3235 = vsel %vm136, %v3225, 0
    %v3238 = vsel %vm136, %v3226, 0
    %v3241 = vsel %vm136, %v3227, 0
    %v3244 = vsel %vm136, %v3228, 0
    %v3247 = vsel %vm136, %v3229, 0
    %v3250 = vsel %vm136, %v3230, 0
    %3252 = vmatprep.subr.bf16.mxu0 %v3238
    %3253 = vmatpush1.bf16.msra.mxu0 %v3235
    %3254 = vmatprep.subr.bf16.mxu0 0
    %3255 = vmatpush1.bf16.msra.mxu0 0
    %3256 = vmatprep.subr.bf16.mxu0 0
    %3257 = vmatpush1.bf16.msra.mxu0 0
    %3258 = vmatprep.subr.bf16.mxu0 0
    %3259 = vmatpush1.bf16.msra.mxu0 0
    %3260 = vmatprep.subr.bf16.mxu0 0
    %3261 = vmatpush1.bf16.msra.mxu0 0
    %3262 = vmatprep.subr.bf16.mxu0 0
    %3263 = vmatpush1.bf16.msra.mxu0 0
    %3264 = vmatprep.subr.bf16.mxu0 0
    %3265 = vmatpush1.bf16.msra.mxu0 0
    %3266 = vmatprep.subr.bf16.mxu0 0
    %3267 = vmatpush1.bf16.msra.mxu0 0
    %3268 = vmatprep.subr.bf16.mxu0 0
    %3269 = vmatpush1.bf16.msra.mxu0 0
    %3270 = vmatprep.subr.bf16.mxu0 0
    %3271 = vmatpush1.bf16.msra.mxu0 0
    %3272 = vmatprep.subr.bf16.mxu0 0
    %3273 = vmatpush1.bf16.msra.mxu0 0
    %3274 = vmatprep.subr.bf16.mxu0 0
    %3275 = vmatpush1.bf16.msra.mxu0 0
    %3276 = vmatprep.subr.bf16.mxu0 0
    %3277 = vmatpush1.bf16.msra.mxu0 0
    %3278 = vmatprep.subr.bf16.mxu0 0
    %3279 = vmatpush1.bf16.msra.mxu0 0
    %3280 = vmatprep.subr.bf16.mxu0 0
    %3281 = vmatpush1.bf16.msra.mxu0 0
    %3282 = vmatprep.subr.bf16.mxu0 0
    %3283 = vmatpush1.bf16.msra.mxu0 0
    %3284 = vmatprep.mubr.bf16.mxu0 0
    %3285 = vmatmul.mubr.bf16.gmra.mrb[0].mxu0 %v3232
    %v3286 = vpop.f32.mrb[0].mxu0
    %v3287 = vadd.f32 0.0, %v3286
    %v3288 = vpop.f32.mrb[0].mxu0
    %v3289 = vadd.f32 0.0, %v3288
    %v3290 = vpop.f32.mrb[0].mxu0
    %v3291 = vpop.f32.mrb[0].mxu0
    %3292 = vdwg.mxu0
    %3293 = vmatprep.subr.bf16.mxu0 %v3244
    %3294 = vmatpush1.bf16.msra.mxu0 %v3241
    %3295 = vmatprep.subr.bf16.mxu0 0
    %3296 = vmatpush1.bf16.msra.mxu0 0
    %3297 = vmatprep.subr.bf16.mxu0 0
    %3298 = vmatpush1.bf16.msra.mxu0 0
    %3299 = vmatprep.subr.bf16.mxu0 0
    %3300 = vmatpush1.bf16.msra.mxu0 0
    %3301 = vmatprep.subr.bf16.mxu0 0
    %3302 = vmatpush1.bf16.msra.mxu0 0
    %3303 = vmatprep.subr.bf16.mxu0 0
    %3304 = vmatpush1.bf16.msra.mxu0 0
    %3305 = vmatprep.subr.bf16.mxu0 0
    %3306 = vmatpush1.bf16.msra.mxu0 0
    %3307 = vmatprep.subr.bf16.mxu0 0
    %3308 = vmatpush1.bf16.msra.mxu0 0
    %3309 = vmatprep.subr.bf16.mxu0 0
    %3310 = vmatpush1.bf16.msra.mxu0 0
    %3311 = vmatprep.subr.bf16.mxu0 0
    %3312 = vmatpush1.bf16.msra.mxu0 0
    %3313 = vmatprep.subr.bf16.mxu0 0
    %3314 = vmatpush1.bf16.msra.mxu0 0
    %3315 = vmatprep.subr.bf16.mxu0 0
    %3316 = vmatpush1.bf16.msra.mxu0 0
    %3317 = vmatprep.subr.bf16.mxu0 0
    %3318 = vmatpush1.bf16.msra.mxu0 0
    %3319 = vmatprep.subr.bf16.mxu0 0
    %3320 = vmatpush1.bf16.msra.mxu0 0
    %3321 = vmatprep.subr.bf16.mxu0 0
    %3322 = vmatpush1.bf16.msra.mxu0 0
    %3323 = vmatprep.subr.bf16.mxu0 0
    %3324 = vmatpush1.bf16.msra.mxu0 0
    %3325 = vmatprep.mubr.bf16.mxu0 0
    %3326 = vmatmul.mubr.bf16.gmra.mrb[0].mxu0 %v3232
    %v3327 = vpop.f32.mrb[0].mxu0
    %v3328 = vadd.f32 0.0, %v3327
    %v3329 = vpop.f32.mrb[0].mxu0
    %v3330 = vadd.f32 0.0, %v3329
    %v3331 = vpop.f32.mrb[0].mxu0
    %v3332 = vpop.f32.mrb[0].mxu0
    %3333 = vdwg.mxu0
    %3334 = vmatprep.subr.bf16.mxu0 %v3250
    %3335 = vmatpush1.bf16.msra.mxu0 %v3247
    %3336 = vmatprep.subr.bf16.mxu0 0
    %3337 = vmatpush1.bf16.msra.mxu0 0
    %3338 = vmatprep.subr.bf16.mxu0 0
    %3339 = vmatpush1.bf16.msra.mxu0 0
    %3340 = vmatprep.subr.bf16.mxu0 0
    %3341 = vmatpush1.bf16.msra.mxu0 0
    %3342 = vmatprep.subr.bf16.mxu0 0
    %3343 = vmatpush1.bf16.msra.mxu0 0
    %3344 = vmatprep.subr.bf16.mxu0 0
    %3345 = vmatpush1.bf16.msra.mxu0 0
    %3346 = vmatprep.subr.bf16.mxu0 0
    %3347 = vmatpush1.bf16.msra.mxu0 0
    %3348 = vmatprep.subr.bf16.mxu0 0
    %3349 = vmatpush1.bf16.msra.mxu0 0
    %3350 = vmatprep.subr.bf16.mxu0 0
    %3351 = vmatpush1.bf16.msra.mxu0 0
    %3352 = vmatprep.subr.bf16.mxu0 0
    %3353 = vmatpush1.bf16.msra.mxu0 0
    %3354 = vmatprep.subr.bf16.mxu0 0
    %3355 = vmatpush1.bf16.msra.mxu0 0
    %3356 = vmatprep.subr.bf16.mxu0 0
    %3357 = vmatpush1.bf16.msra.mxu0 0
    %3358 = vmatprep.subr.bf16.mxu0 0
    %3359 = vmatpush1.bf16.msra.mxu0 0
    %3360 = vmatprep.subr.bf16.mxu0 0
    %3361 = vmatpush1.bf16.msra.mxu0 0
    %3362 = vmatprep.subr.bf16.mxu0 0
    %3363 = vmatpush1.bf16.msra.mxu0 0
    %3364 = vmatprep.subr.bf16.mxu0 0
    %3365 = vmatpush1.bf16.msra.mxu0 0
    %3366 = vmatprep.mubr.bf16.mxu0 0
    %3367 = vmatmul.mubr.bf16.gmra.mrb[0].mxu0 %v3232
    %v3368 = vpop.f32.mrb[0].mxu0
    %v3369 = vadd.f32 0.0, %v3368
    %v3370 = vpop.f32.mrb[0].mxu0
    %v3371 = vadd.f32 0.0, %v3370
    %v3372 = vpop.f32.mrb[0].mxu0
    %v3373 = vpop.f32.mrb[0].mxu0
    %3374 = vdwg.mxu0
    %v3375 = vadd.f32 %v3203, %v3287
    %v3376 = vadd.f32 %v3204, %v3289
    %v3377 = vadd.f32 %v3205, %v3328
    %v3378 = vadd.f32 %v3206, %v3330
    %v3379 = vadd.f32 %v3207, %v3369
    %v3380 = vadd.f32 %v3208, %v3371
    %s3381 = scalar_lea.vmem [#allocation9], 32
    %v3382 = vld [vmem:[%s3381] sm:$0xf]
    %3383 = vrot.lane.b32.xlu0 %v2860, 109
    %v3384 = vpop.permute.xlu0 %3383
    %3385 = vrot.lane.b32.xlu0 %v2861, 109
    %v3386 = vpop.permute.xlu0 %3385
    %3387 = vrot.lane.b32.xlu0 %v2862, 109
    %v3388 = vpop.permute.xlu0 %3387
    %3389 = vrot.lane.b32.xlu0 %v2863, 109
    %v3390 = vpop.permute.xlu0 %3389
    %3391 = vrot.lane.b32.xlu0 %v2864, 109
    %v3392 = vpop.permute.xlu0 %3391
    %3393 = vrot.lane.b32.xlu0 %v2865, 109
    %v3394 = vpop.permute.xlu0 %3393
    %3395 = vrot.lane.b32.xlu0 %v2866, 109
    %v3396 = vpop.permute.xlu0 %3395
    %v3397 = vsel %vm1516, %v3384, %v3386
    %v3398 = vsel %vm1516, %v3386, %v3388
    %v3399 = vsel %vm1516, %v3388, %v3390
    %v3400 = vsel %vm1516, %v3390, %v3392
    %v3401 = vsel %vm1516, %v3392, %v3394
    %v3402 = vsel %vm1516, %v3394, %v3396
    %v3404 = vsel %vm132, %v3382, 0
    %v3407 = vsel %vm136, %v3397, 0
    %v3410 = vsel %vm136, %v3398, 0
    %v3413 = vsel %vm136, %v3399, 0
    %v3416 = vsel %vm136, %v3400, 0
    %v3419 = vsel %vm136, %v3401, 0
    %v3422 = vsel %vm136, %v3402, 0
    %3424 = vmatprep.subr.bf16.mxu0 %v3410
    %3425 = vmatpush1.bf16.msra.mxu0 %v3407
    %3426 = vmatprep.subr.bf16.mxu0 0
    %3427 = vmatpush1.bf16.msra.mxu0 0
    %3428 = vmatprep.subr.bf16.mxu0 0
    %3429 = vmatpush1.bf16.msra.mxu0 0
    %3430 = vmatprep.subr.bf16.mxu0 0
    %3431 = vmatpush1.bf16.msra.mxu0 0
    %3432 = vmatprep.subr.bf16.mxu0 0
    %3433 = vmatpush1.bf16.msra.mxu0 0
    %3434 = vmatprep.subr.bf16.mxu0 0
    %3435 = vmatpush1.bf16.msra.mxu0 0
    %3436 = vmatprep.subr.bf16.mxu0 0
    %3437 = vmatpush1.bf16.msra.mxu0 0
    %3438 = vmatprep.subr.bf16.mxu0 0
    %3439 = vmatpush1.bf16.msra.mxu0 0
    %3440 = vmatprep.subr.bf16.mxu0 0
    %3441 = vmatpush1.bf16.msra.mxu0 0
    %3442 = vmatprep.subr.bf16.mxu0 0
    %3443 = vmatpush1.bf16.msra.mxu0 0
    %3444 = vmatprep.subr.bf16.mxu0 0
    %3445 = vmatpush1.bf16.msra.mxu0 0
    %3446 = vmatprep.subr.bf16.mxu0 0
    %3447 = vmatpush1.bf16.msra.mxu0 0
    %3448 = vmatprep.subr.bf16.mxu0 0
    %3449 = vmatpush1.bf16.msra.mxu0 0
    %3450 = vmatprep.subr.bf16.mxu0 0
    %3451 = vmatpush1.bf16.msra.mxu0 0
    %3452 = vmatprep.subr.bf16.mxu0 0
    %3453 = vmatpush1.bf16.msra.mxu0 0
    %3454 = vmatprep.subr.bf16.mxu0 0
    %3455 = vmatpush1.bf16.msra.mxu0 0
    %3456 = vmatprep.mubr.bf16.mxu0 0
    %3457 = vmatmul.mubr.bf16.gmra.mrb[0].mxu0 %v3404
    %v3458 = vpop.f32.mrb[0].mxu0
    %v3459 = vadd.f32 0.0, %v3458
    %v3460 = vpop.f32.mrb[0].mxu0
    %v3461 = vadd.f32 0.0, %v3460
    %v3462 = vpop.f32.mrb[0].mxu0
    %v3463 = vpop.f32.mrb[0].mxu0
    %3464 = vdwg.mxu0
    %3465 = vmatprep.subr.bf16.mxu0 %v3416
    %3466 = vmatpush1.bf16.msra.mxu0 %v3413
    %3467 = vmatprep.subr.bf16.mxu0 0
    %3468 = vmatpush1.bf16.msra.mxu0 0
    %3469 = vmatprep.subr.bf16.mxu0 0
    %3470 = vmatpush1.bf16.msra.mxu0 0
    %3471 = vmatprep.subr.bf16.mxu0 0
    %3472 = vmatpush1.bf16.msra.mxu0 0
    %3473 = vmatprep.subr.bf16.mxu0 0
    %3474 = vmatpush1.bf16.msra.mxu0 0
    %3475 = vmatprep.subr.bf16.mxu0 0
    %3476 = vmatpush1.bf16.msra.mxu0 0
    %3477 = vmatprep.subr.bf16.mxu0 0
    %3478 = vmatpush1.bf16.msra.mxu0 0
    %3479 = vmatprep.subr.bf16.mxu0 0
    %3480 = vmatpush1.bf16.msra.mxu0 0
    %3481 = vmatprep.subr.bf16.mxu0 0
    %3482 = vmatpush1.bf16.msra.mxu0 0
    %3483 = vmatprep.subr.bf16.mxu0 0
    %3484 = vmatpush1.bf16.msra.mxu0 0
    %3485 = vmatprep.subr.bf16.mxu0 0
    %3486 = vmatpush1.bf16.msra.mxu0 0
    %3487 = vmatprep.subr.bf16.mxu0 0
    %3488 = vmatpush1.bf16.msra.mxu0 0
    %3489 = vmatprep.subr.bf16.mxu0 0
    %3490 = vmatpush1.bf16.msra.mxu0 0
    %3491 = vmatprep.subr.bf16.mxu0 0
    %3492 = vmatpush1.bf16.msra.mxu0 0
    %3493 = vmatprep.subr.bf16.mxu0 0
    %3494 = vmatpush1.bf16.msra.mxu0 0
    %3495 = vmatprep.subr.bf16.mxu0 0
    %3496 = vmatpush1.bf16.msra.mxu0 0
    %3497 = vmatprep.mubr.bf16.mxu0 0
    %3498 = vmatmul.mubr.bf16.gmra.mrb[0].mxu0 %v3404
    %v3499 = vpop.f32.mrb[0].mxu0
    %v3500 = vadd.f32 0.0, %v3499
    %v3501 = vpop.f32.mrb[0].mxu0
    %v3502 = vadd.f32 0.0, %v3501
    %v3503 = vpop.f32.mrb[0].mxu0
    %v3504 = vpop.f32.mrb[0].mxu0
    %3505 = vdwg.mxu0
    %3506 = vmatprep.subr.bf16.mxu0 %v3422
    %3507 = vmatpush1.bf16.msra.mxu0 %v3419
    %3508 = vmatprep.subr.bf16.mxu0 0
    %3509 = vmatpush1.bf16.msra.mxu0 0
    %3510 = vmatprep.subr.bf16.mxu0 0
    %3511 = vmatpush1.bf16.msra.mxu0 0
    %3512 = vmatprep.subr.bf16.mxu0 0
    %3513 = vmatpush1.bf16.msra.mxu0 0
    %3514 = vmatprep.subr.bf16.mxu0 0
    %3515 = vmatpush1.bf16.msra.mxu0 0
    %3516 = vmatprep.subr.bf16.mxu0 0
    %3517 = vmatpush1.bf16.msra.mxu0 0
    %3518 = vmatprep.subr.bf16.mxu0 0
    %3519 = vmatpush1.bf16.msra.mxu0 0
    %3520 = vmatprep.subr.bf16.mxu0 0
    %3521 = vmatpush1.bf16.msra.mxu0 0
    %3522 = vmatprep.subr.bf16.mxu0 0
    %3523 = vmatpush1.bf16.msra.mxu0 0
    %3524 = vmatprep.subr.bf16.mxu0 0
    %3525 = vmatpush1.bf16.msra.mxu0 0
    %3526 = vmatprep.subr.bf16.mxu0 0
    %3527 = vmatpush1.bf16.msra.mxu0 0
    %3528 = vmatprep.subr.bf16.mxu0 0
    %3529 = vmatpush1.bf16.msra.mxu0 0
    %3530 = vmatprep.subr.bf16.mxu0 0
    %3531 = vmatpush1.bf16.msra.mxu0 0
    %3532 = vmatprep.subr.bf16.mxu0 0
    %3533 = vmatpush1.bf16.msra.mxu0 0
    %3534 = vmatprep.subr.bf16.mxu0 0
    %3535 = vmatpush1.bf16.msra.mxu0 0
    %3536 = vmatprep.subr.bf16.mxu0 0
    %3537 = vmatpush1.bf16.msra.mxu0 0
    %3538 = vmatprep.mubr.bf16.mxu0 0
    %3539 = vmatmul.mubr.bf16.gmra.mrb[0].mxu0 %v3404
    %v3540 = vpop.f32.mrb[0].mxu0
    %v3541 = vadd.f32 0.0, %v3540
    %v3542 = vpop.f32.mrb[0].mxu0
    %v3543 = vadd.f32 0.0, %v3542
    %v3544 = vpop.f32.mrb[0].mxu0
    %v3545 = vpop.f32.mrb[0].mxu0
    %3546 = vdwg.mxu0
    %v3547 = vadd.f32 %v3375, %v3459
    %v3548 = vadd.f32 %v3376, %v3461
    %v3549 = vadd.f32 %v3377, %v3500
    %v3550 = vadd.f32 %v3378, %v3502
    %v3551 = vadd.f32 %v3379, %v3541
    %v3552 = vadd.f32 %v3380, %v3543
    %3553 = vset.pattern.permute.xlu0 3
    %3554 = vperm.xlu0 %3553, %v85
    %v3555 = vpop.permute.xlu0 %3554
    %v3557 = vadd.f32 %v3547, %v3555
    %v3558 = vadd.f32 %v3548, %v3555
    %v3559 = vadd.f32 %v3549, %v3555
    %v3560 = vadd.f32 %v3550, %v3555
    %v3561 = vadd.f32 %v3551, %v3555
    %v3562 = vadd.f32 %v3552, %v3555
    %v3563 = vmul.f32 %v3557, %v1688
    %v3564 = vmul.f32 %v3558, %v1692
    %v3565 = vmul.f32 %v3559, %v1696
    %v3566 = vmul.f32 %v3560, %v1700
    %v3567 = vmul.f32 %v3561, %v1704
    %v3568 = vmul.f32 %v3562, %v1708
    %v3569 = vadd.f32 %v3563, %v3564
    %v3570 = vadd.f32 %v3569, %v3565
    %v3571 = vadd.f32 %v3570, %v3566
    %v3572 = vadd.f32 %v3571, %v3567
    %v3573 = vadd.f32 %v3572, %v3568
    %3574 = vadd.xlane.f32.xlu0 %v3573
    %v3575 = vpop.xlane.xlu0 %3574
    %v3576 = vmul.f32 %v3575, 0.001953125
    %v3577 = vmul.f32 %v3563, %v3557
    %v3578 = vmul.f32 %v3564, %v3558
    %v3579 = vmul.f32 %v3565, %v3559
    %v3580 = vmul.f32 %v3566, %v3560
    %v3581 = vmul.f32 %v3567, %v3561
    %v3582 = vmul.f32 %v3568, %v3562
    %v3583 = vadd.f32 %v3577, %v3578
    %v3584 = vadd.f32 %v3583, %v3579
    %v3585 = vadd.f32 %v3584, %v3580
    %v3586 = vadd.f32 %v3585, %v3581
    %v3587 = vadd.f32 %v3586, %v3582
    %3588 = vadd.xlane.f32.xlu0 %v3587
    %v3589 = vpop.xlane.xlu0 %3588
    %v3590 = vmul.f32 %v3589, 0.001953125
    %v3591 = vmul.f32 %v3576, %v3576
    %v3592 = vsub.f32 %v3590, %v3591
    %v3593 = vsub.f32 %v3557, %v3576
    %v3594 = vsub.f32 %v3558, %v3576
    %v3595 = vsub.f32 %v3559, %v3576
    %v3596 = vsub.f32 %v3560, %v3576
    %v3597 = vsub.f32 %v3561, %v3576
    %v3598 = vsub.f32 %v3562, %v3576
    %v3599 = vadd.f32 %v3592, 1e-05
    %v3600 = vrsqrt.pop %v3599
    %v3601 = vmul.f32 %v3593, %v3600
    %v3602 = vmul.f32 %v3594, %v3600
    %v3603 = vmul.f32 %v3595, %v3600
    %v3604 = vmul.f32 %v3596, %v3600
    %v3605 = vmul.f32 %v3597, %v3600
    %v3606 = vmul.f32 %v3598, %v3600
    %3607 = vset.pattern.permute.xlu0 4
    %3608 = vperm.xlu0 %3607, %v85
    %v3609 = vpop.permute.xlu0 %3608
    %v3611 = vmul.f32 %v3601, %v3609
    %v3612 = vmul.f32 %v3602, %v3609
    %v3613 = vmul.f32 %v3603, %v3609
    %v3614 = vmul.f32 %v3604, %v3609
    %v3615 = vmul.f32 %v3605, %v3609
    %v3616 = vmul.f32 %v3606, %v3609
    %3617 = vset.pattern.permute.xlu0 5
    %3618 = vperm.xlu0 %3617, %v85
    %v3619 = vpop.permute.xlu0 %3618
    %v3621 = vadd.f32 %v3611, %v3619
    %v3622 = vadd.f32 %v3612, %v3619
    %v3623 = vadd.f32 %v3613, %v3619
    %v3624 = vadd.f32 %v3614, %v3619
    %v3625 = vadd.f32 %v3615, %v3619
    %v3626 = vadd.f32 %v3616, %v3619
    %v3627 = vmul.f32 %v3621, 0.70710677
    %v3628 = vmul.f32 %v3622, 0.70710677
    %v3629 = vmul.f32 %v3623, 0.70710677
    %v3630 = vmul.f32 %v3624, 0.70710677
    %v3631 = vmul.f32 %v3625, 0.70710677
    %v3632 = vmul.f32 %v3626, 0.70710677
    %vm3633 = vcmp.ge.f32.partialorder %v3627, 0.0
    %vm3634 = vcmp.ge.f32.partialorder %v3628, 0.0
    %vm3635 = vcmp.ge.f32.partialorder %v3629, 0.0
    %vm3636 = vcmp.ge.f32.partialorder %v3630, 0.0
    %vm3637 = vcmp.ge.f32.partialorder %v3631, 0.0
    %vm3638 = vcmp.ge.f32.partialorder %v3632, 0.0
    %v3639 = vsel %vm3633, 1.0, -1.0
    %v3640 = vsel %vm3634, 1.0, -1.0
    %v3641 = vsel %vm3635, 1.0, -1.0
    %v3642 = vsel %vm3636, 1.0, -1.0
    %v3643 = vsel %vm3637, 1.0, -1.0
    %v3644 = vsel %vm3638, 1.0, -1.0
    %v3645 = vand.u32 2147483647, %v3627
    %v3646 = vand.u32 2147483647, %v3628
    %v3647 = vand.u32 2147483647, %v3629
    %v3648 = vand.u32 2147483647, %v3630
    %v3649 = vand.u32 2147483647, %v3631
    %v3650 = vand.u32 2147483647, %v3632
    %v3651 = vmul.f32 %v3645, 0.3275911
    %v3652 = vmul.f32 %v3646, 0.3275911
    %v3653 = vmul.f32 %v3647, 0.3275911
    %v3654 = vmul.f32 %v3648, 0.3275911
    %v3655 = vmul.f32 %v3649, 0.3275911
    %v3656 = vmul.f32 %v3650, 0.3275911
    %v3657 = vadd.f32 %v3651, 1.0
    %v3658 = vadd.f32 %v3652, 1.0
    %v3659 = vadd.f32 %v3653, 1.0
    %v3660 = vadd.f32 %v3654, 1.0
    %v3661 = vadd.f32 %v3655, 1.0
    %v3662 = vadd.f32 %v3656, 1.0
    %v3663 = vrcp.pop %v3657
    %v3664 = vmul.f32 1.0, %v3663
    %v3665 = vrcp.pop %v3658
    %v3666 = vmul.f32 1.0, %v3665
    %v3667 = vrcp.pop %v3659
    %v3668 = vmul.f32 1.0, %v3667
    %v3669 = vrcp.pop %v3660
    %v3670 = vmul.f32 1.0, %v3669
    %v3671 = vrcp.pop %v3661
    %v3672 = vmul.f32 1.0, %v3671
    %v3673 = vrcp.pop %v3662
    %v3674 = vmul.f32 1.0, %v3673
    %v3675 = vmul.f32 %v3664, 1.0614054
    %v3676 = vmul.f32 %v3666, 1.0614054
    %v3677 = vmul.f32 %v3668, 1.0614054
    %v3678 = vmul.f32 %v3670, 1.0614054
    %v3679 = vmul.f32 %v3672, 1.0614054
    %v3680 = vmul.f32 %v3674, 1.0614054
    %v3681 = vadd.f32 %v3675, -1.4531521
    %v3682 = vadd.f32 %v3676, -1.4531521
    %v3683 = vadd.f32 %v3677, -1.4531521
    %v3684 = vadd.f32 %v3678, -1.4531521
    %v3685 = vadd.f32 %v3679, -1.4531521
    %v3686 = vadd.f32 %v3680, -1.4531521
    %v3687 = vmul.f32 %v3681, %v3664
    %v3688 = vmul.f32 %v3682, %v3666
    %v3689 = vmul.f32 %v3683, %v3668
    %v3690 = vmul.f32 %v3684, %v3670
    %v3691 = vmul.f32 %v3685, %v3672
    %v3692 = vmul.f32 %v3686, %v3674
    %v3693 = vadd.f32 %v3687, 1.4214138
    %v3694 = vadd.f32 %v3688, 1.4214138
    %v3695 = vadd.f32 %v3689, 1.4214138
    %v3696 = vadd.f32 %v3690, 1.4214138
    %v3697 = vadd.f32 %v3691, 1.4214138
    %v3698 = vadd.f32 %v3692, 1.4214138
    %v3699 = vmul.f32 %v3693, %v3664
    %v3700 = vmul.f32 %v3694, %v3666
    %v3701 = vmul.f32 %v3695, %v3668
    %v3702 = vmul.f32 %v3696, %v3670
    %v3703 = vmul.f32 %v3697, %v3672
    %v3704 = vmul.f32 %v3698, %v3674
    %v3705 = vadd.f32 %v3699, -0.28449672
    %v3706 = vadd.f32 %v3700, -0.28449672
    %v3707 = vadd.f32 %v3701, -0.28449672
    %v3708 = vadd.f32 %v3702, -0.28449672
    %v3709 = vadd.f32 %v3703, -0.28449672
    %v3710 = vadd.f32 %v3704, -0.28449672
    %v3711 = vmul.f32 %v3705, %v3664
    %v3712 = vmul.f32 %v3706, %v3666
    %v3713 = vmul.f32 %v3707, %v3668
    %v3714 = vmul.f32 %v3708, %v3670
    %v3715 = vmul.f32 %v3709, %v3672
    %v3716 = vmul.f32 %v3710, %v3674
    %v3717 = vadd.f32 %v3711, 0.2548296
    %v3718 = vadd.f32 %v3712, 0.2548296
    %v3719 = vadd.f32 %v3713, 0.2548296
    %v3720 = vadd.f32 %v3714, 0.2548296
    %v3721 = vadd.f32 %v3715, 0.2548296
    %v3722 = vadd.f32 %v3716, 0.2548296
    %v3723 = vmul.f32 %v3717, %v3664
    %v3724 = vmul.f32 %v3718, %v3666
    %v3725 = vmul.f32 %v3719, %v3668
    %v3726 = vmul.f32 %v3720, %v3670
    %v3727 = vmul.f32 %v3721, %v3672
    %v3728 = vmul.f32 %v3722, %v3674
    %v3729 = vsub.f32 0.0, %v3645
    %v3730 = vsub.f32 0.0, %v3646
    %v3731 = vsub.f32 0.0, %v3647
    %v3732 = vsub.f32 0.0, %v3648
    %v3733 = vsub.f32 0.0, %v3649
    %v3734 = vsub.f32 0.0, %v3650
    %v3735 = vmul.f32 %v3729, %v3645
    %v3736 = vmul.f32 %v3730, %v3646
    %v3737 = vmul.f32 %v3731, %v3647
    %v3738 = vmul.f32 %v3732, %v3648
    %v3739 = vmul.f32 %v3733, %v3649
    %v3740 = vmul.f32 %v3734, %v3650
    %v3741 = vmul.f32 %v3735, 1.442695
    %v3742 = vpow.pop %v3741
    %v3743 = vmul.f32 %v3736, 1.442695
    %v3744 = vpow.pop %v3743
    %v3745 = vmul.f32 %v3737, 1.442695
    %v3746 = vpow.pop %v3745
    %v3747 = vmul.f32 %v3738, 1.442695
    %v3748 = vpow.pop %v3747
    %v3749 = vmul.f32 %v3739, 1.442695
    %v3750 = vpow.pop %v3749
    %v3751 = vmul.f32 %v3740, 1.442695
    %v3752 = vpow.pop %v3751
    %v3753 = vmul.f32 %v3723, %v3742
    %v3754 = vmul.f32 %v3724, %v3744
    %v3755 = vmul.f32 %v3725, %v3746
    %v3756 = vmul.f32 %v3726, %v3748
    %v3757 = vmul.f32 %v3727, %v3750
    %v3758 = vmul.f32 %v3728, %v3752
    %v3759 = vsub.f32 1.0, %v3753
    %v3760 = vsub.f32 1.0, %v3754
    %v3761 = vsub.f32 1.0, %v3755
    %v3762 = vsub.f32 1.0, %v3756
    %v3763 = vsub.f32 1.0, %v3757
    %v3764 = vsub.f32 1.0, %v3758
    %v3765 = vmul.f32 %v3639, %v3759
    %v3766 = vmul.f32 %v3640, %v3760
    %v3767 = vmul.f32 %v3641, %v3761
    %v3768 = vmul.f32 %v3642, %v3762
    %v3769 = vmul.f32 %v3643, %v3763
    %v3770 = vmul.f32 %v3644, %v3764
    %v3771 = vmul.f32 %v3621, 0.5
    %v3772 = vmul.f32 %v3622, 0.5
    %v3773 = vmul.f32 %v3623, 0.5
    %v3774 = vmul.f32 %v3624, 0.5
    %v3775 = vmul.f32 %v3625, 0.5
    %v3776 = vmul.f32 %v3626, 0.5
    %v3777 = vadd.f32 %v3765, 1.0
    %v3778 = vadd.f32 %v3766, 1.0
    %v3779 = vadd.f32 %v3767, 1.0
    %v3780 = vadd.f32 %v3768, 1.0
    %v3781 = vadd.f32 %v3769, 1.0
    %v3782 = vadd.f32 %v3770, 1.0
    %v3783 = vmul.f32 %v3771, %v3777
    %v3784 = vmul.f32 %v3772, %v3778
    %v3785 = vmul.f32 %v3773, %v3779
    %v3786 = vmul.f32 %v3774, %v3780
    %v3787 = vmul.f32 %v3775, %v3781
    %v3788 = vmul.f32 %v3776, %v3782
    %v3789 = vadd.f32 %v3783, %v1935
    %v3790 = vadd.f32 %v3784, %v1936
    %v3791 = vadd.f32 %v3785, %v1937
    %v3792 = vadd.f32 %v3786, %v1938
    %v3793 = vadd.f32 %v3787, %v1939
    %v3794 = vadd.f32 %v3788, %v1940
    %v3795 = vmul.f32 %v3789, 0.7072136
    %v3796 = vmul.f32 %v3790, 0.7072136
    %v3797 = vmul.f32 %v3791, 0.7072136
    %v3798 = vmul.f32 %v3792, 0.7072136
    %v3799 = vmul.f32 %v3793, 0.7072136
    %v3800 = vmul.f32 %v3794, 0.7072136
    %3801 = vst [vmem:[#allocation12] sm:$0xff] %v3795
    %3802 = vst [vmem:[#allocation12 + $0x8] sm:$0xff] %v3796
    %3803 = vst [vmem:[#allocation12 + $0x10] sm:$0xff] %v3797
    %3804 = vst [vmem:[#allocation12 + $0x18] sm:$0xff] %v3798
    %3805 = vst [vmem:[#allocation12 + $0x20] sm:$0xff] %v3799
    %3806 = vst [vmem:[#allocation12 + $0x28] sm:$0xff] %v3800
    // Predicated region
    $region42: #{tpu_custom_call.1} parent=1 // pred_check
      _
    $region43: #{tpu_custom_call.1} parent=1 // pred_check_branch
      %3808 = sbr.rel (0) target = $region45
    $region44: #{tpu_custom_call.1} parent=1 // pred_region
      %s3810 = ssub.s32 768, 768
      %3811 = vsyncadd [#allocation5], %s3810
      %s3813 = sshll.u32 [#allocation12], 4
      %s3814 = int_to_ptr.vmem [resolvable:$true] %s3813
      %3816 = dma.vmem_to_hbm [thread:$0]  %s3814, 768, %s5, [#allocation5]
    $region45: #{tpu_custom_call.1} parent=1 // pred_fallthru
      _
    // Predicated region
    $region46: #{tpu_custom_call.1} parent=1 // pred_check
      _
    $region47: #{tpu_custom_call.1} parent=1 // pred_check_branch
      %3818 = sbr.rel (0) target = $region49
    $region48: #{tpu_custom_call.1} parent=1 // pred_region
      %3819 = dma.done [#allocation5], 768
    $region49: #{tpu_custom_call.1} parent=1 // pred_fallthru
      _
    %3820 = vsyncpa [#allocation4], 1
    %3821 = vsyncpa [#allocation7], 1
    %3822 = vsyncpa [#allocation10], 1
    %3823 = vsyncpa [#allocation5], 1

</llo_original>
